<compile_context>
chip_gen: v7x
topology: tpu7x:2x2x1
jax: 0.10.0
libtpu: 0.0.40
codegen_flags: <defaults>
</compile_context>

<pallas_src>
import math
import jax
import jax.numpy as jnp
from jax import lax
from jax.experimental import pallas as pl
from jax.experimental.pallas import tpu as pltpu


_INV_SQRT2 = 0.7071067811865476
_SQRT_2_OVER_PI = 0.7978845608028654


def _gelu_exact(x):
    # PyTorch nn.GELU() default: exact erf-based GELU (VALU polynomial).
    return 0.5 * x * (1.0 + lax.erf(x * jnp.asarray(_INV_SQRT2, x.dtype)))


def _gelu_tanh(x):
    # tanh approximation: the transcendental rides the EUP slot instead of a long
    # VALU erf polynomial (review: ~20-40% of in-kernel time at these channel sizes).
    c = jnp.asarray(_SQRT_2_OVER_PI, x.dtype)
    k = jnp.asarray(0.044715, x.dtype)
    return 0.5 * x * (1.0 + jnp.tanh(c * (x + k * x * x * x)))


def make_ff_kernel(approximate_gelu=True):
    def kernel(x9_ref, xres_ref, w1_ref, b1_ref, w2_ref, b2_ref,
               w3_ref, b3_ref, o_ref):
        # Layout: channels-major, token tile (multiple of 128) in the lane (minor) dim.
        # 1) depthwise3x3 + pointwise(C->C1) + BatchNorm fused into one bf16 MXU matmul
        #    over the im2col'd K = 9C contraction (BN & both biases pre-folded).
        z1 = jnp.dot(w1_ref[...], x9_ref[...],
                     preferred_element_type=jnp.float32) + b1_ref[...]
        # 2) 1x1 conv C1->C2 (bf16 MXU, f32 acc) + bias (f32) + GELU.
        z2 = jnp.dot(w2_ref[...], z1.astype(jnp.bfloat16),
                     preferred_element_type=jnp.float32) + b2_ref[...]
        if approximate_gelu:
            # Widest tensor: drop to bf16 right after the bias add (halves vreg/VMEM
            # pressure) and use the tanh form (EUP). Feeds matmul 3 directly.
            z2 = _gelu_tanh(z2.astype(jnp.bfloat16))
        else:
            z2 = _gelu_exact(z2).astype(jnp.bfloat16)
        # 3) 1x1 conv C2->C (bf16 MXU, f32 acc) + bias + GELU + residual, f32 epilogue.
        z3 = jnp.dot(w3_ref[...], z2,
                     preferred_element_type=jnp.float32) + b3_ref[...]
        z3 = _gelu_tanh(z3) if approximate_gelu else _gelu_exact(z3)
        # Lane-dense store: the token tile is the minor dim.
        o_ref[...] = (xres_ref[...] + z3).astype(o_ref.dtype)
    return kernel


def _tpu_cores_and_vmem():
    """(TensorCores per chip, physical VMEM bytes per core); conservative fallback."""
    try:
        kind = jax.devices()[0].device_kind.lower()
    except Exception:
        kind = ""
    if "v7" in kind:
        return 2, 64 * 1024 * 1024       # v7x: 2 TCs, 64 MiB VMEM per TC
    return 1, 128 * 1024 * 1024          # v5e / v6e: 1 TC, 128 MiB VMEM


def _vmem_estimate(tile, C, C9, C1, C2):
    """Rough per-step VMEM footprint (bytes) for a given token tile."""
    act = 2 * (C9 * tile * 2 + C * tile * 4)    # dbl-buffered im2col (bf16) + residual (f32)
    out = 2 * (C * tile * 4)                    # dbl-buffered output block
    wgt = (C1 * C9 + C2 * C1 + C * C2) * 2 + (C1 + C2 + C) * 4  # single-buffered weights
    inter = (C1 + C2) * tile * 4                # z1 / z2 intermediates (f32)
    return act + out + wgt + inter


def _pick_tile_tokens(total, C, C9, C1, C2, num_cores, vmem_cap):
    """Largest lane-dense token tile that fits VMEM; keep the grid splittable across
    TensorCores on multi-core chips (v7x)."""
    cands = [t for t in range(128, min(total, 1024) + 1, 128) if total % t == 0]
    if not cands:
        # Tiny / irregular token counts: single (possibly lane-masked) block.
        return total
    budget = vmem_cap // 2
    fit = [t for t in cands if _vmem_estimate(t, C, C9, C1, C2) <= budget] or [cands[0]]
    for t in sorted(fit, reverse=True):
        if (total // t) % num_cores == 0:
            return t
    return max(fit)


def feedforward_pallas(x, params, *, tile_tokens=None, approximate_gelu=True,
                       out_dtype=jnp.float32, channels_major_output=False):
    """x: (B, HW, C) float32. Returns (B, HW, C), or (C, B*HW) if channels_major_output."""
    B, HW, C = x.shape
    H = W = int(math.sqrt(HW))
    assert H * W == HW, "sequence length must be a perfect square (square feature map)"

    dww, dwb, w1, b1, bns, bnb, w2, b2, w3, b3 = params
    C1 = w1.shape[1]
    C2 = w2.shape[1]
    C9 = 9 * C
    total = B * HW

    # ---------- one-time parameter folding (wrapper-side, zero kernel cost) ----------
    # Combined depthwise+pointwise weight: W9[tap*C + c, o] = dww[tap, c] * w1[c, o]
    W9 = (dww.reshape(9, C)[:, :, None] * w1[None, :, :]).reshape(C9, C1)
    b1f = dwb @ w1 + b1                       # depthwise bias folded through pointwise1
    W9 = W9 * bns                             # BatchNorm scale folded into weight
    b1f = b1f * bns + bnb                     # BatchNorm shift folded into bias
    w1T = W9.T.astype(jnp.bfloat16)           # (C1, 9C)
    w2T = w2.T.astype(jnp.bfloat16)           # (C2, C1)
    w3T = w3.T.astype(jnp.bfloat16)           # (C,  C2)
    b1T = b1f.T.astype(jnp.float32)           # (C1, 1)
    b2T = b2.T.astype(jnp.float32)            # (C2, 1)
    b3T = b3.T.astype(jnp.float32)            # (C,  1)

    # ---------- activation layout plumbing (wrapper-side) ----------
    # Transpose to channels-major ONCE (C x tokens); the 9 taps are concatenated
    # already channels-major, so the big 9C x tokens slab is never transposed.
    x_cm = jnp.transpose(x.reshape(B, H, W, C), (3, 0, 1, 2))        # (C, B, H, W)
    xresT = x_cm.reshape(C, total)                                   # residual, f32
    x_pad = jnp.pad(x_cm, ((0, 0), (0, 0), (1, 1), (1, 1)))
    taps = [x_pad[:, :, di:di + H, dj:dj + W] for di in range(3) for dj in range(3)]
    x9T = jnp.concatenate(taps, axis=0).reshape(C9, total).astype(jnp.bfloat16)

    # ---------- per-chip tiling ----------
    num_cores, vmem_cap = _tpu_cores_and_vmem()
    if tile_tokens is None:
        tile_tokens = _pick_tile_tokens(total, C, C9, C1, C2, num_cores, vmem_cap)
    assert total % tile_tokens == 0
    n_tiles = total // tile_tokens
    vmem_limit = max(32 * 1024 * 1024, 2 * _vmem_estimate(tile_tokens, C, C9, C1, C2))
    vmem_limit = int(min(vmem_limit, (vmem_cap * 3) // 4))

    kernel = make_ff_kernel(approximate_gelu)
    out_shape = jax.ShapeDtypeStruct((C, total), out_dtype)
    cparams = pltpu.CompilerParams(dimension_semantics=("parallel",),
                                   vmem_limit_bytes=vmem_limit)

    def run(weight_mode):
        def wspec(shape):
            if weight_mode is None:
                return pl.BlockSpec(shape, lambda t: (0, 0))
            return pl.BlockSpec(shape, lambda t: (0, 0), pipeline_mode=weight_mode)
        grid_spec = pltpu.PrefetchScalarGridSpec(
            num_scalar_prefetch=0,
            grid=(n_tiles,),
            in_specs=[
                pl.BlockSpec((C9, tile_tokens), lambda t: (0, t)),  # im2col slab (bf16)
                pl.BlockSpec((C, tile_tokens), lambda t: (0, t)),   # residual (f32)
                wspec((C1, C9)),   # fused dw+pw1+BN weight
                wspec((C1, 1)),    # fused bias
                wspec((C2, C1)),   # conv2 weight
                wspec((C2, 1)),    # conv2 bias
                wspec((C, C2)),    # conv3 weight
                wspec((C, 1)),     # conv3 bias
            ],
            out_specs=pl.BlockSpec((C, tile_tokens), lambda t: (0, t)),
        )
        return pl.pallas_call(
            kernel, out_shape=out_shape, grid_spec=grid_spec,
            compiler_params=cparams,
        )(x9T, xresT, w1T, b1T, w2T, b2T, w3T, b3T)

    try:
        # Constant-index weights/biases only need a single VMEM buffer.
        outT = run(pl.Buffered(1))
    except Exception:
        # Fallback for runtimes without per-BlockSpec pipeline_mode support.
        outT = run(None)

    if channels_major_output:
        return outT            # (C, B*HW): consumer fuses the layout change
    # TODO(synk): this transpose is an extra HBM pass; at production sizes fuse it into
    #   the consumer or pass channels_major_output=True.
    return outT.T.reshape(B, HW, C)


def feedforward_ref(x, params):
    """Pure-JAX fp32 reference of the original (un-folded) FeedForward math."""
    B, HW, C = x.shape
    H = W = int(math.sqrt(HW))
    dww, dwb, w1, b1, bns, bnb, w2, b2, w3, b3 = params
    x_img = x.reshape(B, H, W, C)
    x_pad = jnp.pad(x_img, ((0, 0), (1, 1), (1, 1), (0, 0)))
    acc = jnp.zeros((B, H, W, C), jnp.float32)
    for di in range(3):
        for dj in range(3):
            acc = acc + x_pad[:, di:di + H, dj:dj + W, :] * dww[di, dj, :]
    acc = acc + dwb[0]
    y = acc.reshape(B, HW, C)
    z1 = jnp.einsum('btc,cd->btd', y, w1) + b1[0]
    z1 = z1 * bns[0] + bnb[0]
    z2 = jnp.einsum('btc,cd->btd', z1, w2) + b2[0]
    z2 = _gelu_exact(z2)
    z3 = jnp.einsum('btc,cd->btd', z2, w3) + b3[0]
    z3 = _gelu_exact(z3)
    return x + z3


def init_params(key, dim, C1=256, C2=512):
    ks = jax.random.split(key, 10)
    dww = jax.random.normal(ks[0], (3, 3, dim), jnp.float32) * 0.05   # depthwise (k,k,C)
    dwb = jax.random.normal(ks[1], (1, dim), jnp.float32) * 0.02
    w1 = jax.random.normal(ks[2], (dim, C1), jnp.float32) * 0.05      # pointwise C->256
    b1 = jax.random.normal(ks[3], (1, C1), jnp.float32) * 0.02
    # BatchNorm2d(256) eval-mode: scale = gamma/sqrt(var+eps); shift = beta - mean*scale
    gamma = 1.0 + 0.1 * jax.random.normal(ks[4], (1, C1), jnp.float32)
    beta = 0.05 * jax.random.normal(ks[5], (1, C1), jnp.float32)
    rmean = 0.05 * jax.random.normal(ks[6], (1, C1), jnp.float32)
    rvar = 1.0 + 0.1 * jax.random.uniform(ks[7], (1, C1), jnp.float32)
    eps = 1e-5
    bns = gamma / jnp.sqrt(rvar + eps)
    bnb = beta - rmean * bns
    w2 = jax.random.normal(ks[8], (C1, C2), jnp.float32) * 0.03       # 256->512
    b2 = jnp.zeros((1, C2), jnp.float32)
    w3 = jax.random.normal(ks[9], (C2, dim), jnp.float32) * 0.03      # 512->dim
    b3 = jnp.zeros((1, dim), jnp.float32)
    return (dww, dwb, w1, b1, bns, bnb, w2, b2, w3, b3)


if __name__ == "__main__":
    key = jax.random.PRNGKey(0)
    # B*HW = 256 tokens: one 256-token step on v5e/v6e, two 128-token steps on v7x.
    B, H, W, DIM = 4, 8, 8, 32
    kx, kp = jax.random.split(key)
    x = jax.random.normal(kx, (B, H * W, DIM), jnp.float32)
    params = init_params(kp, DIM)

    out = feedforward_pallas(x, params)
    out = jax.block_until_ready(out)

    ref = feedforward_ref(x, params)
    assert out.shape == (B, H * W, DIM)
    # Tolerance loosened vs. a pure-fp32 path: matmul operands are bf16 (f32 acc) and
    # GELU uses the tanh approximation (documented accuracy change per perf review).
    assert jnp.allclose(out, ref, rtol=2e-2, atol=2e-2), "mismatch vs JAX reference"

    print("KERNEL_OK")
</pallas_src>

<mosaic_0001>
module attributes {stable_mosaic.version = 11 : i64} {
  func.func @kernel(%arg0: i32, %arg1: memref<288x256xbf16, #tpu.memory_space<vmem>>, %arg2: memref<32x256xf32, #tpu.memory_space<vmem>>, %arg3: memref<256x288xbf16, #tpu.memory_space<vmem>>, %arg4: memref<256x1xf32, #tpu.memory_space<vmem>>, %arg5: memref<512x256xbf16, #tpu.memory_space<vmem>>, %arg6: memref<512x1xf32, #tpu.memory_space<vmem>>, %arg7: memref<32x512xbf16, #tpu.memory_space<vmem>>, %arg8: memref<32x1xf32, #tpu.memory_space<vmem>>, %arg9: memref<32x256xf32, #tpu.memory_space<vmem>>) attributes {dimension_semantics = [#tpu.dimension_semantics<parallel>], iteration_bounds = array<i64: 1>, scalar_prefetch = 0 : i64, scratch_operands = 0 : i64, tpu.core_type = #tpu.core_type<tc>, window_params = [{transform_indices = @transform_0, window_bounds = array<i64: 288, 256>}, {transform_indices = @transform_1, window_bounds = array<i64: 32, 256>}, {pipeline_mode = #tpu.pipeline_mode<synchronous>, transform_indices = @transform_2, window_bounds = array<i64: 256, 288>}, {pipeline_mode = #tpu.pipeline_mode<synchronous>, transform_indices = @transform_3, window_bounds = array<i64: 256, 1>}, {pipeline_mode = #tpu.pipeline_mode<synchronous>, transform_indices = @transform_4, window_bounds = array<i64: 512, 256>}, {pipeline_mode = #tpu.pipeline_mode<synchronous>, transform_indices = @transform_5, window_bounds = array<i64: 512, 1>}, {pipeline_mode = #tpu.pipeline_mode<synchronous>, transform_indices = @transform_6, window_bounds = array<i64: 32, 512>}, {pipeline_mode = #tpu.pipeline_mode<synchronous>, transform_indices = @transform_7, window_bounds = array<i64: 32, 1>}, {transform_indices = @transform_8, window_bounds = array<i64: 32, 256>}]} {
    %c0 = arith.constant 0 : index
    %c0_0 = arith.constant 0 : index
    %0 = vector.load %arg3[%c0, %c0_0] : memref<256x288xbf16, #tpu.memory_space<vmem>>, vector<256x288xbf16>
    %c0_1 = arith.constant 0 : index
    %c0_2 = arith.constant 0 : index
    %1 = vector.load %arg1[%c0_1, %c0_2] : memref<288x256xbf16, #tpu.memory_space<vmem>>, vector<288x256xbf16>
    %cst = arith.constant dense<0.000000e+00> : vector<256x256xf32>
    %2 = tpu.matmul %0, %1, %cst {dimension_numbers = #tpu.dot_dimension_numbers<[1], [0], [0], [1], [0, 0, 1, 1], [], []>} : vector<256x288xbf16>, vector<288x256xbf16>, vector<256x256xf32> -> vector<256x256xf32>
    %c0_3 = arith.constant 0 : index
    %c0_4 = arith.constant 0 : index
    %3 = vector.load %arg4[%c0_3, %c0_4] : memref<256x1xf32, #tpu.memory_space<vmem>>, vector<256x1xf32>
    %4 = vector.broadcast %3 : vector<256x1xf32> to vector<256x256xf32>
    %5 = arith.addf %2, %4 : vector<256x256xf32>
    %c0_5 = arith.constant 0 : index
    %c0_6 = arith.constant 0 : index
    %6 = vector.load %arg5[%c0_5, %c0_6] : memref<512x256xbf16, #tpu.memory_space<vmem>>, vector<512x256xbf16>
    %7 = arith.truncf %5 : vector<256x256xf32> to vector<256x256xbf16>
    %cst_7 = arith.constant dense<0.000000e+00> : vector<512x256xf32>
    %8 = tpu.matmul %6, %7, %cst_7 {dimension_numbers = #tpu.dot_dimension_numbers<[1], [0], [0], [1], [0, 0, 1, 1], [], []>} : vector<512x256xbf16>, vector<256x256xbf16>, vector<512x256xf32> -> vector<512x256xf32>
    %c0_8 = arith.constant 0 : index
    %c0_9 = arith.constant 0 : index
    %9 = vector.load %arg6[%c0_8, %c0_9] : memref<512x1xf32, #tpu.memory_space<vmem>>, vector<512x1xf32>
    %10 = vector.broadcast %9 : vector<512x1xf32> to vector<512x256xf32>
    %11 = arith.addf %8, %10 : vector<512x256xf32>
    %12 = arith.truncf %11 : vector<512x256xf32> to vector<512x256xbf16>
    %cst_10 = arith.constant 5.000000e-01 : bf16
    %13 = vector.broadcast %cst_10 : bf16 to vector<512x256xbf16>
    %14 = arith.mulf %13, %12 : vector<512x256xbf16>
    %cst_11 = arith.constant 4.467770e-02 : bf16
    %15 = vector.broadcast %cst_11 : bf16 to vector<512x256xbf16>
    %16 = arith.mulf %15, %12 : vector<512x256xbf16>
    %17 = arith.mulf %16, %12 : vector<512x256xbf16>
    %18 = arith.mulf %17, %12 : vector<512x256xbf16>
    %19 = arith.addf %12, %18 : vector<512x256xbf16>
    %cst_12 = arith.constant 7.968750e-01 : bf16
    %20 = vector.broadcast %cst_12 : bf16 to vector<512x256xbf16>
    %21 = arith.mulf %20, %19 : vector<512x256xbf16>
    %22 = math.tanh %21 : vector<512x256xbf16>
    %cst_13 = arith.constant 1.000000e+00 : bf16
    %23 = vector.broadcast %cst_13 : bf16 to vector<512x256xbf16>
    %24 = arith.addf %23, %22 : vector<512x256xbf16>
    %25 = arith.mulf %14, %24 : vector<512x256xbf16>
    %c0_14 = arith.constant 0 : index
    %c0_15 = arith.constant 0 : index
    %26 = vector.load %arg7[%c0_14, %c0_15] : memref<32x512xbf16, #tpu.memory_space<vmem>>, vector<32x512xbf16>
    %cst_16 = arith.constant dense<0.000000e+00> : vector<32x256xf32>
    %27 = tpu.matmul %26, %25, %cst_16 {dimension_numbers = #tpu.dot_dimension_numbers<[1], [0], [0], [1], [0, 0, 1, 1], [], []>} : vector<32x512xbf16>, vector<512x256xbf16>, vector<32x256xf32> -> vector<32x256xf32>
    %c0_17 = arith.constant 0 : index
    %c0_18 = arith.constant 0 : index
    %28 = vector.load %arg8[%c0_17, %c0_18] : memref<32x1xf32, #tpu.memory_space<vmem>>, vector<32x1xf32>
    %29 = vector.broadcast %28 : vector<32x1xf32> to vector<32x256xf32>
    %30 = arith.addf %27, %29 : vector<32x256xf32>
    %cst_19 = arith.constant 5.000000e-01 : f32
    %31 = vector.broadcast %cst_19 : f32 to vector<32x256xf32>
    %32 = arith.mulf %31, %30 : vector<32x256xf32>
    %cst_20 = arith.constant 4.471500e-02 : f32
    %33 = vector.broadcast %cst_20 : f32 to vector<32x256xf32>
    %34 = arith.mulf %33, %30 : vector<32x256xf32>
    %35 = arith.mulf %34, %30 : vector<32x256xf32>
    %36 = arith.mulf %35, %30 : vector<32x256xf32>
    %37 = arith.addf %30, %36 : vector<32x256xf32>
    %cst_21 = arith.constant 0.797884583 : f32
    %38 = vector.broadcast %cst_21 : f32 to vector<32x256xf32>
    %39 = arith.mulf %38, %37 : vector<32x256xf32>
    %40 = math.tanh %39 : vector<32x256xf32>
    %cst_22 = arith.constant 1.000000e+00 : f32
    %41 = vector.broadcast %cst_22 : f32 to vector<32x256xf32>
    %42 = arith.addf %41, %40 : vector<32x256xf32>
    %43 = arith.mulf %32, %42 : vector<32x256xf32>
    %c0_23 = arith.constant 0 : index
    %c0_24 = arith.constant 0 : index
    %44 = vector.load %arg2[%c0_23, %c0_24] : memref<32x256xf32, #tpu.memory_space<vmem>>, vector<32x256xf32>
    %45 = arith.addf %44, %43 : vector<32x256xf32>
    %c0_25 = arith.constant 0 : index
    %c0_26 = arith.constant 0 : index
    %46 = vector.load %arg9[%c0_25, %c0_26] : memref<32x256xf32, #tpu.memory_space<vmem>>, vector<32x256xf32>
    tpu.vector_store %arg9[%c0_25, %c0_26], %45 {strides = array<i32>} : memref<32x256xf32, #tpu.memory_space<vmem>>, vector<32x256xf32>,
    return
  }
  func.func @transform_0(%arg0: i32) -> (i32, i32) {
    %c0_i32 = arith.constant 0 : i32
    %c0_i32_0 = arith.constant 0 : i32
    return %c0_i32, %arg0 : i32, i32
  }
  func.func @transform_1(%arg0: i32) -> (i32, i32) {
    %c0_i32 = arith.constant 0 : i32
    %c0_i32_0 = arith.constant 0 : i32
    return %c0_i32, %arg0 : i32, i32
  }
  func.func @transform_2(%arg0: i32) -> (i32, i32) {
    %c0_i32 = arith.constant 0 : i32
    %c0_i32_0 = arith.constant 0 : i32
    %c0_i32_1 = arith.constant 0 : i32
    return %c0_i32, %c0_i32_0 : i32, i32
  }
  func.func @transform_3(%arg0: i32) -> (i32, i32) {
    %c0_i32 = arith.constant 0 : i32
    %c0_i32_0 = arith.constant 0 : i32
    %c0_i32_1 = arith.constant 0 : i32
    return %c0_i32, %c0_i32_0 : i32, i32
  }
  func.func @transform_4(%arg0: i32) -> (i32, i32) {
    %c0_i32 = arith.constant 0 : i32
    %c0_i32_0 = arith.constant 0 : i32
    %c0_i32_1 = arith.constant 0 : i32
    return %c0_i32, %c0_i32_0 : i32, i32
  }
  func.func @transform_5(%arg0: i32) -> (i32, i32) {
    %c0_i32 = arith.constant 0 : i32
    %c0_i32_0 = arith.constant 0 : i32
    %c0_i32_1 = arith.constant 0 : i32
    return %c0_i32, %c0_i32_0 : i32, i32
  }
  func.func @transform_6(%arg0: i32) -> (i32, i32) {
    %c0_i32 = arith.constant 0 : i32
    %c0_i32_0 = arith.constant 0 : i32
    %c0_i32_1 = arith.constant 0 : i32
    return %c0_i32, %c0_i32_0 : i32, i32
  }
  func.func @transform_7(%arg0: i32) -> (i32, i32) {
    %c0_i32 = arith.constant 0 : i32
    %c0_i32_0 = arith.constant 0 : i32
    %c0_i32_1 = arith.constant 0 : i32
    return %c0_i32, %c0_i32_0 : i32, i32
  }
  func.func @transform_8(%arg0: i32) -> (i32, i32) {
    %c0_i32 = arith.constant 0 : i32
    %c0_i32_0 = arith.constant 0 : i32
    return %c0_i32, %arg0 : i32, i32
  }
}

module attributes {stable_mosaic.version = 11 : i64} {
  func.func @kernel(%arg0: i32, %arg1: memref<288x256xbf16, #tpu.memory_space<vmem>>, %arg2: memref<32x256xf32, #tpu.memory_space<vmem>>, %arg3: memref<256x288xbf16, #tpu.memory_space<vmem>>, %arg4: memref<256x1xf32, #tpu.memory_space<vmem>>, %arg5: memref<512x256xbf16, #tpu.memory_space<vmem>>, %arg6: memref<512x1xf32, #tpu.memory_space<vmem>>, %arg7: memref<32x512xbf16, #tpu.memory_space<vmem>>, %arg8: memref<32x1xf32, #tpu.memory_space<vmem>>, %arg9: memref<32x256xf32, #tpu.memory_space<vmem>>) attributes {dimension_semantics = [#tpu.dimension_semantics<parallel>], iteration_bounds = array<i64: 1>, scalar_prefetch = 0 : i64, scratch_operands = 0 : i64, tpu.core_type = #tpu.core_type<tc>, window_params = [{transform_indices = @transform_0, window_bounds = array<i64: 288, 256>}, {transform_indices = @transform_1, window_bounds = array<i64: 32, 256>}, {pipeline_mode = #tpu.pipeline_mode<synchronous>, transform_indices = @transform_2, window_bounds = array<i64: 256, 288>}, {pipeline_mode = #tpu.pipeline_mode<synchronous>, transform_indices = @transform_3, window_bounds = array<i64: 256, 1>}, {pipeline_mode = #tpu.pipeline_mode<synchronous>, transform_indices = @transform_4, window_bounds = array<i64: 512, 256>}, {pipeline_mode = #tpu.pipeline_mode<synchronous>, transform_indices = @transform_5, window_bounds = array<i64: 512, 1>}, {pipeline_mode = #tpu.pipeline_mode<synchronous>, transform_indices = @transform_6, window_bounds = array<i64: 32, 512>}, {pipeline_mode = #tpu.pipeline_mode<synchronous>, transform_indices = @transform_7, window_bounds = array<i64: 32, 1>}, {transform_indices = @transform_8, window_bounds = array<i64: 32, 256>}]} {
    %c0 = arith.constant 0 : index
    %c0_0 = arith.constant 0 : index
    %0 = vector.load %arg3[%c0, %c0_0] : memref<256x288xbf16, #tpu.memory_space<vmem>>, vector<256x288xbf16>
    %c0_1 = arith.constant 0 : index
    %c0_2 = arith.constant 0 : index
    %1 = vector.load %arg1[%c0_1, %c0_2] : memref<288x256xbf16, #tpu.memory_space<vmem>>, vector<288x256xbf16>
    %cst = arith.constant dense<0.000000e+00> : vector<256x256xf32>
    %2 = tpu.matmul %0, %1, %cst {dimension_numbers = #tpu.dot_dimension_numbers<[1], [0], [0], [1], [0, 0, 1, 1], [], []>} : vector<256x288xbf16>, vector<288x256xbf16>, vector<256x256xf32> -> vector<256x256xf32>
    %c0_3 = arith.constant 0 : index
    %c0_4 = arith.constant 0 : index
    %3 = vector.load %arg4[%c0_3, %c0_4] : memref<256x1xf32, #tpu.memory_space<vmem>>, vector<256x1xf32>
    %4 = vector.broadcast %3 : vector<256x1xf32> to vector<256x256xf32>
    %5 = arith.addf %2, %4 : vector<256x256xf32>
    %c0_5 = arith.constant 0 : index
    %c0_6 = arith.constant 0 : index
    %6 = vector.load %arg5[%c0_5, %c0_6] : memref<512x256xbf16, #tpu.memory_space<vmem>>, vector<512x256xbf16>
    %7 = arith.truncf %5 : vector<256x256xf32> to vector<256x256xbf16>
    %cst_7 = arith.constant dense<0.000000e+00> : vector<512x256xf32>
    %8 = tpu.matmul %6, %7, %cst_7 {dimension_numbers = #tpu.dot_dimension_numbers<[1], [0], [0], [1], [0, 0, 1, 1], [], []>} : vector<512x256xbf16>, vector<256x256xbf16>, vector<512x256xf32> -> vector<512x256xf32>
    %c0_8 = arith.constant 0 : index
    %c0_9 = arith.constant 0 : index
    %9 = vector.load %arg6[%c0_8, %c0_9] : memref<512x1xf32, #tpu.memory_space<vmem>>, vector<512x1xf32>
    %10 = vector.broadcast %9 : vector<512x1xf32> to vector<512x256xf32>
    %11 = arith.addf %8, %10 : vector<512x256xf32>
    %12 = arith.truncf %11 : vector<512x256xf32> to vector<512x256xbf16>
    %cst_10 = arith.constant 5.000000e-01 : bf16
    %13 = vector.broadcast %cst_10 : bf16 to vector<512x256xbf16>
    %14 = arith.mulf %13, %12 : vector<512x256xbf16>
    %cst_11 = arith.constant 4.467770e-02 : bf16
    %15 = vector.broadcast %cst_11 : bf16 to vector<512x256xbf16>
    %16 = arith.mulf %15, %12 : vector<512x256xbf16>
    %17 = arith.mulf %16, %12 : vector<512x256xbf16>
    %18 = arith.mulf %17, %12 : vector<512x256xbf16>
    %19 = arith.addf %12, %18 : vector<512x256xbf16>
    %cst_12 = arith.constant 7.968750e-01 : bf16
    %20 = vector.broadcast %cst_12 : bf16 to vector<512x256xbf16>
    %21 = arith.mulf %20, %19 : vector<512x256xbf16>
    %22 = math.tanh %21 : vector<512x256xbf16>
    %cst_13 = arith.constant 1.000000e+00 : bf16
    %23 = vector.broadcast %cst_13 : bf16 to vector<512x256xbf16>
    %24 = arith.addf %23, %22 : vector<512x256xbf16>
    %25 = arith.mulf %14, %24 : vector<512x256xbf16>
    %c0_14 = arith.constant 0 : index
    %c0_15 = arith.constant 0 : index
    %26 = vector.load %arg7[%c0_14, %c0_15] : memref<32x512xbf16, #tpu.memory_space<vmem>>, vector<32x512xbf16>
    %cst_16 = arith.constant dense<0.000000e+00> : vector<32x256xf32>
    %27 = tpu.matmul %26, %25, %cst_16 {dimension_numbers = #tpu.dot_dimension_numbers<[1], [0], [0], [1], [0, 0, 1, 1], [], []>} : vector<32x512xbf16>, vector<512x256xbf16>, vector<32x256xf32> -> vector<32x256xf32>
    %c0_17 = arith.constant 0 : index
    %c0_18 = arith.constant 0 : index
    %28 = vector.load %arg8[%c0_17, %c0_18] : memref<32x1xf32, #tpu.memory_space<vmem>>, vector<32x1xf32>
    %29 = vector.broadcast %28 : vector<32x1xf32> to vector<32x256xf32>
    %30 = arith.addf %27, %29 : vector<32x256xf32>
    %cst_19 = arith.constant 5.000000e-01 : f32
    %31 = vector.broadcast %cst_19 : f32 to vector<32x256xf32>
    %32 = arith.mulf %31, %30 : vector<32x256xf32>
    %cst_20 = arith.constant 4.471500e-02 : f32
    %33 = vector.broadcast %cst_20 : f32 to vector<32x256xf32>
    %34 = arith.mulf %33, %30 : vector<32x256xf32>
    %35 = arith.mulf %34, %30 : vector<32x256xf32>
    %36 = arith.mulf %35, %30 : vector<32x256xf32>
    %37 = arith.addf %30, %36 : vector<32x256xf32>
    %cst_21 = arith.constant 0.797884583 : f32
    %38 = vector.broadcast %cst_21 : f32 to vector<32x256xf32>
    %39 = arith.mulf %38, %37 : vector<32x256xf32>
    %40 = math.tanh %39 : vector<32x256xf32>
    %cst_22 = arith.constant 1.000000e+00 : f32
    %41 = vector.broadcast %cst_22 : f32 to vector<32x256xf32>
    %42 = arith.addf %41, %40 : vector<32x256xf32>
    %43 = arith.mulf %32, %42 : vector<32x256xf32>
    %c0_23 = arith.constant 0 : index
    %c0_24 = arith.constant 0 : index
    %44 = vector.load %arg2[%c0_23, %c0_24] : memref<32x256xf32, #tpu.memory_space<vmem>>, vector<32x256xf32>
    %45 = arith.addf %44, %43 : vector<32x256xf32>
    %c0_25 = arith.constant 0 : index
    %c0_26 = arith.constant 0 : index
    %46 = vector.load %arg9[%c0_25, %c0_26] : memref<32x256xf32, #tpu.memory_space<vmem>>, vector<32x256xf32>
    tpu.vector_store %arg9[%c0_25, %c0_26], %45 {strides = array<i32>} : memref<32x256xf32, #tpu.memory_space<vmem>>, vector<32x256xf32>,
    return
  }
  func.func @transform_0(%arg0: i32) -> (i32, i32) {
    %c0_i32 = arith.constant 0 : i32
    %c0_i32_0 = arith.constant 0 : i32
    return %c0_i32, %arg0 : i32, i32
  }
  func.func @transform_1(%arg0: i32) -> (i32, i32) {
    %c0_i32 = arith.constant 0 : i32
    %c0_i32_0 = arith.constant 0 : i32
    return %c0_i32, %arg0 : i32, i32
  }
  func.func @transform_2(%arg0: i32) -> (i32, i32) {
    %c0_i32 = arith.constant 0 : i32
    %c0_i32_0 = arith.constant 0 : i32
    %c0_i32_1 = arith.constant 0 : i32
    return %c0_i32, %c0_i32_0 : i32, i32
  }
  func.func @transform_3(%arg0: i32) -> (i32, i32) {
    %c0_i32 = arith.constant 0 : i32
    %c0_i32_0 = arith.constant 0 : i32
    %c0_i32_1 = arith.constant 0 : i32
    return %c0_i32, %c0_i32_0 : i32, i32
  }
  func.func @transform_4(%arg0: i32) -> (i32, i32) {
    %c0_i32 = arith.constant 0 : i32
    %c0_i32_0 = arith.constant 0 : i32
    %c0_i32_1 = arith.constant 0 : i32
    return %c0_i32, %c0_i32_0 : i32, i32
  }
  func.func @transform_5(%arg0: i32) -> (i32, i32) {
    %c0_i32 = arith.constant 0 : i32
    %c0_i32_0 = arith.constant 0 : i32
    %c0_i32_1 = arith.constant 0 : i32
    return %c0_i32, %c0_i32_0 : i32, i32
  }
  func.func @transform_6(%arg0: i32) -> (i32, i32) {
    %c0_i32 = arith.constant 0 : i32
    %c0_i32_0 = arith.constant 0 : i32
    %c0_i32_1 = arith.constant 0 : i32
    return %c0_i32, %c0_i32_0 : i32, i32
  }
  func.func @transform_7(%arg0: i32) -> (i32, i32) {
    %c0_i32 = arith.constant 0 : i32
    %c0_i32_0 = arith.constant 0 : i32
    %c0_i32_1 = arith.constant 0 : i32
    return %c0_i32, %c0_i32_0 : i32, i32
  }
  func.func @transform_8(%arg0: i32) -> (i32, i32) {
    %c0_i32 = arith.constant 0 : i32
    %c0_i32_0 = arith.constant 0 : i32
    return %c0_i32, %arg0 : i32, i32
  }
}

</mosaic_0001>

<llo_original>
// kernel: tpu_custom_call.1
$region0: #{tpu_custom_call.1}
  #allocation0 [shape = 'u32[]', space=smem, size = 0x4, offset = 0x4, fixed_abs, tag = 'smem constant byte address 0x4 - core index']
  #allocation1 [shape = 'u32[144,128]{1,0:T(1,128)}', space=vmem, size = 0x12000, scoped, tag = 'internal scratch']
  %s0 = inlined_call_operand.vmem [shape: bf16[288,256], index: 0, kind: input, shape index: {}]
  %s1 = inlined_call_operand.vmem [shape: f32[32,256], index: 1, kind: input, shape index: {}]
  %s2 = inlined_call_operand.vmem [shape: bf16[256,288], index: 2, kind: input, shape index: {}]
  %s3 = inlined_call_operand.vmem [shape: f32[256,1], index: 3, kind: input, shape index: {}]
  %s4 = inlined_call_operand.vmem [shape: bf16[512,256], index: 4, kind: input, shape index: {}]
  %s5 = inlined_call_operand.vmem [shape: f32[512,1], index: 5, kind: input, shape index: {}]
  %s6 = inlined_call_operand.vmem [shape: bf16[32,512], index: 6, kind: input, shape index: {}]
  %s7 = inlined_call_operand.vmem [shape: f32[32,1], index: 7, kind: input, shape index: {}]
  %s8 = inlined_call_operand.hbm [shape: f32[32,256], index: 8, kind: output, shape index: {}]
  %s9 = sld [smem:[#allocation0]]
  $region42: #{tpu_custom_call.1} parent=0
    _
  %s11 = ssub.s32 1, %s9
  %s12 = scalar_select 0, %s11, %s9
  $region1: #{tpu_custom_call.1} parent=0
    #allocation2 [shape = 'u8[32768]{0}', space=vmem, size = 0x8000, scoped, tag = 'output window, operand 0, single buffered']
    #allocation3 [shape = 's32[1]{0}', space=sflag, size = 0x4, scoped, tag = 'scoped memory for tpu_custom_call.1']
    %13 = vsyncpa [#allocation3], 0
    // Predicated region
    $region2: #{tpu_custom_call.1} parent=1 // pred_check
      _
    $region3: #{tpu_custom_call.1} parent=1 // pred_check_branch
      %15 = sbr.rel (0) target = $region5
    $region4: #{tpu_custom_call.1} parent=1 // pred_region
      _
    $region5: #{tpu_custom_call.1} parent=1 // pred_fallthru
      _
    // Predicated region
    $region6: #{tpu_custom_call.1} parent=1 // pred_check
      _
    $region7: #{tpu_custom_call.1} parent=1 // pred_check_branch
      %17 = sbr.rel (0) target = $region9
    $region8: #{tpu_custom_call.1} parent=1 // pred_region
      _
    $region9: #{tpu_custom_call.1} parent=1 // pred_fallthru
      _
    // Predicated region
    $region10: #{tpu_custom_call.1} parent=1 // pred_check
      _
    $region11: #{tpu_custom_call.1} parent=1 // pred_check_branch
      %19 = sbr.rel (0) target = $region13
    $region12: #{tpu_custom_call.1} parent=1 // pred_region
      _
    $region13: #{tpu_custom_call.1} parent=1 // pred_fallthru
      _
    // Predicated region
    $region14: #{tpu_custom_call.1} parent=1 // pred_check
      _
    $region15: #{tpu_custom_call.1} parent=1 // pred_check_branch
      %21 = sbr.rel (0) target = $region17
    $region16: #{tpu_custom_call.1} parent=1 // pred_region
      _
    $region17: #{tpu_custom_call.1} parent=1 // pred_fallthru
      _
    // Predicated region
    $region18: #{tpu_custom_call.1} parent=1 // pred_check
      _
    $region19: #{tpu_custom_call.1} parent=1 // pred_check_branch
      %23 = sbr.rel (0) target = $region21
    $region20: #{tpu_custom_call.1} parent=1 // pred_region
      _
    $region21: #{tpu_custom_call.1} parent=1 // pred_fallthru
      _
    // Predicated region
    $region22: #{tpu_custom_call.1} parent=1 // pred_check
      _
    $region23: #{tpu_custom_call.1} parent=1 // pred_check_branch
      %25 = sbr.rel (0) target = $region25
    $region24: #{tpu_custom_call.1} parent=1 // pred_region
      _
    $region25: #{tpu_custom_call.1} parent=1 // pred_fallthru
      _
    // Predicated region
    $region26: #{tpu_custom_call.1} parent=1 // pred_check
      _
    $region27: #{tpu_custom_call.1} parent=1 // pred_check_branch
      %27 = sbr.rel (0) target = $region29
    $region28: #{tpu_custom_call.1} parent=1 // pred_region
      _
    $region29: #{tpu_custom_call.1} parent=1 // pred_fallthru
      _
    // Predicated region
    $region30: #{tpu_custom_call.1} parent=1 // pred_check
      _
    $region31: #{tpu_custom_call.1} parent=1 // pred_check_branch
      %29 = sbr.rel (0) target = $region33
    $region32: #{tpu_custom_call.1} parent=1 // pred_region
      _
    $region33: #{tpu_custom_call.1} parent=1 // pred_fallthru
      _
    %v35 = vld [vmem:[%s2] sm:$0xff]
    %v36 = vld [vmem:[%s2 + $0x8] sm:$0xf]
    %v37 = vld [vmem:[%s2 + $0xc] sm:$0xff]
    %v38 = vld [vmem:[%s2 + $0x14] sm:$0xf]
    %v39 = vld [vmem:[%s2 + $0x18] sm:$0xff]
    %v40 = vld [vmem:[%s2 + $0x20] sm:$0xf]
    %v41 = vld [vmem:[%s2 + $0x24] sm:$0xff]
    %v42 = vld [vmem:[%s2 + $0x2c] sm:$0xf]
    %v43 = vld [vmem:[%s2 + $0x30] sm:$0xff]
    %v44 = vld [vmem:[%s2 + $0x38] sm:$0xf]
    %v45 = vld [vmem:[%s2 + $0x3c] sm:$0xff]
    %v46 = vld [vmem:[%s2 + $0x44] sm:$0xf]
    %v47 = vld [vmem:[%s2 + $0x48] sm:$0xff]
    %v48 = vld [vmem:[%s2 + $0x50] sm:$0xf]
    %v49 = vld [vmem:[%s2 + $0x54] sm:$0xff]
    %v50 = vld [vmem:[%s2 + $0x5c] sm:$0xf]
    %v51 = vld [vmem:[%s2 + $0x60] sm:$0xff]
    %v52 = vld [vmem:[%s2 + $0x68] sm:$0xf]
    %v53 = vld [vmem:[%s2 + $0x6c] sm:$0xff]
    %v54 = vld [vmem:[%s2 + $0x74] sm:$0xf]
    %v55 = vld [vmem:[%s2 + $0x78] sm:$0xff]
    %v56 = vld [vmem:[%s2 + $0x80] sm:$0xf]
    %v57 = vld [vmem:[%s2 + $0x84] sm:$0xff]
    %v58 = vld [vmem:[%s2 + $0x8c] sm:$0xf]
    %v59 = vld [vmem:[%s2 + $0x90] sm:$0xff]
    %v60 = vld [vmem:[%s2 + $0x98] sm:$0xf]
    %v61 = vld [vmem:[%s2 + $0x9c] sm:$0xff]
    %v62 = vld [vmem:[%s2 + $0xa4] sm:$0xf]
    %v63 = vld [vmem:[%s2 + $0xa8] sm:$0xff]
    %v64 = vld [vmem:[%s2 + $0xb0] sm:$0xf]
    %v65 = vld [vmem:[%s2 + $0xb4] sm:$0xff]
    %v66 = vld [vmem:[%s2 + $0xbc] sm:$0xf]
    %v67 = vld [vmem:[%s2 + $0xc0] sm:$0xff]
    %v68 = vld [vmem:[%s2 + $0xc8] sm:$0xf]
    %v69 = vld [vmem:[%s2 + $0xcc] sm:$0xff]
    %v70 = vld [vmem:[%s2 + $0xd4] sm:$0xf]
    %v71 = vld [vmem:[%s2 + $0xd8] sm:$0xff]
    %v72 = vld [vmem:[%s2 + $0xe0] sm:$0xf]
    %v73 = vld [vmem:[%s2 + $0xe4] sm:$0xff]
    %v74 = vld [vmem:[%s2 + $0xec] sm:$0xf]
    %v75 = vld [vmem:[%s2 + $0xf0] sm:$0xff]
    %v76 = vld [vmem:[%s2 + $0xf8] sm:$0xf]
    %v77 = vld [vmem:[%s2 + $0xfc] sm:$0xff]
    %v78 = vld [vmem:[%s2 + $0x104] sm:$0xf]
    %v79 = vld [vmem:[%s2 + $0x108] sm:$0xff]
    %v80 = vld [vmem:[%s2 + $0x110] sm:$0xf]
    %v81 = vld [vmem:[%s2 + $0x114] sm:$0xff]
    %v82 = vld [vmem:[%s2 + $0x11c] sm:$0xf]
    %v83 = vld [vmem:[%s2 + $0x120] sm:$0xff]
    %v84 = vld [vmem:[%s2 + $0x128] sm:$0xf]
    %v85 = vld [vmem:[%s2 + $0x12c] sm:$0xff]
    %v86 = vld [vmem:[%s2 + $0x134] sm:$0xf]
    %v87 = vld [vmem:[%s2 + $0x138] sm:$0xff]
    %v88 = vld [vmem:[%s2 + $0x140] sm:$0xf]
    %v89 = vld [vmem:[%s2 + $0x144] sm:$0xff]
    %v90 = vld [vmem:[%s2 + $0x14c] sm:$0xf]
    %v91 = vld [vmem:[%s2 + $0x150] sm:$0xff]
    %v92 = vld [vmem:[%s2 + $0x158] sm:$0xf]
    %v93 = vld [vmem:[%s2 + $0x15c] sm:$0xff]
    %v94 = vld [vmem:[%s2 + $0x164] sm:$0xf]
    %v95 = vld [vmem:[%s2 + $0x168] sm:$0xff]
    %v96 = vld [vmem:[%s2 + $0x170] sm:$0xf]
    %v97 = vld [vmem:[%s2 + $0x174] sm:$0xff]
    %v98 = vld [vmem:[%s2 + $0x17c] sm:$0xf]
    %v99 = vld [vmem:[%s0] sm:$0xff]
    %v100 = vld [vmem:[%s0 + $0x8] sm:$0xff]
    %v101 = vld [vmem:[%s0 + $0x10] sm:$0xff]
    %v102 = vld [vmem:[%s0 + $0x18] sm:$0xff]
    %v103 = vld [vmem:[%s0 + $0x20] sm:$0xff]
    %v104 = vld [vmem:[%s0 + $0x28] sm:$0xff]
    %v105 = vld [vmem:[%s0 + $0x30] sm:$0xff]
    %v106 = vld [vmem:[%s0 + $0x38] sm:$0xff]
    %v107 = vld [vmem:[%s0 + $0x40] sm:$0xff]
    %v108 = vld [vmem:[%s0 + $0x48] sm:$0xff]
    %v109 = vld [vmem:[%s0 + $0x50] sm:$0xff]
    %v110 = vld [vmem:[%s0 + $0x58] sm:$0xff]
    %v111 = vld [vmem:[%s0 + $0x60] sm:$0xff]
    %v112 = vld [vmem:[%s0 + $0x68] sm:$0xff]
    %v113 = vld [vmem:[%s0 + $0x70] sm:$0xff]
    %v114 = vld [vmem:[%s0 + $0x78] sm:$0xff]
    %v115 = vld [vmem:[%s0 + $0x80] sm:$0xff]
    %v116 = vld [vmem:[%s0 + $0x88] sm:$0xff]
    %v117 = vld [vmem:[%s0 + $0x90] sm:$0xff]
    %v118 = vld [vmem:[%s0 + $0x98] sm:$0xff]
    %v119 = vld [vmem:[%s0 + $0xa0] sm:$0xff]
    %v120 = vld [vmem:[%s0 + $0xa8] sm:$0xff]
    %v121 = vld [vmem:[%s0 + $0xb0] sm:$0xff]
    %v122 = vld [vmem:[%s0 + $0xb8] sm:$0xff]
    %v123 = vld [vmem:[%s0 + $0xc0] sm:$0xff]
    %v124 = vld [vmem:[%s0 + $0xc8] sm:$0xff]
    %v125 = vld [vmem:[%s0 + $0xd0] sm:$0xff]
    %v126 = vld [vmem:[%s0 + $0xd8] sm:$0xff]
    %v127 = vld [vmem:[%s0 + $0xe0] sm:$0xff]
    %v128 = vld [vmem:[%s0 + $0xe8] sm:$0xff]
    %v129 = vld [vmem:[%s0 + $0xf0] sm:$0xff]
    %v130 = vld [vmem:[%s0 + $0xf8] sm:$0xff]
    %v131 = vld [vmem:[%s0 + $0x100] sm:$0xff]
    %v132 = vld [vmem:[%s0 + $0x108] sm:$0xff]
    %v133 = vld [vmem:[%s0 + $0x110] sm:$0xff]
    %v134 = vld [vmem:[%s0 + $0x118] sm:$0xff]
    %v135 = vld [vmem:[%s3] sm:$0xff]
    %v136 = vld [vmem:[%s3 + $0x8] sm:$0xff]
    %v137 = vld [vmem:[%s3 + $0x10] sm:$0xff]
    %v138 = vld [vmem:[%s3 + $0x18] sm:$0xff]
    %v139 = vld [vmem:[%s3 + $0x20] sm:$0xff]
    %v140 = vld [vmem:[%s3 + $0x28] sm:$0xff]
    %v141 = vld [vmem:[%s3 + $0x30] sm:$0xff]
    %v142 = vld [vmem:[%s3 + $0x38] sm:$0xff]
    %v143 = vld [vmem:[%s3 + $0x40] sm:$0xff]
    %v144 = vld [vmem:[%s3 + $0x48] sm:$0xff]
    %v145 = vld [vmem:[%s3 + $0x50] sm:$0xff]
    %v146 = vld [vmem:[%s3 + $0x58] sm:$0xff]
    %v147 = vld [vmem:[%s3 + $0x60] sm:$0xff]
    %v148 = vld [vmem:[%s3 + $0x68] sm:$0xff]
    %v149 = vld [vmem:[%s3 + $0x70] sm:$0xff]
    %v150 = vld [vmem:[%s3 + $0x78] sm:$0xff]
    %v151 = vld [vmem:[%s3 + $0x80] sm:$0xff]
    %v152 = vld [vmem:[%s3 + $0x88] sm:$0xff]
    %v153 = vld [vmem:[%s3 + $0x90] sm:$0xff]
    %v154 = vld [vmem:[%s3 + $0x98] sm:$0xff]
    %v155 = vld [vmem:[%s3 + $0xa0] sm:$0xff]
    %v156 = vld [vmem:[%s3 + $0xa8] sm:$0xff]
    %v157 = vld [vmem:[%s3 + $0xb0] sm:$0xff]
    %v158 = vld [vmem:[%s3 + $0xb8] sm:$0xff]
    %v159 = vld [vmem:[%s3 + $0xc0] sm:$0xff]
    %v160 = vld [vmem:[%s3 + $0xc8] sm:$0xff]
    %v161 = vld [vmem:[%s3 + $0xd0] sm:$0xff]
    %v162 = vld [vmem:[%s3 + $0xd8] sm:$0xff]
    %v163 = vld [vmem:[%s3 + $0xe0] sm:$0xff]
    %v164 = vld [vmem:[%s3 + $0xe8] sm:$0xff]
    %v165 = vld [vmem:[%s3 + $0xf0] sm:$0xff]
    %v166 = vld [vmem:[%s3 + $0xf8] sm:$0xff]
    %168 = vset.pattern.permute.xlu0 0
    %169 = vperm.xlu0 %168, %v135
    %v170 = vpop.permute.xlu0 %169
    %173 = vset.pattern.permute.xlu0 0
    %174 = vperm.xlu0 %173, %v136
    %v175 = vpop.permute.xlu0 %174
    %178 = vset.pattern.permute.xlu0 0
    %179 = vperm.xlu0 %178, %v137
    %v180 = vpop.permute.xlu0 %179
    %183 = vset.pattern.permute.xlu0 0
    %184 = vperm.xlu0 %183, %v138
    %v185 = vpop.permute.xlu0 %184
    %188 = vset.pattern.permute.xlu0 0
    %189 = vperm.xlu0 %188, %v139
    %v190 = vpop.permute.xlu0 %189
    %193 = vset.pattern.permute.xlu0 0
    %194 = vperm.xlu0 %193, %v140
    %v195 = vpop.permute.xlu0 %194
    %198 = vset.pattern.permute.xlu0 0
    %199 = vperm.xlu0 %198, %v141
    %v200 = vpop.permute.xlu0 %199
    %203 = vset.pattern.permute.xlu0 0
    %204 = vperm.xlu0 %203, %v142
    %v205 = vpop.permute.xlu0 %204
    %208 = vset.pattern.permute.xlu0 0
    %209 = vperm.xlu0 %208, %v143
    %v210 = vpop.permute.xlu0 %209
    %213 = vset.pattern.permute.xlu0 0
    %214 = vperm.xlu0 %213, %v144
    %v215 = vpop.permute.xlu0 %214
    %218 = vset.pattern.permute.xlu0 0
    %219 = vperm.xlu0 %218, %v145
    %v220 = vpop.permute.xlu0 %219
    %223 = vset.pattern.permute.xlu0 0
    %224 = vperm.xlu0 %223, %v146
    %v225 = vpop.permute.xlu0 %224
    %228 = vset.pattern.permute.xlu0 0
    %229 = vperm.xlu0 %228, %v147
    %v230 = vpop.permute.xlu0 %229
    %233 = vset.pattern.permute.xlu0 0
    %234 = vperm.xlu0 %233, %v148
    %v235 = vpop.permute.xlu0 %234
    %238 = vset.pattern.permute.xlu0 0
    %239 = vperm.xlu0 %238, %v149
    %v240 = vpop.permute.xlu0 %239
    %243 = vset.pattern.permute.xlu0 0
    %244 = vperm.xlu0 %243, %v150
    %v245 = vpop.permute.xlu0 %244
    %248 = vset.pattern.permute.xlu0 0
    %249 = vperm.xlu0 %248, %v151
    %v250 = vpop.permute.xlu0 %249
    %253 = vset.pattern.permute.xlu0 0
    %254 = vperm.xlu0 %253, %v152
    %v255 = vpop.permute.xlu0 %254
    %258 = vset.pattern.permute.xlu0 0
    %259 = vperm.xlu0 %258, %v153
    %v260 = vpop.permute.xlu0 %259
    %263 = vset.pattern.permute.xlu0 0
    %264 = vperm.xlu0 %263, %v154
    %v265 = vpop.permute.xlu0 %264
    %268 = vset.pattern.permute.xlu0 0
    %269 = vperm.xlu0 %268, %v155
    %v270 = vpop.permute.xlu0 %269
    %273 = vset.pattern.permute.xlu0 0
    %274 = vperm.xlu0 %273, %v156
    %v275 = vpop.permute.xlu0 %274
    %278 = vset.pattern.permute.xlu0 0
    %279 = vperm.xlu0 %278, %v157
    %v280 = vpop.permute.xlu0 %279
    %283 = vset.pattern.permute.xlu0 0
    %284 = vperm.xlu0 %283, %v158
    %v285 = vpop.permute.xlu0 %284
    %288 = vset.pattern.permute.xlu0 0
    %289 = vperm.xlu0 %288, %v159
    %v290 = vpop.permute.xlu0 %289
    %293 = vset.pattern.permute.xlu0 0
    %294 = vperm.xlu0 %293, %v160
    %v295 = vpop.permute.xlu0 %294
    %298 = vset.pattern.permute.xlu0 0
    %299 = vperm.xlu0 %298, %v161
    %v300 = vpop.permute.xlu0 %299
    %303 = vset.pattern.permute.xlu0 0
    %304 = vperm.xlu0 %303, %v162
    %v305 = vpop.permute.xlu0 %304
    %308 = vset.pattern.permute.xlu0 0
    %309 = vperm.xlu0 %308, %v163
    %v310 = vpop.permute.xlu0 %309
    %313 = vset.pattern.permute.xlu0 0
    %314 = vperm.xlu0 %313, %v164
    %v315 = vpop.permute.xlu0 %314
    %318 = vset.pattern.permute.xlu0 0
    %319 = vperm.xlu0 %318, %v165
    %v320 = vpop.permute.xlu0 %319
    %323 = vset.pattern.permute.xlu0 0
    %324 = vperm.xlu0 %323, %v166
    %v325 = vpop.permute.xlu0 %324
    %v391 = vunpack.c.l.b16 %v35
    %v392 = vunpack.c.h.b16 %v35
    %v393 = vunpack.c.l.b16 %v36
    %v394 = vunpack.c.l.b16 %v37
    %v395 = vunpack.c.h.b16 %v37
    %v396 = vunpack.c.l.b16 %v38
    %v397 = vunpack.c.l.b16 %v39
    %v398 = vunpack.c.h.b16 %v39
    %v399 = vunpack.c.l.b16 %v40
    %v400 = vunpack.c.l.b16 %v41
    %v401 = vunpack.c.h.b16 %v41
    %v402 = vunpack.c.l.b16 %v42
    %v403 = vunpack.c.l.b16 %v43
    %v404 = vunpack.c.h.b16 %v43
    %v405 = vunpack.c.l.b16 %v44
    %v406 = vunpack.c.l.b16 %v45
    %v407 = vunpack.c.h.b16 %v45
    %v408 = vunpack.c.l.b16 %v46
    %v409 = vunpack.c.l.b16 %v47
    %v410 = vunpack.c.h.b16 %v47
    %v411 = vunpack.c.l.b16 %v48
    %v412 = vunpack.c.l.b16 %v49
    %v413 = vunpack.c.h.b16 %v49
    %v414 = vunpack.c.l.b16 %v50
    %v415 = vunpack.c.l.b16 %v51
    %v416 = vunpack.c.h.b16 %v51
    %v417 = vunpack.c.l.b16 %v52
    %v418 = vunpack.c.l.b16 %v53
    %v419 = vunpack.c.h.b16 %v53
    %v420 = vunpack.c.l.b16 %v54
    %v421 = vunpack.c.l.b16 %v55
    %v422 = vunpack.c.h.b16 %v55
    %v423 = vunpack.c.l.b16 %v56
    %v424 = vunpack.c.l.b16 %v57
    %v425 = vunpack.c.h.b16 %v57
    %v426 = vunpack.c.l.b16 %v58
    %v427 = vunpack.c.l.b16 %v59
    %v428 = vunpack.c.h.b16 %v59
    %v429 = vunpack.c.l.b16 %v60
    %v430 = vunpack.c.l.b16 %v61
    %v431 = vunpack.c.h.b16 %v61
    %v432 = vunpack.c.l.b16 %v62
    %v433 = vunpack.c.l.b16 %v63
    %v434 = vunpack.c.h.b16 %v63
    %v435 = vunpack.c.l.b16 %v64
    %v436 = vunpack.c.l.b16 %v65
    %v437 = vunpack.c.h.b16 %v65
    %v438 = vunpack.c.l.b16 %v66
    %v439 = vunpack.c.l.b16 %v67
    %v440 = vunpack.c.h.b16 %v67
    %v441 = vunpack.c.l.b16 %v68
    %v442 = vunpack.c.l.b16 %v69
    %v443 = vunpack.c.h.b16 %v69
    %v444 = vunpack.c.l.b16 %v70
    %v445 = vunpack.c.l.b16 %v71
    %v446 = vunpack.c.h.b16 %v71
    %v447 = vunpack.c.l.b16 %v72
    %v448 = vunpack.c.l.b16 %v73
    %v449 = vunpack.c.h.b16 %v73
    %v450 = vunpack.c.l.b16 %v74
    %v451 = vunpack.c.l.b16 %v75
    %v452 = vunpack.c.h.b16 %v75
    %v453 = vunpack.c.l.b16 %v76
    %v454 = vunpack.c.l.b16 %v77
    %v455 = vunpack.c.h.b16 %v77
    %v456 = vunpack.c.l.b16 %v78
    %v457 = vunpack.c.l.b16 %v79
    %v458 = vunpack.c.h.b16 %v79
    %v459 = vunpack.c.l.b16 %v80
    %v460 = vunpack.c.l.b16 %v81
    %v461 = vunpack.c.h.b16 %v81
    %v462 = vunpack.c.l.b16 %v82
    %v463 = vunpack.c.l.b16 %v83
    %v464 = vunpack.c.h.b16 %v83
    %v465 = vunpack.c.l.b16 %v84
    %v466 = vunpack.c.l.b16 %v85
    %v467 = vunpack.c.h.b16 %v85
    %v468 = vunpack.c.l.b16 %v86
    %v469 = vunpack.c.l.b16 %v87
    %v470 = vunpack.c.h.b16 %v87
    %v471 = vunpack.c.l.b16 %v88
    %v472 = vunpack.c.l.b16 %v89
    %v473 = vunpack.c.h.b16 %v89
    %v474 = vunpack.c.l.b16 %v90
    %v475 = vunpack.c.l.b16 %v91
    %v476 = vunpack.c.h.b16 %v91
    %v477 = vunpack.c.l.b16 %v92
    %v478 = vunpack.c.l.b16 %v93
    %v479 = vunpack.c.h.b16 %v93
    %v480 = vunpack.c.l.b16 %v94
    %v481 = vunpack.c.l.b16 %v95
    %v482 = vunpack.c.h.b16 %v95
    %v483 = vunpack.c.l.b16 %v96
    %v484 = vunpack.c.l.b16 %v97
    %v485 = vunpack.c.h.b16 %v97
    %v486 = vunpack.c.l.b16 %v98
    %v487 = vpack.c.b16 %v394, %v391
    %v488 = vpack.c.b16 %v395, %v392
    %v489 = vpack.c.b16 %v396, %v393
    %v490 = vpack.c.b16 %v400, %v397
    %v491 = vpack.c.b16 %v401, %v398
    %v492 = vpack.c.b16 %v402, %v399
    %v493 = vpack.c.b16 %v406, %v403
    %v494 = vpack.c.b16 %v407, %v404
    %v495 = vpack.c.b16 %v408, %v405
    %v496 = vpack.c.b16 %v412, %v409
    %v497 = vpack.c.b16 %v413, %v410
    %v498 = vpack.c.b16 %v414, %v411
    %v499 = vpack.c.b16 %v418, %v415
    %v500 = vpack.c.b16 %v419, %v416
    %v501 = vpack.c.b16 %v420, %v417
    %v502 = vpack.c.b16 %v424, %v421
    %v503 = vpack.c.b16 %v425, %v422
    %v504 = vpack.c.b16 %v426, %v423
    %v505 = vpack.c.b16 %v430, %v427
    %v506 = vpack.c.b16 %v431, %v428
    %v507 = vpack.c.b16 %v432, %v429
    %v508 = vpack.c.b16 %v436, %v433
    %v509 = vpack.c.b16 %v437, %v434
    %v510 = vpack.c.b16 %v438, %v435
    %v511 = vpack.c.b16 %v442, %v439
    %v512 = vpack.c.b16 %v443, %v440
    %v513 = vpack.c.b16 %v444, %v441
    %v514 = vpack.c.b16 %v448, %v445
    %v515 = vpack.c.b16 %v449, %v446
    %v516 = vpack.c.b16 %v450, %v447
    %v517 = vpack.c.b16 %v454, %v451
    %v518 = vpack.c.b16 %v455, %v452
    %v519 = vpack.c.b16 %v456, %v453
    %v520 = vpack.c.b16 %v460, %v457
    %v521 = vpack.c.b16 %v461, %v458
    %v522 = vpack.c.b16 %v462, %v459
    %v523 = vpack.c.b16 %v466, %v463
    %v524 = vpack.c.b16 %v467, %v464
    %v525 = vpack.c.b16 %v468, %v465
    %v526 = vpack.c.b16 %v472, %v469
    %v527 = vpack.c.b16 %v473, %v470
    %v528 = vpack.c.b16 %v474, %v471
    %v529 = vpack.c.b16 %v478, %v475
    %v530 = vpack.c.b16 %v479, %v476
    %v531 = vpack.c.b16 %v480, %v477
    %v532 = vpack.c.b16 %v484, %v481
    %v533 = vpack.c.b16 %v485, %v482
    %v534 = vpack.c.b16 %v486, %v483
    %v603 = vunpack.c.l.b16 %v99
    %v604 = vunpack.c.h.b16 %v99
    %v605 = vunpack.c.l.b16 %v100
    %v606 = vunpack.c.h.b16 %v100
    %v607 = vunpack.c.l.b16 %v101
    %v608 = vunpack.c.h.b16 %v101
    %v609 = vunpack.c.l.b16 %v102
    %v610 = vunpack.c.h.b16 %v102
    %v611 = vunpack.c.l.b16 %v103
    %v612 = vunpack.c.h.b16 %v103
    %v613 = vunpack.c.l.b16 %v104
    %v614 = vunpack.c.h.b16 %v104
    %v615 = vunpack.c.l.b16 %v105
    %v616 = vunpack.c.h.b16 %v105
    %v617 = vunpack.c.l.b16 %v106
    %v618 = vunpack.c.h.b16 %v106
    %v619 = vunpack.c.l.b16 %v107
    %v620 = vunpack.c.h.b16 %v107
    %v621 = vunpack.c.l.b16 %v108
    %v622 = vunpack.c.h.b16 %v108
    %v623 = vunpack.c.l.b16 %v109
    %v624 = vunpack.c.h.b16 %v109
    %v625 = vunpack.c.l.b16 %v110
    %v626 = vunpack.c.h.b16 %v110
    %v627 = vunpack.c.l.b16 %v111
    %v628 = vunpack.c.h.b16 %v111
    %v629 = vunpack.c.l.b16 %v112
    %v630 = vunpack.c.h.b16 %v112
    %v631 = vunpack.c.l.b16 %v113
    %v632 = vunpack.c.h.b16 %v113
    %v633 = vunpack.c.l.b16 %v114
    %v634 = vunpack.c.h.b16 %v114
    %v635 = vunpack.c.l.b16 %v115
    %v636 = vunpack.c.h.b16 %v115
    %v637 = vunpack.c.l.b16 %v116
    %v638 = vunpack.c.h.b16 %v116
    %v639 = vunpack.c.l.b16 %v117
    %v640 = vunpack.c.h.b16 %v117
    %v641 = vunpack.c.l.b16 %v118
    %v642 = vunpack.c.h.b16 %v118
    %v643 = vunpack.c.l.b16 %v119
    %v644 = vunpack.c.h.b16 %v119
    %v645 = vunpack.c.l.b16 %v120
    %v646 = vunpack.c.h.b16 %v120
    %v647 = vunpack.c.l.b16 %v121
    %v648 = vunpack.c.h.b16 %v121
    %v649 = vunpack.c.l.b16 %v122
    %v650 = vunpack.c.h.b16 %v122
    %v651 = vunpack.c.l.b16 %v123
    %v652 = vunpack.c.h.b16 %v123
    %v653 = vunpack.c.l.b16 %v124
    %v654 = vunpack.c.h.b16 %v124
    %v655 = vunpack.c.l.b16 %v125
    %v656 = vunpack.c.h.b16 %v125
    %v657 = vunpack.c.l.b16 %v126
    %v658 = vunpack.c.h.b16 %v126
    %v659 = vunpack.c.l.b16 %v127
    %v660 = vunpack.c.h.b16 %v127
    %v661 = vunpack.c.l.b16 %v128
    %v662 = vunpack.c.h.b16 %v128
    %v663 = vunpack.c.l.b16 %v129
    %v664 = vunpack.c.h.b16 %v129
    %v665 = vunpack.c.l.b16 %v130
    %v666 = vunpack.c.h.b16 %v130
    %v667 = vunpack.c.l.b16 %v131
    %v668 = vunpack.c.h.b16 %v131
    %v669 = vunpack.c.l.b16 %v132
    %v670 = vunpack.c.h.b16 %v132
    %v671 = vunpack.c.l.b16 %v133
    %v672 = vunpack.c.h.b16 %v133
    %v673 = vunpack.c.l.b16 %v134
    %v674 = vunpack.c.h.b16 %v134
    %v675 = vpack.c.b16 %v605, %v603
    %v676 = vpack.c.b16 %v606, %v604
    %v677 = vpack.c.b16 %v609, %v607
    %v678 = vpack.c.b16 %v610, %v608
    %v679 = vpack.c.b16 %v613, %v611
    %v680 = vpack.c.b16 %v614, %v612
    %v681 = vpack.c.b16 %v617, %v615
    %v682 = vpack.c.b16 %v618, %v616
    %v683 = vpack.c.b16 %v621, %v619
    %v684 = vpack.c.b16 %v622, %v620
    %v685 = vpack.c.b16 %v625, %v623
    %v686 = vpack.c.b16 %v626, %v624
    %v687 = vpack.c.b16 %v629, %v627
    %v688 = vpack.c.b16 %v630, %v628
    %v689 = vpack.c.b16 %v633, %v631
    %v690 = vpack.c.b16 %v634, %v632
    %v691 = vpack.c.b16 %v637, %v635
    %v692 = vpack.c.b16 %v638, %v636
    %v693 = vpack.c.b16 %v641, %v639
    %v694 = vpack.c.b16 %v642, %v640
    %v695 = vpack.c.b16 %v645, %v643
    %v696 = vpack.c.b16 %v646, %v644
    %v697 = vpack.c.b16 %v649, %v647
    %v698 = vpack.c.b16 %v650, %v648
    %v699 = vpack.c.b16 %v653, %v651
    %v700 = vpack.c.b16 %v654, %v652
    %v701 = vpack.c.b16 %v657, %v655
    %v702 = vpack.c.b16 %v658, %v656
    %v703 = vpack.c.b16 %v661, %v659
    %v704 = vpack.c.b16 %v662, %v660
    %v705 = vpack.c.b16 %v665, %v663
    %v706 = vpack.c.b16 %v666, %v664
    %v707 = vpack.c.b16 %v669, %v667
    %v708 = vpack.c.b16 %v670, %v668
    %v709 = vpack.c.b16 %v673, %v671
    %v710 = vpack.c.b16 %v674, %v672
    %vm747 = vcmask 261120
    %v749 = vsel %vm747, %v489, 0
    %v752 = vsel %vm747, %v492, 0
    %v755 = vsel %vm747, %v495, 0
    %v758 = vsel %vm747, %v498, 0
    %v761 = vsel %vm747, %v501, 0
    %v764 = vsel %vm747, %v504, 0
    %v767 = vsel %vm747, %v507, 0
    %v770 = vsel %vm747, %v510, 0
    %v773 = vsel %vm747, %v513, 0
    %v776 = vsel %vm747, %v516, 0
    %v779 = vsel %vm747, %v519, 0
    %v782 = vsel %vm747, %v522, 0
    %v785 = vsel %vm747, %v525, 0
    %v788 = vsel %vm747, %v528, 0
    %v791 = vsel %vm747, %v531, 0
    %v794 = vsel %vm747, %v534, 0
    %796 = vmatprep.subr.bf16.mxu0 %v676
    %797 = vmatpush1.bf16.msra.mxu0 %v675
    %798 = vmatprep.subr.bf16.mxu0 %v678
    %799 = vmatpush1.bf16.msra.mxu0 %v677
    %800 = vmatprep.subr.bf16.mxu0 %v680
    %801 = vmatpush1.bf16.msra.mxu0 %v679
    %802 = vmatprep.subr.bf16.mxu0 %v682
    %803 = vmatpush1.bf16.msra.mxu0 %v681
    %804 = vmatprep.subr.bf16.mxu0 %v684
    %805 = vmatpush1.bf16.msra.mxu0 %v683
    %806 = vmatprep.subr.bf16.mxu0 %v686
    %807 = vmatpush1.bf16.msra.mxu0 %v685
    %808 = vmatprep.subr.bf16.mxu0 %v688
    %809 = vmatpush1.bf16.msra.mxu0 %v687
    %810 = vmatprep.subr.bf16.mxu0 %v690
    %811 = vmatpush1.bf16.msra.mxu0 %v689
    %812 = vmatprep.subr.bf16.mxu0 %v692
    %813 = vmatpush1.bf16.msra.mxu0 %v691
    %814 = vmatprep.subr.bf16.mxu0 %v694
    %815 = vmatpush1.bf16.msra.mxu0 %v693
    %816 = vmatprep.subr.bf16.mxu0 %v696
    %817 = vmatpush1.bf16.msra.mxu0 %v695
    %818 = vmatprep.subr.bf16.mxu0 %v698
    %819 = vmatpush1.bf16.msra.mxu0 %v697
    %820 = vmatprep.subr.bf16.mxu0 %v700
    %821 = vmatpush1.bf16.msra.mxu0 %v699
    %822 = vmatprep.subr.bf16.mxu0 %v702
    %823 = vmatpush1.bf16.msra.mxu0 %v701
    %824 = vmatprep.subr.bf16.mxu0 %v704
    %825 = vmatpush1.bf16.msra.mxu0 %v703
    %826 = vmatprep.subr.bf16.mxu0 %v706
    %827 = vmatpush1.bf16.msra.mxu0 %v705
    %828 = vmatprep.mubr.bf16.mxu0 %v488
    %829 = vmatmul.mubr.bf16.gmra.mrb[0].mxu0 %v487
    %v830 = vpop.f32.mrb[0].mxu0
    %v831 = vadd.f32 %v170, %v830
    %v832 = vpop.f32.mrb[0].mxu0
    %v833 = vadd.f32 %v170, %v832
    %v834 = vpop.f32.mrb[0].mxu0
    %v835 = vadd.f32 %v175, %v834
    %v836 = vpop.f32.mrb[0].mxu0
    %v837 = vadd.f32 %v175, %v836
    %838 = vmatprep.mubr.bf16.mxu0 %v491
    %839 = vmatmul.mubr.bf16.gmra.mrb[0].mxu0 %v490
    %v840 = vpop.f32.mrb[0].mxu0
    %v841 = vadd.f32 %v180, %v840
    %v842 = vpop.f32.mrb[0].mxu0
    %v843 = vadd.f32 %v180, %v842
    %v844 = vpop.f32.mrb[0].mxu0
    %v845 = vadd.f32 %v185, %v844
    %v846 = vpop.f32.mrb[0].mxu0
    %v847 = vadd.f32 %v185, %v846
    %848 = vmatprep.mubr.bf16.mxu0 %v494
    %849 = vmatmul.mubr.bf16.gmra.mrb[0].mxu0 %v493
    %v850 = vpop.f32.mrb[0].mxu0
    %v851 = vadd.f32 %v190, %v850
    %v852 = vpop.f32.mrb[0].mxu0
    %v853 = vadd.f32 %v190, %v852
    %v854 = vpop.f32.mrb[0].mxu0
    %v855 = vadd.f32 %v195, %v854
    %v856 = vpop.f32.mrb[0].mxu0
    %v857 = vadd.f32 %v195, %v856
    %858 = vmatprep.mubr.bf16.mxu0 %v497
    %859 = vmatmul.mubr.bf16.gmra.mrb[0].mxu0 %v496
    %v860 = vpop.f32.mrb[0].mxu0
    %v861 = vadd.f32 %v200, %v860
    %v862 = vpop.f32.mrb[0].mxu0
    %v863 = vadd.f32 %v200, %v862
    %v864 = vpop.f32.mrb[0].mxu0
    %v865 = vadd.f32 %v205, %v864
    %v866 = vpop.f32.mrb[0].mxu0
    %v867 = vadd.f32 %v205, %v866
    %868 = vmatprep.mubr.bf16.mxu0 %v500
    %869 = vmatmul.mubr.bf16.gmra.mrb[0].mxu0 %v499
    %v870 = vpop.f32.mrb[0].mxu0
    %v871 = vadd.f32 %v210, %v870
    %v872 = vpop.f32.mrb[0].mxu0
    %v873 = vadd.f32 %v210, %v872
    %v874 = vpop.f32.mrb[0].mxu0
    %v875 = vadd.f32 %v215, %v874
    %v876 = vpop.f32.mrb[0].mxu0
    %v877 = vadd.f32 %v215, %v876
    %878 = vmatprep.mubr.bf16.mxu0 %v503
    %879 = vmatmul.mubr.bf16.gmra.mrb[0].mxu0 %v502
    %v880 = vpop.f32.mrb[0].mxu0
    %v881 = vadd.f32 %v220, %v880
    %v882 = vpop.f32.mrb[0].mxu0
    %v883 = vadd.f32 %v220, %v882
    %v884 = vpop.f32.mrb[0].mxu0
    %v885 = vadd.f32 %v225, %v884
    %v886 = vpop.f32.mrb[0].mxu0
    %v887 = vadd.f32 %v225, %v886
    %888 = vmatprep.mubr.bf16.mxu0 %v506
    %889 = vmatmul.mubr.bf16.gmra.mrb[0].mxu0 %v505
    %v890 = vpop.f32.mrb[0].mxu0
    %v891 = vadd.f32 %v230, %v890
    %v892 = vpop.f32.mrb[0].mxu0
    %v893 = vadd.f32 %v230, %v892
    %v894 = vpop.f32.mrb[0].mxu0
    %v895 = vadd.f32 %v235, %v894
    %v896 = vpop.f32.mrb[0].mxu0
    %v897 = vadd.f32 %v235, %v896
    %898 = vmatprep.mubr.bf16.mxu0 %v509
    %899 = vmatmul.mubr.bf16.gmra.mrb[0].mxu0 %v508
    %v900 = vpop.f32.mrb[0].mxu0
    %v901 = vadd.f32 %v240, %v900
    %v902 = vpop.f32.mrb[0].mxu0
    %v903 = vadd.f32 %v240, %v902
    %v904 = vpop.f32.mrb[0].mxu0
    %v905 = vadd.f32 %v245, %v904
    %v906 = vpop.f32.mrb[0].mxu0
    %v907 = vadd.f32 %v245, %v906
    %908 = vmatprep.mubr.bf16.mxu0 %v512
    %909 = vmatmul.mubr.bf16.gmra.mrb[0].mxu0 %v511
    %v910 = vpop.f32.mrb[0].mxu0
    %v911 = vadd.f32 %v250, %v910
    %v912 = vpop.f32.mrb[0].mxu0
    %v913 = vadd.f32 %v250, %v912
    %v914 = vpop.f32.mrb[0].mxu0
    %v915 = vadd.f32 %v255, %v914
    %v916 = vpop.f32.mrb[0].mxu0
    %v917 = vadd.f32 %v255, %v916
    %918 = vmatprep.mubr.bf16.mxu0 %v515
    %919 = vmatmul.mubr.bf16.gmra.mrb[0].mxu0 %v514
    %v920 = vpop.f32.mrb[0].mxu0
    %v921 = vadd.f32 %v260, %v920
    %v922 = vpop.f32.mrb[0].mxu0
    %v923 = vadd.f32 %v260, %v922
    %v924 = vpop.f32.mrb[0].mxu0
    %v925 = vadd.f32 %v265, %v924
    %v926 = vpop.f32.mrb[0].mxu0
    %v927 = vadd.f32 %v265, %v926
    %928 = vmatprep.mubr.bf16.mxu0 %v518
    %929 = vmatmul.mubr.bf16.gmra.mrb[0].mxu0 %v517
    %v930 = vpop.f32.mrb[0].mxu0
    %v931 = vadd.f32 %v270, %v930
    %v932 = vpop.f32.mrb[0].mxu0
    %v933 = vadd.f32 %v270, %v932
    %v934 = vpop.f32.mrb[0].mxu0
    %v935 = vadd.f32 %v275, %v934
    %v936 = vpop.f32.mrb[0].mxu0
    %v937 = vadd.f32 %v275, %v936
    %938 = vmatprep.mubr.bf16.mxu0 %v521
    %939 = vmatmul.mubr.bf16.gmra.mrb[0].mxu0 %v520
    %v940 = vpop.f32.mrb[0].mxu0
    %v941 = vadd.f32 %v280, %v940
    %v942 = vpop.f32.mrb[0].mxu0
    %v943 = vadd.f32 %v280, %v942
    %v944 = vpop.f32.mrb[0].mxu0
    %v945 = vadd.f32 %v285, %v944
    %v946 = vpop.f32.mrb[0].mxu0
    %v947 = vadd.f32 %v285, %v946
    %948 = vmatprep.mubr.bf16.mxu0 %v524
    %949 = vmatmul.mubr.bf16.gmra.mrb[0].mxu0 %v523
    %v950 = vpop.f32.mrb[0].mxu0
    %v951 = vadd.f32 %v290, %v950
    %v952 = vpop.f32.mrb[0].mxu0
    %v953 = vadd.f32 %v290, %v952
    %v954 = vpop.f32.mrb[0].mxu0
    %v955 = vadd.f32 %v295, %v954
    %v956 = vpop.f32.mrb[0].mxu0
    %v957 = vadd.f32 %v295, %v956
    %958 = vmatprep.mubr.bf16.mxu0 %v527
    %959 = vmatmul.mubr.bf16.gmra.mrb[0].mxu0 %v526
    %v960 = vpop.f32.mrb[0].mxu0
    %v961 = vadd.f32 %v300, %v960
    %v962 = vpop.f32.mrb[0].mxu0
    %v963 = vadd.f32 %v300, %v962
    %v964 = vpop.f32.mrb[0].mxu0
    %v965 = vadd.f32 %v305, %v964
    %v966 = vpop.f32.mrb[0].mxu0
    %v967 = vadd.f32 %v305, %v966
    %968 = vmatprep.mubr.bf16.mxu0 %v530
    %969 = vmatmul.mubr.bf16.gmra.mrb[0].mxu0 %v529
    %v970 = vpop.f32.mrb[0].mxu0
    %v971 = vadd.f32 %v310, %v970
    %v972 = vpop.f32.mrb[0].mxu0
    %v973 = vadd.f32 %v310, %v972
    %v974 = vpop.f32.mrb[0].mxu0
    %v975 = vadd.f32 %v315, %v974
    %v976 = vpop.f32.mrb[0].mxu0
    %v977 = vadd.f32 %v315, %v976
    %978 = vmatprep.mubr.bf16.mxu0 %v533
    %979 = vmatmul.mubr.bf16.gmra.mrb[0].mxu0 %v532
    %v980 = vpop.f32.mrb[0].mxu0
    %v981 = vadd.f32 %v320, %v980
    %v982 = vpop.f32.mrb[0].mxu0
    %v983 = vadd.f32 %v320, %v982
    %v984 = vpop.f32.mrb[0].mxu0
    %v985 = vadd.f32 %v325, %v984
    %v986 = vpop.f32.mrb[0].mxu0
    %v987 = vadd.f32 %v325, %v986
    %988 = vdwg.mxu0
    %989 = vmatprep.subr.bf16.mxu0 %v708
    %990 = vmatpush1.bf16.msra.mxu0 %v707
    %991 = vmatprep.subr.bf16.mxu0 %v710
    %992 = vmatpush1.bf16.msra.mxu0 %v709
    %993 = vmatprep.subr.bf16.mxu0 0
    %994 = vmatpush1.bf16.msra.mxu0 0
    %995 = vmatprep.subr.bf16.mxu0 0
    %996 = vmatpush1.bf16.msra.mxu0 0
    %997 = vmatprep.subr.bf16.mxu0 0
    %998 = vmatpush1.bf16.msra.mxu0 0
    %999 = vmatprep.subr.bf16.mxu0 0
    %1000 = vmatpush1.bf16.msra.mxu0 0
    %1001 = vmatprep.subr.bf16.mxu0 0
    %1002 = vmatpush1.bf16.msra.mxu0 0
    %1003 = vmatprep.subr.bf16.mxu0 0
    %1004 = vmatpush1.bf16.msra.mxu0 0
    %1005 = vmatprep.subr.bf16.mxu0 0
    %1006 = vmatpush1.bf16.msra.mxu0 0
    %1007 = vmatprep.subr.bf16.mxu0 0
    %1008 = vmatpush1.bf16.msra.mxu0 0
    %1009 = vmatprep.subr.bf16.mxu0 0
    %1010 = vmatpush1.bf16.msra.mxu0 0
    %1011 = vmatprep.subr.bf16.mxu0 0
    %1012 = vmatpush1.bf16.msra.mxu0 0
    %1013 = vmatprep.subr.bf16.mxu0 0
    %1014 = vmatpush1.bf16.msra.mxu0 0
    %1015 = vmatprep.subr.bf16.mxu0 0
    %1016 = vmatpush1.bf16.msra.mxu0 0
    %1017 = vmatprep.subr.bf16.mxu0 0
    %1018 = vmatpush1.bf16.msra.mxu0 0
    %1019 = vmatprep.subr.bf16.mxu0 0
    %1020 = vmatpush1.bf16.msra.mxu0 0
    %1021 = vmatprep.mubr.bf16.mxu0 0
    %1022 = vmatmul.mubr.bf16.gmra.mrb[0].mxu0 %v749
    %v1023 = vpop.f32.mrb[0].mxu0
    %v1024 = vadd.f32 %v831, %v1023
    %v1025 = vpop.f32.mrb[0].mxu0
    %v1026 = vadd.f32 %v833, %v1025
    %v1027 = vpop.f32.mrb[0].mxu0
    %v1028 = vadd.f32 %v835, %v1027
    %v1029 = vpop.f32.mrb[0].mxu0
    %v1030 = vadd.f32 %v837, %v1029
    %1031 = vmatprep.mubr.bf16.mxu0 0
    %1032 = vmatmul.mubr.bf16.gmra.mrb[0].mxu0 %v752
    %v1033 = vpop.f32.mrb[0].mxu0
    %v1034 = vadd.f32 %v841, %v1033
    %v1035 = vpop.f32.mrb[0].mxu0
    %v1036 = vadd.f32 %v843, %v1035
    %v1037 = vpop.f32.mrb[0].mxu0
    %v1038 = vadd.f32 %v845, %v1037
    %v1039 = vpop.f32.mrb[0].mxu0
    %v1040 = vadd.f32 %v847, %v1039
    %1041 = vmatprep.mubr.bf16.mxu0 0
    %1042 = vmatmul.mubr.bf16.gmra.mrb[0].mxu0 %v755
    %v1043 = vpop.f32.mrb[0].mxu0
    %v1044 = vadd.f32 %v851, %v1043
    %v1045 = vpop.f32.mrb[0].mxu0
    %v1046 = vadd.f32 %v853, %v1045
    %v1047 = vpop.f32.mrb[0].mxu0
    %v1048 = vadd.f32 %v855, %v1047
    %v1049 = vpop.f32.mrb[0].mxu0
    %v1050 = vadd.f32 %v857, %v1049
    %1051 = vmatprep.mubr.bf16.mxu0 0
    %1052 = vmatmul.mubr.bf16.gmra.mrb[0].mxu0 %v758
    %v1053 = vpop.f32.mrb[0].mxu0
    %v1054 = vadd.f32 %v861, %v1053
    %v1055 = vpop.f32.mrb[0].mxu0
    %v1056 = vadd.f32 %v863, %v1055
    %v1057 = vpop.f32.mrb[0].mxu0
    %v1058 = vadd.f32 %v865, %v1057
    %v1059 = vpop.f32.mrb[0].mxu0
    %v1060 = vadd.f32 %v867, %v1059
    %1061 = vmatprep.mubr.bf16.mxu0 0
    %1062 = vmatmul.mubr.bf16.gmra.mrb[0].mxu0 %v761
    %v1063 = vpop.f32.mrb[0].mxu0
    %v1064 = vadd.f32 %v871, %v1063
    %v1065 = vpop.f32.mrb[0].mxu0
    %v1066 = vadd.f32 %v873, %v1065
    %v1067 = vpop.f32.mrb[0].mxu0
    %v1068 = vadd.f32 %v875, %v1067
    %v1069 = vpop.f32.mrb[0].mxu0
    %v1070 = vadd.f32 %v877, %v1069
    %1071 = vmatprep.mubr.bf16.mxu0 0
    %1072 = vmatmul.mubr.bf16.gmra.mrb[0].mxu0 %v764
    %v1073 = vpop.f32.mrb[0].mxu0
    %v1074 = vadd.f32 %v881, %v1073
    %v1075 = vpop.f32.mrb[0].mxu0
    %v1076 = vadd.f32 %v883, %v1075
    %v1077 = vpop.f32.mrb[0].mxu0
    %v1078 = vadd.f32 %v885, %v1077
    %v1079 = vpop.f32.mrb[0].mxu0
    %v1080 = vadd.f32 %v887, %v1079
    %1081 = vmatprep.mubr.bf16.mxu0 0
    %1082 = vmatmul.mubr.bf16.gmra.mrb[0].mxu0 %v767
    %v1083 = vpop.f32.mrb[0].mxu0
    %v1084 = vadd.f32 %v891, %v1083
    %v1085 = vpop.f32.mrb[0].mxu0
    %v1086 = vadd.f32 %v893, %v1085
    %v1087 = vpop.f32.mrb[0].mxu0
    %v1088 = vadd.f32 %v895, %v1087
    %v1089 = vpop.f32.mrb[0].mxu0
    %v1090 = vadd.f32 %v897, %v1089
    %1091 = vmatprep.mubr.bf16.mxu0 0
    %1092 = vmatmul.mubr.bf16.gmra.mrb[0].mxu0 %v770
    %v1093 = vpop.f32.mrb[0].mxu0
    %v1094 = vadd.f32 %v901, %v1093
    %v1095 = vpop.f32.mrb[0].mxu0
    %v1096 = vadd.f32 %v903, %v1095
    %v1097 = vpop.f32.mrb[0].mxu0
    %v1098 = vadd.f32 %v905, %v1097
    %v1099 = vpop.f32.mrb[0].mxu0
    %v1100 = vadd.f32 %v907, %v1099
    %1101 = vmatprep.mubr.bf16.mxu0 0
    %1102 = vmatmul.mubr.bf16.gmra.mrb[0].mxu0 %v773
    %v1103 = vpop.f32.mrb[0].mxu0
    %v1104 = vadd.f32 %v911, %v1103
    %v1105 = vpop.f32.mrb[0].mxu0
    %v1106 = vadd.f32 %v913, %v1105
    %v1107 = vpop.f32.mrb[0].mxu0
    %v1108 = vadd.f32 %v915, %v1107
    %v1109 = vpop.f32.mrb[0].mxu0
    %v1110 = vadd.f32 %v917, %v1109
    %1111 = vmatprep.mubr.bf16.mxu0 0
    %1112 = vmatmul.mubr.bf16.gmra.mrb[0].mxu0 %v776
    %v1113 = vpop.f32.mrb[0].mxu0
    %v1114 = vadd.f32 %v921, %v1113
    %v1115 = vpop.f32.mrb[0].mxu0
    %v1116 = vadd.f32 %v923, %v1115
    %v1117 = vpop.f32.mrb[0].mxu0
    %v1118 = vadd.f32 %v925, %v1117
    %v1119 = vpop.f32.mrb[0].mxu0
    %v1120 = vadd.f32 %v927, %v1119
    %1121 = vmatprep.mubr.bf16.mxu0 0
    %1122 = vmatmul.mubr.bf16.gmra.mrb[0].mxu0 %v779
    %v1123 = vpop.f32.mrb[0].mxu0
    %v1124 = vadd.f32 %v931, %v1123
    %v1125 = vpop.f32.mrb[0].mxu0
    %v1126 = vadd.f32 %v933, %v1125
    %v1127 = vpop.f32.mrb[0].mxu0
    %v1128 = vadd.f32 %v935, %v1127
    %v1129 = vpop.f32.mrb[0].mxu0
    %v1130 = vadd.f32 %v937, %v1129
    %1131 = vmatprep.mubr.bf16.mxu0 0
    %1132 = vmatmul.mubr.bf16.gmra.mrb[0].mxu0 %v782
    %v1133 = vpop.f32.mrb[0].mxu0
    %v1134 = vadd.f32 %v941, %v1133
    %v1135 = vpop.f32.mrb[0].mxu0
    %v1136 = vadd.f32 %v943, %v1135
    %v1137 = vpop.f32.mrb[0].mxu0
    %v1138 = vadd.f32 %v945, %v1137
    %v1139 = vpop.f32.mrb[0].mxu0
    %v1140 = vadd.f32 %v947, %v1139
    %1141 = vmatprep.mubr.bf16.mxu0 0
    %1142 = vmatmul.mubr.bf16.gmra.mrb[0].mxu0 %v785
    %v1143 = vpop.f32.mrb[0].mxu0
    %v1144 = vadd.f32 %v951, %v1143
    %v1145 = vpop.f32.mrb[0].mxu0
    %v1146 = vadd.f32 %v953, %v1145
    %v1147 = vpop.f32.mrb[0].mxu0
    %v1148 = vadd.f32 %v955, %v1147
    %v1149 = vpop.f32.mrb[0].mxu0
    %v1150 = vadd.f32 %v957, %v1149
    %1151 = vmatprep.mubr.bf16.mxu0 0
    %1152 = vmatmul.mubr.bf16.gmra.mrb[0].mxu0 %v788
    %v1153 = vpop.f32.mrb[0].mxu0
    %v1154 = vadd.f32 %v961, %v1153
    %v1155 = vpop.f32.mrb[0].mxu0
    %v1156 = vadd.f32 %v963, %v1155
    %v1157 = vpop.f32.mrb[0].mxu0
    %v1158 = vadd.f32 %v965, %v1157
    %v1159 = vpop.f32.mrb[0].mxu0
    %v1160 = vadd.f32 %v967, %v1159
    %1161 = vmatprep.mubr.bf16.mxu0 0
    %1162 = vmatmul.mubr.bf16.gmra.mrb[0].mxu0 %v791
    %v1163 = vpop.f32.mrb[0].mxu0
    %v1164 = vadd.f32 %v971, %v1163
    %v1165 = vpop.f32.mrb[0].mxu0
    %v1166 = vadd.f32 %v973, %v1165
    %v1167 = vpop.f32.mrb[0].mxu0
    %v1168 = vadd.f32 %v975, %v1167
    %v1169 = vpop.f32.mrb[0].mxu0
    %v1170 = vadd.f32 %v977, %v1169
    %1171 = vmatprep.mubr.bf16.mxu0 0
    %1172 = vmatmul.mubr.bf16.gmra.mrb[0].mxu0 %v794
    %v1173 = vpop.f32.mrb[0].mxu0
    %v1174 = vadd.f32 %v981, %v1173
    %v1175 = vpop.f32.mrb[0].mxu0
    %v1176 = vadd.f32 %v983, %v1175
    %v1177 = vpop.f32.mrb[0].mxu0
    %v1178 = vadd.f32 %v985, %v1177
    %v1179 = vpop.f32.mrb[0].mxu0
    %v1180 = vadd.f32 %v987, %v1179
    %1181 = vdwg.mxu0
    %v1182 = vld [vmem:[%s4] sm:$0xff]
    %v1183 = vld [vmem:[%s4 + $0x8] sm:$0xff]
    %v1184 = vld [vmem:[%s4 + $0x10] sm:$0xff]
    %v1185 = vld [vmem:[%s4 + $0x18] sm:$0xff]
    %v1186 = vld [vmem:[%s4 + $0x20] sm:$0xff]
    %v1187 = vld [vmem:[%s4 + $0x28] sm:$0xff]
    %v1188 = vld [vmem:[%s4 + $0x30] sm:$0xff]
    %v1189 = vld [vmem:[%s4 + $0x38] sm:$0xff]
    %v1190 = vld [vmem:[%s4 + $0x40] sm:$0xff]
    %v1191 = vld [vmem:[%s4 + $0x48] sm:$0xff]
    %v1192 = vld [vmem:[%s4 + $0x50] sm:$0xff]
    %v1193 = vld [vmem:[%s4 + $0x58] sm:$0xff]
    %v1194 = vld [vmem:[%s4 + $0x60] sm:$0xff]
    %v1195 = vld [vmem:[%s4 + $0x68] sm:$0xff]
    %v1196 = vld [vmem:[%s4 + $0x70] sm:$0xff]
    %v1197 = vld [vmem:[%s4 + $0x78] sm:$0xff]
    %v1198 = vld [vmem:[%s4 + $0x80] sm:$0xff]
    %v1199 = vld [vmem:[%s4 + $0x88] sm:$0xff]
    %v1200 = vld [vmem:[%s4 + $0x90] sm:$0xff]
    %v1201 = vld [vmem:[%s4 + $0x98] sm:$0xff]
    %v1202 = vld [vmem:[%s4 + $0xa0] sm:$0xff]
    %v1203 = vld [vmem:[%s4 + $0xa8] sm:$0xff]
    %v1204 = vld [vmem:[%s4 + $0xb0] sm:$0xff]
    %v1205 = vld [vmem:[%s4 + $0xb8] sm:$0xff]
    %v1206 = vld [vmem:[%s4 + $0xc0] sm:$0xff]
    %v1207 = vld [vmem:[%s4 + $0xc8] sm:$0xff]
    %v1208 = vld [vmem:[%s4 + $0xd0] sm:$0xff]
    %v1209 = vld [vmem:[%s4 + $0xd8] sm:$0xff]
    %v1210 = vld [vmem:[%s4 + $0xe0] sm:$0xff]
    %v1211 = vld [vmem:[%s4 + $0xe8] sm:$0xff]
    %v1212 = vld [vmem:[%s4 + $0xf0] sm:$0xff]
    %v1213 = vld [vmem:[%s4 + $0xf8] sm:$0xff]
    %v1214 = vld [vmem:[%s4 + $0x100] sm:$0xff]
    %v1215 = vld [vmem:[%s4 + $0x108] sm:$0xff]
    %v1216 = vld [vmem:[%s4 + $0x110] sm:$0xff]
    %v1217 = vld [vmem:[%s4 + $0x118] sm:$0xff]
    %v1218 = vld [vmem:[%s4 + $0x120] sm:$0xff]
    %v1219 = vld [vmem:[%s4 + $0x128] sm:$0xff]
    %v1220 = vld [vmem:[%s4 + $0x130] sm:$0xff]
    %v1221 = vld [vmem:[%s4 + $0x138] sm:$0xff]
    %v1222 = vld [vmem:[%s4 + $0x140] sm:$0xff]
    %v1223 = vld [vmem:[%s4 + $0x148] sm:$0xff]
    %v1224 = vld [vmem:[%s4 + $0x150] sm:$0xff]
    %v1225 = vld [vmem:[%s4 + $0x158] sm:$0xff]
    %v1226 = vld [vmem:[%s4 + $0x160] sm:$0xff]
    %v1227 = vld [vmem:[%s4 + $0x168] sm:$0xff]
    %v1228 = vld [vmem:[%s4 + $0x170] sm:$0xff]
    %v1229 = vld [vmem:[%s4 + $0x178] sm:$0xff]
    %v1230 = vld [vmem:[%s4 + $0x180] sm:$0xff]
    %v1231 = vld [vmem:[%s4 + $0x188] sm:$0xff]
    %v1232 = vld [vmem:[%s4 + $0x190] sm:$0xff]
    %v1233 = vld [vmem:[%s4 + $0x198] sm:$0xff]
    %v1234 = vld [vmem:[%s4 + $0x1a0] sm:$0xff]
    %v1235 = vld [vmem:[%s4 + $0x1a8] sm:$0xff]
    %v1236 = vld [vmem:[%s4 + $0x1b0] sm:$0xff]
    %v1237 = vld [vmem:[%s4 + $0x1b8] sm:$0xff]
    %v1238 = vld [vmem:[%s4 + $0x1c0] sm:$0xff]
    %v1239 = vld [vmem:[%s4 + $0x1c8] sm:$0xff]
    %v1240 = vld [vmem:[%s4 + $0x1d0] sm:$0xff]
    %v1241 = vld [vmem:[%s4 + $0x1d8] sm:$0xff]
    %v1242 = vld [vmem:[%s4 + $0x1e0] sm:$0xff]
    %v1243 = vld [vmem:[%s4 + $0x1e8] sm:$0xff]
    %v1244 = vld [vmem:[%s4 + $0x1f0] sm:$0xff]
    %v1245 = vld [vmem:[%s4 + $0x1f8] sm:$0xff]
    %v1246 = vpack.c.bf16 %v1028, %v1024
    %v1247 = vpack.c.bf16 %v1030, %v1026
    %v1248 = vpack.c.bf16 %v1038, %v1034
    %v1249 = vpack.c.bf16 %v1040, %v1036
    %v1250 = vpack.c.bf16 %v1048, %v1044
    %v1251 = vpack.c.bf16 %v1050, %v1046
    %v1252 = vpack.c.bf16 %v1058, %v1054
    %v1253 = vpack.c.bf16 %v1060, %v1056
    %v1254 = vpack.c.bf16 %v1068, %v1064
    %v1255 = vpack.c.bf16 %v1070, %v1066
    %v1256 = vpack.c.bf16 %v1078, %v1074
    %v1257 = vpack.c.bf16 %v1080, %v1076
    %v1258 = vpack.c.bf16 %v1088, %v1084
    %v1259 = vpack.c.bf16 %v1090, %v1086
    %v1260 = vpack.c.bf16 %v1098, %v1094
    %v1261 = vpack.c.bf16 %v1100, %v1096
    %v1262 = vpack.c.bf16 %v1108, %v1104
    %v1263 = vpack.c.bf16 %v1110, %v1106
    %v1264 = vpack.c.bf16 %v1118, %v1114
    %v1265 = vpack.c.bf16 %v1120, %v1116
    %v1266 = vpack.c.bf16 %v1128, %v1124
    %v1267 = vpack.c.bf16 %v1130, %v1126
    %v1268 = vpack.c.bf16 %v1138, %v1134
    %v1269 = vpack.c.bf16 %v1140, %v1136
    %v1270 = vpack.c.bf16 %v1148, %v1144
    %v1271 = vpack.c.bf16 %v1150, %v1146
    %v1272 = vpack.c.bf16 %v1158, %v1154
    %v1273 = vpack.c.bf16 %v1160, %v1156
    %v1274 = vpack.c.bf16 %v1168, %v1164
    %v1275 = vpack.c.bf16 %v1170, %v1166
    %v1276 = vpack.c.bf16 %v1178, %v1174
    %v1277 = vpack.c.bf16 %v1180, %v1176
    %v1278 = vld [vmem:[%s5] sm:$0xff]
    %v1279 = vld [vmem:[%s5 + $0x8] sm:$0xff]
    %v1280 = vld [vmem:[%s5 + $0x10] sm:$0xff]
    %v1281 = vld [vmem:[%s5 + $0x18] sm:$0xff]
    %v1282 = vld [vmem:[%s5 + $0x20] sm:$0xff]
    %v1283 = vld [vmem:[%s5 + $0x28] sm:$0xff]
    %v1284 = vld [vmem:[%s5 + $0x30] sm:$0xff]
    %v1285 = vld [vmem:[%s5 + $0x38] sm:$0xff]
    %v1286 = vld [vmem:[%s5 + $0x40] sm:$0xff]
    %v1287 = vld [vmem:[%s5 + $0x48] sm:$0xff]
    %v1288 = vld [vmem:[%s5 + $0x50] sm:$0xff]
    %v1289 = vld [vmem:[%s5 + $0x58] sm:$0xff]
    %v1290 = vld [vmem:[%s5 + $0x60] sm:$0xff]
    %v1291 = vld [vmem:[%s5 + $0x68] sm:$0xff]
    %v1292 = vld [vmem:[%s5 + $0x70] sm:$0xff]
    %v1293 = vld [vmem:[%s5 + $0x78] sm:$0xff]
    %v1294 = vld [vmem:[%s5 + $0x80] sm:$0xff]
    %v1295 = vld [vmem:[%s5 + $0x88] sm:$0xff]
    %v1296 = vld [vmem:[%s5 + $0x90] sm:$0xff]
    %v1297 = vld [vmem:[%s5 + $0x98] sm:$0xff]
    %v1298 = vld [vmem:[%s5 + $0xa0] sm:$0xff]
    %v1299 = vld [vmem:[%s5 + $0xa8] sm:$0xff]
    %v1300 = vld [vmem:[%s5 + $0xb0] sm:$0xff]
    %v1301 = vld [vmem:[%s5 + $0xb8] sm:$0xff]
    %v1302 = vld [vmem:[%s5 + $0xc0] sm:$0xff]
    %v1303 = vld [vmem:[%s5 + $0xc8] sm:$0xff]
    %v1304 = vld [vmem:[%s5 + $0xd0] sm:$0xff]
    %v1305 = vld [vmem:[%s5 + $0xd8] sm:$0xff]
    %v1306 = vld [vmem:[%s5 + $0xe0] sm:$0xff]
    %v1307 = vld [vmem:[%s5 + $0xe8] sm:$0xff]
    %v1308 = vld [vmem:[%s5 + $0xf0] sm:$0xff]
    %v1309 = vld [vmem:[%s5 + $0xf8] sm:$0xff]
    %v1310 = vld [vmem:[%s5 + $0x100] sm:$0xff]
    %v1311 = vld [vmem:[%s5 + $0x108] sm:$0xff]
    %v1312 = vld [vmem:[%s5 + $0x110] sm:$0xff]
    %v1313 = vld [vmem:[%s5 + $0x118] sm:$0xff]
    %v1314 = vld [vmem:[%s5 + $0x120] sm:$0xff]
    %v1315 = vld [vmem:[%s5 + $0x128] sm:$0xff]
    %v1316 = vld [vmem:[%s5 + $0x130] sm:$0xff]
    %v1317 = vld [vmem:[%s5 + $0x138] sm:$0xff]
    %v1318 = vld [vmem:[%s5 + $0x140] sm:$0xff]
    %v1319 = vld [vmem:[%s5 + $0x148] sm:$0xff]
    %v1320 = vld [vmem:[%s5 + $0x150] sm:$0xff]
    %v1321 = vld [vmem:[%s5 + $0x158] sm:$0xff]
    %v1322 = vld [vmem:[%s5 + $0x160] sm:$0xff]
    %v1323 = vld [vmem:[%s5 + $0x168] sm:$0xff]
    %v1324 = vld [vmem:[%s5 + $0x170] sm:$0xff]
    %v1325 = vld [vmem:[%s5 + $0x178] sm:$0xff]
    %v1326 = vld [vmem:[%s5 + $0x180] sm:$0xff]
    %v1327 = vld [vmem:[%s5 + $0x188] sm:$0xff]
    %v1328 = vld [vmem:[%s5 + $0x190] sm:$0xff]
    %v1329 = vld [vmem:[%s5 + $0x198] sm:$0xff]
    %v1330 = vld [vmem:[%s5 + $0x1a0] sm:$0xff]
    %v1331 = vld [vmem:[%s5 + $0x1a8] sm:$0xff]
    %v1332 = vld [vmem:[%s5 + $0x1b0] sm:$0xff]
    %v1333 = vld [vmem:[%s5 + $0x1b8] sm:$0xff]
    %v1334 = vld [vmem:[%s5 + $0x1c0] sm:$0xff]
    %v1335 = vld [vmem:[%s5 + $0x1c8] sm:$0xff]
    %v1336 = vld [vmem:[%s5 + $0x1d0] sm:$0xff]
    %v1337 = vld [vmem:[%s5 + $0x1d8] sm:$0xff]
    %v1338 = vld [vmem:[%s5 + $0x1e0] sm:$0xff]
    %v1339 = vld [vmem:[%s5 + $0x1e8] sm:$0xff]
    %v1340 = vld [vmem:[%s5 + $0x1f0] sm:$0xff]
    %v1341 = vld [vmem:[%s5 + $0x1f8] sm:$0xff]
    %1343 = vset.pattern.permute.xlu0 0
    %1344 = vperm.xlu0 %1343, %v1278
    %v1345 = vpop.permute.xlu0 %1344
    %1348 = vset.pattern.permute.xlu0 0
    %1349 = vperm.xlu0 %1348, %v1279
    %v1350 = vpop.permute.xlu0 %1349
    %1353 = vset.pattern.permute.xlu0 0
    %1354 = vperm.xlu0 %1353, %v1280
    %v1355 = vpop.permute.xlu0 %1354
    %1358 = vset.pattern.permute.xlu0 0
    %1359 = vperm.xlu0 %1358, %v1281
    %v1360 = vpop.permute.xlu0 %1359
    %1363 = vset.pattern.permute.xlu0 0
    %1364 = vperm.xlu0 %1363, %v1282
    %v1365 = vpop.permute.xlu0 %1364
    %1368 = vset.pattern.permute.xlu0 0
    %1369 = vperm.xlu0 %1368, %v1283
    %v1370 = vpop.permute.xlu0 %1369
    %1373 = vset.pattern.permute.xlu0 0
    %1374 = vperm.xlu0 %1373, %v1284
    %v1375 = vpop.permute.xlu0 %1374
    %1378 = vset.pattern.permute.xlu0 0
    %1379 = vperm.xlu0 %1378, %v1285
    %v1380 = vpop.permute.xlu0 %1379
    %1383 = vset.pattern.permute.xlu0 0
    %1384 = vperm.xlu0 %1383, %v1286
    %v1385 = vpop.permute.xlu0 %1384
    %1388 = vset.pattern.permute.xlu0 0
    %1389 = vperm.xlu0 %1388, %v1287
    %v1390 = vpop.permute.xlu0 %1389
    %1393 = vset.pattern.permute.xlu0 0
    %1394 = vperm.xlu0 %1393, %v1288
    %v1395 = vpop.permute.xlu0 %1394
    %1398 = vset.pattern.permute.xlu0 0
    %1399 = vperm.xlu0 %1398, %v1289
    %v1400 = vpop.permute.xlu0 %1399
    %1403 = vset.pattern.permute.xlu0 0
    %1404 = vperm.xlu0 %1403, %v1290
    %v1405 = vpop.permute.xlu0 %1404
    %1408 = vset.pattern.permute.xlu0 0
    %1409 = vperm.xlu0 %1408, %v1291
    %v1410 = vpop.permute.xlu0 %1409
    %1413 = vset.pattern.permute.xlu0 0
    %1414 = vperm.xlu0 %1413, %v1292
    %v1415 = vpop.permute.xlu0 %1414
    %1418 = vset.pattern.permute.xlu0 0
    %1419 = vperm.xlu0 %1418, %v1293
    %v1420 = vpop.permute.xlu0 %1419
    %1423 = vset.pattern.permute.xlu0 0
    %1424 = vperm.xlu0 %1423, %v1294
    %v1425 = vpop.permute.xlu0 %1424
    %1428 = vset.pattern.permute.xlu0 0
    %1429 = vperm.xlu0 %1428, %v1295
    %v1430 = vpop.permute.xlu0 %1429
    %1433 = vset.pattern.permute.xlu0 0
    %1434 = vperm.xlu0 %1433, %v1296
    %v1435 = vpop.permute.xlu0 %1434
    %1438 = vset.pattern.permute.xlu0 0
    %1439 = vperm.xlu0 %1438, %v1297
    %v1440 = vpop.permute.xlu0 %1439
    %1443 = vset.pattern.permute.xlu0 0
    %1444 = vperm.xlu0 %1443, %v1298
    %v1445 = vpop.permute.xlu0 %1444
    %1448 = vset.pattern.permute.xlu0 0
    %1449 = vperm.xlu0 %1448, %v1299
    %v1450 = vpop.permute.xlu0 %1449
    %1453 = vset.pattern.permute.xlu0 0
    %1454 = vperm.xlu0 %1453, %v1300
    %v1455 = vpop.permute.xlu0 %1454
    %1458 = vset.pattern.permute.xlu0 0
    %1459 = vperm.xlu0 %1458, %v1301
    %v1460 = vpop.permute.xlu0 %1459
    %1463 = vset.pattern.permute.xlu0 0
    %1464 = vperm.xlu0 %1463, %v1302
    %v1465 = vpop.permute.xlu0 %1464
    %1468 = vset.pattern.permute.xlu0 0
    %1469 = vperm.xlu0 %1468, %v1303
    %v1470 = vpop.permute.xlu0 %1469
    %1473 = vset.pattern.permute.xlu0 0
    %1474 = vperm.xlu0 %1473, %v1304
    %v1475 = vpop.permute.xlu0 %1474
    %1478 = vset.pattern.permute.xlu0 0
    %1479 = vperm.xlu0 %1478, %v1305
    %v1480 = vpop.permute.xlu0 %1479
    %1483 = vset.pattern.permute.xlu0 0
    %1484 = vperm.xlu0 %1483, %v1306
    %v1485 = vpop.permute.xlu0 %1484
    %1488 = vset.pattern.permute.xlu0 0
    %1489 = vperm.xlu0 %1488, %v1307
    %v1490 = vpop.permute.xlu0 %1489
    %1493 = vset.pattern.permute.xlu0 0
    %1494 = vperm.xlu0 %1493, %v1308
    %v1495 = vpop.permute.xlu0 %1494
    %1498 = vset.pattern.permute.xlu0 0
    %1499 = vperm.xlu0 %1498, %v1309
    %v1500 = vpop.permute.xlu0 %1499
    %1503 = vset.pattern.permute.xlu0 0
    %1504 = vperm.xlu0 %1503, %v1310
    %v1505 = vpop.permute.xlu0 %1504
    %1508 = vset.pattern.permute.xlu0 0
    %1509 = vperm.xlu0 %1508, %v1311
    %v1510 = vpop.permute.xlu0 %1509
    %1513 = vset.pattern.permute.xlu0 0
    %1514 = vperm.xlu0 %1513, %v1312
    %v1515 = vpop.permute.xlu0 %1514
    %1518 = vset.pattern.permute.xlu0 0
    %1519 = vperm.xlu0 %1518, %v1313
    %v1520 = vpop.permute.xlu0 %1519
    %1523 = vset.pattern.permute.xlu0 0
    %1524 = vperm.xlu0 %1523, %v1314
    %v1525 = vpop.permute.xlu0 %1524
    %1528 = vset.pattern.permute.xlu0 0
    %1529 = vperm.xlu0 %1528, %v1315
    %v1530 = vpop.permute.xlu0 %1529
    %1533 = vset.pattern.permute.xlu0 0
    %1534 = vperm.xlu0 %1533, %v1316
    %v1535 = vpop.permute.xlu0 %1534
    %1538 = vset.pattern.permute.xlu0 0
    %1539 = vperm.xlu0 %1538, %v1317
    %v1540 = vpop.permute.xlu0 %1539
    %1543 = vset.pattern.permute.xlu0 0
    %1544 = vperm.xlu0 %1543, %v1318
    %v1545 = vpop.permute.xlu0 %1544
    %1548 = vset.pattern.permute.xlu0 0
    %1549 = vperm.xlu0 %1548, %v1319
    %v1550 = vpop.permute.xlu0 %1549
    %1553 = vset.pattern.permute.xlu0 0
    %1554 = vperm.xlu0 %1553, %v1320
    %v1555 = vpop.permute.xlu0 %1554
    %1558 = vset.pattern.permute.xlu0 0
    %1559 = vperm.xlu0 %1558, %v1321
    %v1560 = vpop.permute.xlu0 %1559
    %1563 = vset.pattern.permute.xlu0 0
    %1564 = vperm.xlu0 %1563, %v1322
    %v1565 = vpop.permute.xlu0 %1564
    %1568 = vset.pattern.permute.xlu0 0
    %1569 = vperm.xlu0 %1568, %v1323
    %v1570 = vpop.permute.xlu0 %1569
    %1573 = vset.pattern.permute.xlu0 0
    %1574 = vperm.xlu0 %1573, %v1324
    %v1575 = vpop.permute.xlu0 %1574
    %1578 = vset.pattern.permute.xlu0 0
    %1579 = vperm.xlu0 %1578, %v1325
    %v1580 = vpop.permute.xlu0 %1579
    %1583 = vset.pattern.permute.xlu0 0
    %1584 = vperm.xlu0 %1583, %v1326
    %v1585 = vpop.permute.xlu0 %1584
    %1588 = vset.pattern.permute.xlu0 0
    %1589 = vperm.xlu0 %1588, %v1327
    %v1590 = vpop.permute.xlu0 %1589
    %1593 = vset.pattern.permute.xlu0 0
    %1594 = vperm.xlu0 %1593, %v1328
    %v1595 = vpop.permute.xlu0 %1594
    %1598 = vset.pattern.permute.xlu0 0
    %1599 = vperm.xlu0 %1598, %v1329
    %v1600 = vpop.permute.xlu0 %1599
    %1603 = vset.pattern.permute.xlu0 0
    %1604 = vperm.xlu0 %1603, %v1330
    %v1605 = vpop.permute.xlu0 %1604
    %1608 = vset.pattern.permute.xlu0 0
    %1609 = vperm.xlu0 %1608, %v1331
    %v1610 = vpop.permute.xlu0 %1609
    %1613 = vset.pattern.permute.xlu0 0
    %1614 = vperm.xlu0 %1613, %v1332
    %v1615 = vpop.permute.xlu0 %1614
    %1618 = vset.pattern.permute.xlu0 0
    %1619 = vperm.xlu0 %1618, %v1333
    %v1620 = vpop.permute.xlu0 %1619
    %1623 = vset.pattern.permute.xlu0 0
    %1624 = vperm.xlu0 %1623, %v1334
    %v1625 = vpop.permute.xlu0 %1624
    %1628 = vset.pattern.permute.xlu0 0
    %1629 = vperm.xlu0 %1628, %v1335
    %v1630 = vpop.permute.xlu0 %1629
    %1633 = vset.pattern.permute.xlu0 0
    %1634 = vperm.xlu0 %1633, %v1336
    %v1635 = vpop.permute.xlu0 %1634
    %1638 = vset.pattern.permute.xlu0 0
    %1639 = vperm.xlu0 %1638, %v1337
    %v1640 = vpop.permute.xlu0 %1639
    %1643 = vset.pattern.permute.xlu0 0
    %1644 = vperm.xlu0 %1643, %v1338
    %v1645 = vpop.permute.xlu0 %1644
    %1648 = vset.pattern.permute.xlu0 0
    %1649 = vperm.xlu0 %1648, %v1339
    %v1650 = vpop.permute.xlu0 %1649
    %1653 = vset.pattern.permute.xlu0 0
    %1654 = vperm.xlu0 %1653, %v1340
    %v1655 = vpop.permute.xlu0 %1654
    %1658 = vset.pattern.permute.xlu0 0
    %1659 = vperm.xlu0 %1658, %v1341
    %v1660 = vpop.permute.xlu0 %1659
    %v1726 = vunpack.c.l.b16 %v1182
    %v1727 = vunpack.c.h.b16 %v1182
    %v1728 = vunpack.c.l.b16 %v1183
    %v1729 = vunpack.c.h.b16 %v1183
    %v1730 = vunpack.c.l.b16 %v1184
    %v1731 = vunpack.c.h.b16 %v1184
    %v1732 = vunpack.c.l.b16 %v1185
    %v1733 = vunpack.c.h.b16 %v1185
    %v1734 = vunpack.c.l.b16 %v1186
    %v1735 = vunpack.c.h.b16 %v1186
    %v1736 = vunpack.c.l.b16 %v1187
    %v1737 = vunpack.c.h.b16 %v1187
    %v1738 = vunpack.c.l.b16 %v1188
    %v1739 = vunpack.c.h.b16 %v1188
    %v1740 = vunpack.c.l.b16 %v1189
    %v1741 = vunpack.c.h.b16 %v1189
    %v1742 = vunpack.c.l.b16 %v1190
    %v1743 = vunpack.c.h.b16 %v1190
    %v1744 = vunpack.c.l.b16 %v1191
    %v1745 = vunpack.c.h.b16 %v1191
    %v1746 = vunpack.c.l.b16 %v1192
    %v1747 = vunpack.c.h.b16 %v1192
    %v1748 = vunpack.c.l.b16 %v1193
    %v1749 = vunpack.c.h.b16 %v1193
    %v1750 = vunpack.c.l.b16 %v1194
    %v1751 = vunpack.c.h.b16 %v1194
    %v1752 = vunpack.c.l.b16 %v1195
    %v1753 = vunpack.c.h.b16 %v1195
    %v1754 = vunpack.c.l.b16 %v1196
    %v1755 = vunpack.c.h.b16 %v1196
    %v1756 = vunpack.c.l.b16 %v1197
    %v1757 = vunpack.c.h.b16 %v1197
    %v1758 = vunpack.c.l.b16 %v1198
    %v1759 = vunpack.c.h.b16 %v1198
    %v1760 = vunpack.c.l.b16 %v1199
    %v1761 = vunpack.c.h.b16 %v1199
    %v1762 = vunpack.c.l.b16 %v1200
    %v1763 = vunpack.c.h.b16 %v1200
    %v1764 = vunpack.c.l.b16 %v1201
    %v1765 = vunpack.c.h.b16 %v1201
    %v1766 = vunpack.c.l.b16 %v1202
    %v1767 = vunpack.c.h.b16 %v1202
    %v1768 = vunpack.c.l.b16 %v1203
    %v1769 = vunpack.c.h.b16 %v1203
    %v1770 = vunpack.c.l.b16 %v1204
    %v1771 = vunpack.c.h.b16 %v1204
    %v1772 = vunpack.c.l.b16 %v1205
    %v1773 = vunpack.c.h.b16 %v1205
    %v1774 = vunpack.c.l.b16 %v1206
    %v1775 = vunpack.c.h.b16 %v1206
    %v1776 = vunpack.c.l.b16 %v1207
    %v1777 = vunpack.c.h.b16 %v1207
    %v1778 = vunpack.c.l.b16 %v1208
    %v1779 = vunpack.c.h.b16 %v1208
    %v1780 = vunpack.c.l.b16 %v1209
    %v1781 = vunpack.c.h.b16 %v1209
    %v1782 = vunpack.c.l.b16 %v1210
    %v1783 = vunpack.c.h.b16 %v1210
    %v1784 = vunpack.c.l.b16 %v1211
    %v1785 = vunpack.c.h.b16 %v1211
    %v1786 = vunpack.c.l.b16 %v1212
    %v1787 = vunpack.c.h.b16 %v1212
    %v1788 = vunpack.c.l.b16 %v1213
    %v1789 = vunpack.c.h.b16 %v1213
    %v1790 = vunpack.c.l.b16 %v1214
    %v1791 = vunpack.c.h.b16 %v1214
    %v1792 = vunpack.c.l.b16 %v1215
    %v1793 = vunpack.c.h.b16 %v1215
    %v1794 = vunpack.c.l.b16 %v1216
    %v1795 = vunpack.c.h.b16 %v1216
    %v1796 = vunpack.c.l.b16 %v1217
    %v1797 = vunpack.c.h.b16 %v1217
    %v1798 = vunpack.c.l.b16 %v1218
    %v1799 = vunpack.c.h.b16 %v1218
    %v1800 = vunpack.c.l.b16 %v1219
    %v1801 = vunpack.c.h.b16 %v1219
    %v1802 = vunpack.c.l.b16 %v1220
    %v1803 = vunpack.c.h.b16 %v1220
    %v1804 = vunpack.c.l.b16 %v1221
    %v1805 = vunpack.c.h.b16 %v1221
    %v1806 = vunpack.c.l.b16 %v1222
    %v1807 = vunpack.c.h.b16 %v1222
    %v1808 = vunpack.c.l.b16 %v1223
    %v1809 = vunpack.c.h.b16 %v1223
    %v1810 = vunpack.c.l.b16 %v1224
    %v1811 = vunpack.c.h.b16 %v1224
    %v1812 = vunpack.c.l.b16 %v1225
    %v1813 = vunpack.c.h.b16 %v1225
    %v1814 = vunpack.c.l.b16 %v1226
    %v1815 = vunpack.c.h.b16 %v1226
    %v1816 = vunpack.c.l.b16 %v1227
    %v1817 = vunpack.c.h.b16 %v1227
    %v1818 = vunpack.c.l.b16 %v1228
    %v1819 = vunpack.c.h.b16 %v1228
    %v1820 = vunpack.c.l.b16 %v1229
    %v1821 = vunpack.c.h.b16 %v1229
    %v1822 = vunpack.c.l.b16 %v1230
    %v1823 = vunpack.c.h.b16 %v1230
    %v1824 = vunpack.c.l.b16 %v1231
    %v1825 = vunpack.c.h.b16 %v1231
    %v1826 = vunpack.c.l.b16 %v1232
    %v1827 = vunpack.c.h.b16 %v1232
    %v1828 = vunpack.c.l.b16 %v1233
    %v1829 = vunpack.c.h.b16 %v1233
    %v1830 = vunpack.c.l.b16 %v1234
    %v1831 = vunpack.c.h.b16 %v1234
    %v1832 = vunpack.c.l.b16 %v1235
    %v1833 = vunpack.c.h.b16 %v1235
    %v1834 = vunpack.c.l.b16 %v1236
    %v1835 = vunpack.c.h.b16 %v1236
    %v1836 = vunpack.c.l.b16 %v1237
    %v1837 = vunpack.c.h.b16 %v1237
    %v1838 = vunpack.c.l.b16 %v1238
    %v1839 = vunpack.c.h.b16 %v1238
    %v1840 = vunpack.c.l.b16 %v1239
    %v1841 = vunpack.c.h.b16 %v1239
    %v1842 = vunpack.c.l.b16 %v1240
    %v1843 = vunpack.c.h.b16 %v1240
    %v1844 = vunpack.c.l.b16 %v1241
    %v1845 = vunpack.c.h.b16 %v1241
    %v1846 = vunpack.c.l.b16 %v1242
    %v1847 = vunpack.c.h.b16 %v1242
    %v1848 = vunpack.c.l.b16 %v1243
    %v1849 = vunpack.c.h.b16 %v1243
    %v1850 = vunpack.c.l.b16 %v1244
    %v1851 = vunpack.c.h.b16 %v1244
    %v1852 = vunpack.c.l.b16 %v1245
    %v1853 = vunpack.c.h.b16 %v1245
    %v1854 = vpack.c.b16 %v1728, %v1726
    %v1855 = vpack.c.b16 %v1729, %v1727
    %v1856 = vpack.c.b16 %v1732, %v1730
    %v1857 = vpack.c.b16 %v1733, %v1731
    %v1858 = vpack.c.b16 %v1736, %v1734
    %v1859 = vpack.c.b16 %v1737, %v1735
    %v1860 = vpack.c.b16 %v1740, %v1738
    %v1861 = vpack.c.b16 %v1741, %v1739
    %v1862 = vpack.c.b16 %v1744, %v1742
    %v1863 = vpack.c.b16 %v1745, %v1743
    %v1864 = vpack.c.b16 %v1748, %v1746
    %v1865 = vpack.c.b16 %v1749, %v1747
    %v1866 = vpack.c.b16 %v1752, %v1750
    %v1867 = vpack.c.b16 %v1753, %v1751
    %v1868 = vpack.c.b16 %v1756, %v1754
    %v1869 = vpack.c.b16 %v1757, %v1755
    %v1870 = vpack.c.b16 %v1760, %v1758
    %v1871 = vpack.c.b16 %v1761, %v1759
    %v1872 = vpack.c.b16 %v1764, %v1762
    %v1873 = vpack.c.b16 %v1765, %v1763
    %v1874 = vpack.c.b16 %v1768, %v1766
    %v1875 = vpack.c.b16 %v1769, %v1767
    %v1876 = vpack.c.b16 %v1772, %v1770
    %v1877 = vpack.c.b16 %v1773, %v1771
    %v1878 = vpack.c.b16 %v1776, %v1774
    %v1879 = vpack.c.b16 %v1777, %v1775
    %v1880 = vpack.c.b16 %v1780, %v1778
    %v1881 = vpack.c.b16 %v1781, %v1779
    %v1882 = vpack.c.b16 %v1784, %v1782
    %v1883 = vpack.c.b16 %v1785, %v1783
    %v1884 = vpack.c.b16 %v1788, %v1786
    %v1885 = vpack.c.b16 %v1789, %v1787
    %v1886 = vpack.c.b16 %v1792, %v1790
    %v1887 = vpack.c.b16 %v1793, %v1791
    %v1888 = vpack.c.b16 %v1796, %v1794
    %v1889 = vpack.c.b16 %v1797, %v1795
    %v1890 = vpack.c.b16 %v1800, %v1798
    %v1891 = vpack.c.b16 %v1801, %v1799
    %v1892 = vpack.c.b16 %v1804, %v1802
    %v1893 = vpack.c.b16 %v1805, %v1803
    %v1894 = vpack.c.b16 %v1808, %v1806
    %v1895 = vpack.c.b16 %v1809, %v1807
    %v1896 = vpack.c.b16 %v1812, %v1810
    %v1897 = vpack.c.b16 %v1813, %v1811
    %v1898 = vpack.c.b16 %v1816, %v1814
    %v1899 = vpack.c.b16 %v1817, %v1815
    %v1900 = vpack.c.b16 %v1820, %v1818
    %v1901 = vpack.c.b16 %v1821, %v1819
    %v1902 = vpack.c.b16 %v1824, %v1822
    %v1903 = vpack.c.b16 %v1825, %v1823
    %v1904 = vpack.c.b16 %v1828, %v1826
    %v1905 = vpack.c.b16 %v1829, %v1827
    %v1906 = vpack.c.b16 %v1832, %v1830
    %v1907 = vpack.c.b16 %v1833, %v1831
    %v1908 = vpack.c.b16 %v1836, %v1834
    %v1909 = vpack.c.b16 %v1837, %v1835
    %v1910 = vpack.c.b16 %v1840, %v1838
    %v1911 = vpack.c.b16 %v1841, %v1839
    %v1912 = vpack.c.b16 %v1844, %v1842
    %v1913 = vpack.c.b16 %v1845, %v1843
    %v1914 = vpack.c.b16 %v1848, %v1846
    %v1915 = vpack.c.b16 %v1849, %v1847
    %v1916 = vpack.c.b16 %v1852, %v1850
    %v1917 = vpack.c.b16 %v1853, %v1851
    %1982 = vmatprep.subr.bf16.mxu0 %v1247
    %1983 = vmatpush1.bf16.msra.mxu0 %v1246
    %1984 = vmatprep.subr.bf16.mxu0 %v1249
    %1985 = vmatpush1.bf16.msra.mxu0 %v1248
    %1986 = vmatprep.subr.bf16.mxu0 %v1251
    %1987 = vmatpush1.bf16.msra.mxu0 %v1250
    %1988 = vmatprep.subr.bf16.mxu0 %v1253
    %1989 = vmatpush1.bf16.msra.mxu0 %v1252
    %1990 = vmatprep.subr.bf16.mxu0 %v1255
    %1991 = vmatpush1.bf16.msra.mxu0 %v1254
    %1992 = vmatprep.subr.bf16.mxu0 %v1257
    %1993 = vmatpush1.bf16.msra.mxu0 %v1256
    %1994 = vmatprep.subr.bf16.mxu0 %v1259
    %1995 = vmatpush1.bf16.msra.mxu0 %v1258
    %1996 = vmatprep.subr.bf16.mxu0 %v1261
    %1997 = vmatpush1.bf16.msra.mxu0 %v1260
    %1998 = vmatprep.subr.bf16.mxu0 %v1263
    %1999 = vmatpush1.bf16.msra.mxu0 %v1262
    %2000 = vmatprep.subr.bf16.mxu0 %v1265
    %2001 = vmatpush1.bf16.msra.mxu0 %v1264
    %2002 = vmatprep.subr.bf16.mxu0 %v1267
    %2003 = vmatpush1.bf16.msra.mxu0 %v1266
    %2004 = vmatprep.subr.bf16.mxu0 %v1269
    %2005 = vmatpush1.bf16.msra.mxu0 %v1268
    %2006 = vmatprep.subr.bf16.mxu0 %v1271
    %2007 = vmatpush1.bf16.msra.mxu0 %v1270
    %2008 = vmatprep.subr.bf16.mxu0 %v1273
    %2009 = vmatpush1.bf16.msra.mxu0 %v1272
    %2010 = vmatprep.subr.bf16.mxu0 %v1275
    %2011 = vmatpush1.bf16.msra.mxu0 %v1274
    %2012 = vmatprep.subr.bf16.mxu0 %v1277
    %2013 = vmatpush1.bf16.msra.mxu0 %v1276
    %2014 = vmatprep.mubr.bf16.mxu0 %v1855
    %2015 = vmatmul.mubr.bf16.gmra.mrb[0].mxu0 %v1854
    %v2016 = vpop.f32.mrb[0].mxu0
    %v2017 = vadd.f32 %v1345, %v2016
    %v2018 = vpop.f32.mrb[0].mxu0
    %v2019 = vadd.f32 %v1345, %v2018
    %v2020 = vpop.f32.mrb[0].mxu0
    %v2021 = vadd.f32 %v1350, %v2020
    %v2022 = vpop.f32.mrb[0].mxu0
    %v2023 = vadd.f32 %v1350, %v2022
    %2024 = vmatprep.mubr.bf16.mxu0 %v1857
    %2025 = vmatmul.mubr.bf16.gmra.mrb[0].mxu0 %v1856
    %v2026 = vpop.f32.mrb[0].mxu0
    %v2027 = vadd.f32 %v1355, %v2026
    %v2028 = vpop.f32.mrb[0].mxu0
    %v2029 = vadd.f32 %v1355, %v2028
    %v2030 = vpop.f32.mrb[0].mxu0
    %v2031 = vadd.f32 %v1360, %v2030
    %v2032 = vpop.f32.mrb[0].mxu0
    %v2033 = vadd.f32 %v1360, %v2032
    %2034 = vmatprep.mubr.bf16.mxu0 %v1859
    %2035 = vmatmul.mubr.bf16.gmra.mrb[0].mxu0 %v1858
    %v2036 = vpop.f32.mrb[0].mxu0
    %v2037 = vadd.f32 %v1365, %v2036
    %v2038 = vpop.f32.mrb[0].mxu0
    %v2039 = vadd.f32 %v1365, %v2038
    %v2040 = vpop.f32.mrb[0].mxu0
    %v2041 = vadd.f32 %v1370, %v2040
    %v2042 = vpop.f32.mrb[0].mxu0
    %v2043 = vadd.f32 %v1370, %v2042
    %2044 = vmatprep.mubr.bf16.mxu0 %v1861
    %2045 = vmatmul.mubr.bf16.gmra.mrb[0].mxu0 %v1860
    %v2046 = vpop.f32.mrb[0].mxu0
    %v2047 = vadd.f32 %v1375, %v2046
    %v2048 = vpop.f32.mrb[0].mxu0
    %v2049 = vadd.f32 %v1375, %v2048
    %v2050 = vpop.f32.mrb[0].mxu0
    %v2051 = vadd.f32 %v1380, %v2050
    %v2052 = vpop.f32.mrb[0].mxu0
    %v2053 = vadd.f32 %v1380, %v2052
    %2054 = vmatprep.mubr.bf16.mxu0 %v1863
    %2055 = vmatmul.mubr.bf16.gmra.mrb[0].mxu0 %v1862
    %v2056 = vpop.f32.mrb[0].mxu0
    %v2057 = vadd.f32 %v1385, %v2056
    %v2058 = vpop.f32.mrb[0].mxu0
    %v2059 = vadd.f32 %v1385, %v2058
    %v2060 = vpop.f32.mrb[0].mxu0
    %v2061 = vadd.f32 %v1390, %v2060
    %v2062 = vpop.f32.mrb[0].mxu0
    %v2063 = vadd.f32 %v1390, %v2062
    %2064 = vmatprep.mubr.bf16.mxu0 %v1865
    %2065 = vmatmul.mubr.bf16.gmra.mrb[0].mxu0 %v1864
    %v2066 = vpop.f32.mrb[0].mxu0
    %v2067 = vadd.f32 %v1395, %v2066
    %v2068 = vpop.f32.mrb[0].mxu0
    %v2069 = vadd.f32 %v1395, %v2068
    %v2070 = vpop.f32.mrb[0].mxu0
    %v2071 = vadd.f32 %v1400, %v2070
    %v2072 = vpop.f32.mrb[0].mxu0
    %v2073 = vadd.f32 %v1400, %v2072
    %2074 = vmatprep.mubr.bf16.mxu0 %v1867
    %2075 = vmatmul.mubr.bf16.gmra.mrb[0].mxu0 %v1866
    %v2076 = vpop.f32.mrb[0].mxu0
    %v2077 = vadd.f32 %v1405, %v2076
    %v2078 = vpop.f32.mrb[0].mxu0
    %v2079 = vadd.f32 %v1405, %v2078
    %v2080 = vpop.f32.mrb[0].mxu0
    %v2081 = vadd.f32 %v1410, %v2080
    %v2082 = vpop.f32.mrb[0].mxu0
    %v2083 = vadd.f32 %v1410, %v2082
    %2084 = vmatprep.mubr.bf16.mxu0 %v1869
    %2085 = vmatmul.mubr.bf16.gmra.mrb[0].mxu0 %v1868
    %v2086 = vpop.f32.mrb[0].mxu0
    %v2087 = vadd.f32 %v1415, %v2086
    %v2088 = vpop.f32.mrb[0].mxu0
    %v2089 = vadd.f32 %v1415, %v2088
    %v2090 = vpop.f32.mrb[0].mxu0
    %v2091 = vadd.f32 %v1420, %v2090
    %v2092 = vpop.f32.mrb[0].mxu0
    %v2093 = vadd.f32 %v1420, %v2092
    %2094 = vmatprep.mubr.bf16.mxu0 %v1871
    %2095 = vmatmul.mubr.bf16.gmra.mrb[0].mxu0 %v1870
    %v2096 = vpop.f32.mrb[0].mxu0
    %v2097 = vadd.f32 %v1425, %v2096
    %v2098 = vpop.f32.mrb[0].mxu0
    %v2099 = vadd.f32 %v1425, %v2098
    %v2100 = vpop.f32.mrb[0].mxu0
    %v2101 = vadd.f32 %v1430, %v2100
    %v2102 = vpop.f32.mrb[0].mxu0
    %v2103 = vadd.f32 %v1430, %v2102
    %2104 = vmatprep.mubr.bf16.mxu0 %v1873
    %2105 = vmatmul.mubr.bf16.gmra.mrb[0].mxu0 %v1872
    %v2106 = vpop.f32.mrb[0].mxu0
    %v2107 = vadd.f32 %v1435, %v2106
    %v2108 = vpop.f32.mrb[0].mxu0
    %v2109 = vadd.f32 %v1435, %v2108
    %v2110 = vpop.f32.mrb[0].mxu0
    %v2111 = vadd.f32 %v1440, %v2110
    %v2112 = vpop.f32.mrb[0].mxu0
    %v2113 = vadd.f32 %v1440, %v2112
    %2114 = vmatprep.mubr.bf16.mxu0 %v1875
    %2115 = vmatmul.mubr.bf16.gmra.mrb[0].mxu0 %v1874
    %v2116 = vpop.f32.mrb[0].mxu0
    %v2117 = vadd.f32 %v1445, %v2116
    %v2118 = vpop.f32.mrb[0].mxu0
    %v2119 = vadd.f32 %v1445, %v2118
    %v2120 = vpop.f32.mrb[0].mxu0
    %v2121 = vadd.f32 %v1450, %v2120
    %v2122 = vpop.f32.mrb[0].mxu0
    %v2123 = vadd.f32 %v1450, %v2122
    %2124 = vmatprep.mubr.bf16.mxu0 %v1877
    %2125 = vmatmul.mubr.bf16.gmra.mrb[0].mxu0 %v1876
    %v2126 = vpop.f32.mrb[0].mxu0
    %v2127 = vadd.f32 %v1455, %v2126
    %v2128 = vpop.f32.mrb[0].mxu0
    %v2129 = vadd.f32 %v1455, %v2128
    %v2130 = vpop.f32.mrb[0].mxu0
    %v2131 = vadd.f32 %v1460, %v2130
    %v2132 = vpop.f32.mrb[0].mxu0
    %v2133 = vadd.f32 %v1460, %v2132
    %2134 = vmatprep.mubr.bf16.mxu0 %v1879
    %2135 = vmatmul.mubr.bf16.gmra.mrb[0].mxu0 %v1878
    %v2136 = vpop.f32.mrb[0].mxu0
    %v2137 = vadd.f32 %v1465, %v2136
    %v2138 = vpop.f32.mrb[0].mxu0
    %v2139 = vadd.f32 %v1465, %v2138
    %v2140 = vpop.f32.mrb[0].mxu0
    %v2141 = vadd.f32 %v1470, %v2140
    %v2142 = vpop.f32.mrb[0].mxu0
    %v2143 = vadd.f32 %v1470, %v2142
    %2144 = vmatprep.mubr.bf16.mxu0 %v1881
    %2145 = vmatmul.mubr.bf16.gmra.mrb[0].mxu0 %v1880
    %v2146 = vpop.f32.mrb[0].mxu0
    %v2147 = vadd.f32 %v1475, %v2146
    %v2148 = vpop.f32.mrb[0].mxu0
    %v2149 = vadd.f32 %v1475, %v2148
    %v2150 = vpop.f32.mrb[0].mxu0
    %v2151 = vadd.f32 %v1480, %v2150
    %v2152 = vpop.f32.mrb[0].mxu0
    %v2153 = vadd.f32 %v1480, %v2152
    %2154 = vmatprep.mubr.bf16.mxu0 %v1883
    %2155 = vmatmul.mubr.bf16.gmra.mrb[0].mxu0 %v1882
    %v2156 = vpop.f32.mrb[0].mxu0
    %v2157 = vadd.f32 %v1485, %v2156
    %v2158 = vpop.f32.mrb[0].mxu0
    %v2159 = vadd.f32 %v1485, %v2158
    %v2160 = vpop.f32.mrb[0].mxu0
    %v2161 = vadd.f32 %v1490, %v2160
    %v2162 = vpop.f32.mrb[0].mxu0
    %v2163 = vadd.f32 %v1490, %v2162
    %2164 = vmatprep.mubr.bf16.mxu0 %v1885
    %2165 = vmatmul.mubr.bf16.gmra.mrb[0].mxu0 %v1884
    %v2166 = vpop.f32.mrb[0].mxu0
    %v2167 = vadd.f32 %v1495, %v2166
    %v2168 = vpop.f32.mrb[0].mxu0
    %v2169 = vadd.f32 %v1495, %v2168
    %v2170 = vpop.f32.mrb[0].mxu0
    %v2171 = vadd.f32 %v1500, %v2170
    %v2172 = vpop.f32.mrb[0].mxu0
    %v2173 = vadd.f32 %v1500, %v2172
    %2174 = vmatprep.mubr.bf16.mxu0 %v1887
    %2175 = vmatmul.mubr.bf16.gmra.mrb[0].mxu0 %v1886
    %v2176 = vpop.f32.mrb[0].mxu0
    %v2177 = vadd.f32 %v1505, %v2176
    %v2178 = vpop.f32.mrb[0].mxu0
    %v2179 = vadd.f32 %v1505, %v2178
    %v2180 = vpop.f32.mrb[0].mxu0
    %v2181 = vadd.f32 %v1510, %v2180
    %v2182 = vpop.f32.mrb[0].mxu0
    %v2183 = vadd.f32 %v1510, %v2182
    %2184 = vmatprep.mubr.bf16.mxu0 %v1889
    %2185 = vmatmul.mubr.bf16.gmra.mrb[0].mxu0 %v1888
    %v2186 = vpop.f32.mrb[0].mxu0
    %v2187 = vadd.f32 %v1515, %v2186
    %v2188 = vpop.f32.mrb[0].mxu0
    %v2189 = vadd.f32 %v1515, %v2188
    %v2190 = vpop.f32.mrb[0].mxu0
    %v2191 = vadd.f32 %v1520, %v2190
    %v2192 = vpop.f32.mrb[0].mxu0
    %v2193 = vadd.f32 %v1520, %v2192
    %2194 = vmatprep.mubr.bf16.mxu0 %v1891
    %2195 = vmatmul.mubr.bf16.gmra.mrb[0].mxu0 %v1890
    %v2196 = vpop.f32.mrb[0].mxu0
    %v2197 = vadd.f32 %v1525, %v2196
    %v2198 = vpop.f32.mrb[0].mxu0
    %v2199 = vadd.f32 %v1525, %v2198
    %v2200 = vpop.f32.mrb[0].mxu0
    %v2201 = vadd.f32 %v1530, %v2200
    %v2202 = vpop.f32.mrb[0].mxu0
    %v2203 = vadd.f32 %v1530, %v2202
    %2204 = vmatprep.mubr.bf16.mxu0 %v1893
    %2205 = vmatmul.mubr.bf16.gmra.mrb[0].mxu0 %v1892
    %v2206 = vpop.f32.mrb[0].mxu0
    %v2207 = vadd.f32 %v1535, %v2206
    %v2208 = vpop.f32.mrb[0].mxu0
    %v2209 = vadd.f32 %v1535, %v2208
    %v2210 = vpop.f32.mrb[0].mxu0
    %v2211 = vadd.f32 %v1540, %v2210
    %v2212 = vpop.f32.mrb[0].mxu0
    %v2213 = vadd.f32 %v1540, %v2212
    %2214 = vmatprep.mubr.bf16.mxu0 %v1895
    %2215 = vmatmul.mubr.bf16.gmra.mrb[0].mxu0 %v1894
    %v2216 = vpop.f32.mrb[0].mxu0
    %v2217 = vadd.f32 %v1545, %v2216
    %v2218 = vpop.f32.mrb[0].mxu0
    %v2219 = vadd.f32 %v1545, %v2218
    %v2220 = vpop.f32.mrb[0].mxu0
    %v2221 = vadd.f32 %v1550, %v2220
    %v2222 = vpop.f32.mrb[0].mxu0
    %v2223 = vadd.f32 %v1550, %v2222
    %2224 = vmatprep.mubr.bf16.mxu0 %v1897
    %2225 = vmatmul.mubr.bf16.gmra.mrb[0].mxu0 %v1896
    %v2226 = vpop.f32.mrb[0].mxu0
    %v2227 = vadd.f32 %v1555, %v2226
    %v2228 = vpop.f32.mrb[0].mxu0
    %v2229 = vadd.f32 %v1555, %v2228
    %v2230 = vpop.f32.mrb[0].mxu0
    %v2231 = vadd.f32 %v1560, %v2230
    %v2232 = vpop.f32.mrb[0].mxu0
    %v2233 = vadd.f32 %v1560, %v2232
    %2234 = vmatprep.mubr.bf16.mxu0 %v1899
    %2235 = vmatmul.mubr.bf16.gmra.mrb[0].mxu0 %v1898
    %v2236 = vpop.f32.mrb[0].mxu0
    %v2237 = vadd.f32 %v1565, %v2236
    %v2238 = vpop.f32.mrb[0].mxu0
    %v2239 = vadd.f32 %v1565, %v2238
    %v2240 = vpop.f32.mrb[0].mxu0
    %v2241 = vadd.f32 %v1570, %v2240
    %v2242 = vpop.f32.mrb[0].mxu0
    %v2243 = vadd.f32 %v1570, %v2242
    %2244 = vmatprep.mubr.bf16.mxu0 %v1901
    %2245 = vmatmul.mubr.bf16.gmra.mrb[0].mxu0 %v1900
    %v2246 = vpop.f32.mrb[0].mxu0
    %v2247 = vadd.f32 %v1575, %v2246
    %v2248 = vpop.f32.mrb[0].mxu0
    %v2249 = vadd.f32 %v1575, %v2248
    %v2250 = vpop.f32.mrb[0].mxu0
    %v2251 = vadd.f32 %v1580, %v2250
    %v2252 = vpop.f32.mrb[0].mxu0
    %v2253 = vadd.f32 %v1580, %v2252
    %2254 = vmatprep.mubr.bf16.mxu0 %v1903
    %2255 = vmatmul.mubr.bf16.gmra.mrb[0].mxu0 %v1902
    %v2256 = vpop.f32.mrb[0].mxu0
    %v2257 = vadd.f32 %v1585, %v2256
    %v2258 = vpop.f32.mrb[0].mxu0
    %v2259 = vadd.f32 %v1585, %v2258
    %v2260 = vpop.f32.mrb[0].mxu0
    %v2261 = vadd.f32 %v1590, %v2260
    %v2262 = vpop.f32.mrb[0].mxu0
    %v2263 = vadd.f32 %v1590, %v2262
    %2264 = vmatprep.mubr.bf16.mxu0 %v1905
    %2265 = vmatmul.mubr.bf16.gmra.mrb[0].mxu0 %v1904
    %v2266 = vpop.f32.mrb[0].mxu0
    %v2267 = vadd.f32 %v1595, %v2266
    %v2268 = vpop.f32.mrb[0].mxu0
    %v2269 = vadd.f32 %v1595, %v2268
    %v2270 = vpop.f32.mrb[0].mxu0
    %v2271 = vadd.f32 %v1600, %v2270
    %v2272 = vpop.f32.mrb[0].mxu0
    %v2273 = vadd.f32 %v1600, %v2272
    %2274 = vmatprep.mubr.bf16.mxu0 %v1907
    %2275 = vmatmul.mubr.bf16.gmra.mrb[0].mxu0 %v1906
    %v2276 = vpop.f32.mrb[0].mxu0
    %v2277 = vadd.f32 %v1605, %v2276
    %v2278 = vpop.f32.mrb[0].mxu0
    %v2279 = vadd.f32 %v1605, %v2278
    %v2280 = vpop.f32.mrb[0].mxu0
    %v2281 = vadd.f32 %v1610, %v2280
    %v2282 = vpop.f32.mrb[0].mxu0
    %v2283 = vadd.f32 %v1610, %v2282
    %2284 = vmatprep.mubr.bf16.mxu0 %v1909
    %2285 = vmatmul.mubr.bf16.gmra.mrb[0].mxu0 %v1908
    %v2286 = vpop.f32.mrb[0].mxu0
    %v2287 = vadd.f32 %v1615, %v2286
    %v2288 = vpop.f32.mrb[0].mxu0
    %v2289 = vadd.f32 %v1615, %v2288
    %v2290 = vpop.f32.mrb[0].mxu0
    %v2291 = vadd.f32 %v1620, %v2290
    %v2292 = vpop.f32.mrb[0].mxu0
    %v2293 = vadd.f32 %v1620, %v2292
    %2294 = vmatprep.mubr.bf16.mxu0 %v1911
    %2295 = vmatmul.mubr.bf16.gmra.mrb[0].mxu0 %v1910
    %v2296 = vpop.f32.mrb[0].mxu0
    %v2297 = vadd.f32 %v1625, %v2296
    %v2298 = vpop.f32.mrb[0].mxu0
    %v2299 = vadd.f32 %v1625, %v2298
    %v2300 = vpop.f32.mrb[0].mxu0
    %v2301 = vadd.f32 %v1630, %v2300
    %v2302 = vpop.f32.mrb[0].mxu0
    %v2303 = vadd.f32 %v1630, %v2302
    %2304 = vmatprep.mubr.bf16.mxu0 %v1913
    %2305 = vmatmul.mubr.bf16.gmra.mrb[0].mxu0 %v1912
    %v2306 = vpop.f32.mrb[0].mxu0
    %v2307 = vadd.f32 %v1635, %v2306
    %v2308 = vpop.f32.mrb[0].mxu0
    %v2309 = vadd.f32 %v1635, %v2308
    %v2310 = vpop.f32.mrb[0].mxu0
    %v2311 = vadd.f32 %v1640, %v2310
    %v2312 = vpop.f32.mrb[0].mxu0
    %v2313 = vadd.f32 %v1640, %v2312
    %2314 = vmatprep.mubr.bf16.mxu0 %v1915
    %2315 = vmatmul.mubr.bf16.gmra.mrb[0].mxu0 %v1914
    %v2316 = vpop.f32.mrb[0].mxu0
    %v2317 = vadd.f32 %v1645, %v2316
    %v2318 = vpop.f32.mrb[0].mxu0
    %v2319 = vadd.f32 %v1645, %v2318
    %v2320 = vpop.f32.mrb[0].mxu0
    %v2321 = vadd.f32 %v1650, %v2320
    %v2322 = vpop.f32.mrb[0].mxu0
    %v2323 = vadd.f32 %v1650, %v2322
    %2324 = vmatprep.mubr.bf16.mxu0 %v1917
    %2325 = vmatmul.mubr.bf16.gmra.mrb[0].mxu0 %v1916
    %v2326 = vpop.f32.mrb[0].mxu0
    %v2327 = vadd.f32 %v1655, %v2326
    %v2328 = vpop.f32.mrb[0].mxu0
    %v2329 = vadd.f32 %v1655, %v2328
    %v2330 = vpop.f32.mrb[0].mxu0
    %v2331 = vadd.f32 %v1660, %v2330
    %v2332 = vpop.f32.mrb[0].mxu0
    %v2333 = vadd.f32 %v1660, %v2332
    %2334 = vdwg.mxu0
    %v2335 = vpack.c.bf16 %v2021, %v2017
    %v2336 = vpack.c.bf16 %v2023, %v2019
    %v2337 = vpack.c.bf16 %v2031, %v2027
    %v2338 = vpack.c.bf16 %v2033, %v2029
    %v2339 = vpack.c.bf16 %v2041, %v2037
    %v2340 = vpack.c.bf16 %v2043, %v2039
    %v2341 = vpack.c.bf16 %v2051, %v2047
    %v2342 = vpack.c.bf16 %v2053, %v2049
    %v2343 = vpack.c.bf16 %v2061, %v2057
    %v2344 = vpack.c.bf16 %v2063, %v2059
    %v2345 = vpack.c.bf16 %v2071, %v2067
    %v2346 = vpack.c.bf16 %v2073, %v2069
    %v2347 = vpack.c.bf16 %v2081, %v2077
    %v2348 = vpack.c.bf16 %v2083, %v2079
    %v2349 = vpack.c.bf16 %v2091, %v2087
    %v2350 = vpack.c.bf16 %v2093, %v2089
    %v2351 = vpack.c.bf16 %v2101, %v2097
    %v2352 = vpack.c.bf16 %v2103, %v2099
    %v2353 = vpack.c.bf16 %v2111, %v2107
    %v2354 = vpack.c.bf16 %v2113, %v2109
    %v2355 = vpack.c.bf16 %v2121, %v2117
    %v2356 = vpack.c.bf16 %v2123, %v2119
    %v2357 = vpack.c.bf16 %v2131, %v2127
    %v2358 = vpack.c.bf16 %v2133, %v2129
    %v2359 = vpack.c.bf16 %v2141, %v2137
    %v2360 = vpack.c.bf16 %v2143, %v2139
    %v2361 = vpack.c.bf16 %v2151, %v2147
    %v2362 = vpack.c.bf16 %v2153, %v2149
    %v2363 = vpack.c.bf16 %v2161, %v2157
    %v2364 = vpack.c.bf16 %v2163, %v2159
    %v2365 = vpack.c.bf16 %v2171, %v2167
    %v2366 = vpack.c.bf16 %v2173, %v2169
    %v2367 = vpack.c.bf16 %v2181, %v2177
    %v2368 = vpack.c.bf16 %v2183, %v2179
    %v2369 = vpack.c.bf16 %v2191, %v2187
    %v2370 = vpack.c.bf16 %v2193, %v2189
    %v2371 = vpack.c.bf16 %v2201, %v2197
    %v2372 = vpack.c.bf16 %v2203, %v2199
    %v2373 = vpack.c.bf16 %v2211, %v2207
    %v2374 = vpack.c.bf16 %v2213, %v2209
    %v2375 = vpack.c.bf16 %v2221, %v2217
    %v2376 = vpack.c.bf16 %v2223, %v2219
    %v2377 = vpack.c.bf16 %v2231, %v2227
    %v2378 = vpack.c.bf16 %v2233, %v2229
    %v2379 = vpack.c.bf16 %v2241, %v2237
    %v2380 = vpack.c.bf16 %v2243, %v2239
    %v2381 = vpack.c.bf16 %v2251, %v2247
    %v2382 = vpack.c.bf16 %v2253, %v2249
    %v2383 = vpack.c.bf16 %v2261, %v2257
    %v2384 = vpack.c.bf16 %v2263, %v2259
    %v2385 = vpack.c.bf16 %v2271, %v2267
    %v2386 = vpack.c.bf16 %v2273, %v2269
    %v2387 = vpack.c.bf16 %v2281, %v2277
    %v2388 = vpack.c.bf16 %v2283, %v2279
    %v2389 = vpack.c.bf16 %v2291, %v2287
    %v2390 = vpack.c.bf16 %v2293, %v2289
    %v2391 = vpack.c.bf16 %v2301, %v2297
    %v2392 = vpack.c.bf16 %v2303, %v2299
    %v2393 = vpack.c.bf16 %v2311, %v2307
    %v2394 = vpack.c.bf16 %v2313, %v2309
    %v2395 = vpack.c.bf16 %v2321, %v2317
    %v2396 = vpack.c.bf16 %v2323, %v2319
    %v2397 = vpack.c.bf16 %v2331, %v2327
    %v2398 = vpack.c.bf16 %v2333, %v2329
    %v2399 = vmul.bf16 %v2335, 1056980736
    %v2400 = vmul.bf16 %v2336, 1056980736
    %v2401 = vmul.bf16 %v2337, 1056980736
    %v2402 = vmul.bf16 %v2338, 1056980736
    %v2403 = vmul.bf16 %v2339, 1056980736
    %v2404 = vmul.bf16 %v2340, 1056980736
    %v2405 = vmul.bf16 %v2341, 1056980736
    %v2406 = vmul.bf16 %v2342, 1056980736
    %v2407 = vmul.bf16 %v2343, 1056980736
    %v2408 = vmul.bf16 %v2344, 1056980736
    %v2409 = vmul.bf16 %v2345, 1056980736
    %v2410 = vmul.bf16 %v2346, 1056980736
    %v2411 = vmul.bf16 %v2347, 1056980736
    %v2412 = vmul.bf16 %v2348, 1056980736
    %v2413 = vmul.bf16 %v2349, 1056980736
    %v2414 = vmul.bf16 %v2350, 1056980736
    %v2415 = vmul.bf16 %v2351, 1056980736
    %v2416 = vmul.bf16 %v2352, 1056980736
    %v2417 = vmul.bf16 %v2353, 1056980736
    %v2418 = vmul.bf16 %v2354, 1056980736
    %v2419 = vmul.bf16 %v2355, 1056980736
    %v2420 = vmul.bf16 %v2356, 1056980736
    %v2421 = vmul.bf16 %v2357, 1056980736
    %v2422 = vmul.bf16 %v2358, 1056980736
    %v2423 = vmul.bf16 %v2359, 1056980736
    %v2424 = vmul.bf16 %v2360, 1056980736
    %v2425 = vmul.bf16 %v2361, 1056980736
    %v2426 = vmul.bf16 %v2362, 1056980736
    %v2427 = vmul.bf16 %v2363, 1056980736
    %v2428 = vmul.bf16 %v2364, 1056980736
    %v2429 = vmul.bf16 %v2365, 1056980736
    %v2430 = vmul.bf16 %v2366, 1056980736
    %v2431 = vmul.bf16 %v2367, 1056980736
    %v2432 = vmul.bf16 %v2368, 1056980736
    %v2433 = vmul.bf16 %v2369, 1056980736
    %v2434 = vmul.bf16 %v2370, 1056980736
    %v2435 = vmul.bf16 %v2371, 1056980736
    %v2436 = vmul.bf16 %v2372, 1056980736
    %v2437 = vmul.bf16 %v2373, 1056980736
    %v2438 = vmul.bf16 %v2374, 1056980736
    %v2439 = vmul.bf16 %v2375, 1056980736
    %v2440 = vmul.bf16 %v2376, 1056980736
    %v2441 = vmul.bf16 %v2377, 1056980736
    %v2442 = vmul.bf16 %v2378, 1056980736
    %v2443 = vmul.bf16 %v2379, 1056980736
    %v2444 = vmul.bf16 %v2380, 1056980736
    %v2445 = vmul.bf16 %v2381, 1056980736
    %v2446 = vmul.bf16 %v2382, 1056980736
    %v2447 = vmul.bf16 %v2383, 1056980736
    %v2448 = vmul.bf16 %v2384, 1056980736
    %v2449 = vmul.bf16 %v2385, 1056980736
    %v2450 = vmul.bf16 %v2386, 1056980736
    %v2451 = vmul.bf16 %v2387, 1056980736
    %v2452 = vmul.bf16 %v2388, 1056980736
    %v2453 = vmul.bf16 %v2389, 1056980736
    %v2454 = vmul.bf16 %v2390, 1056980736
    %v2455 = vmul.bf16 %v2391, 1056980736
    %v2456 = vmul.bf16 %v2392, 1056980736
    %v2457 = vmul.bf16 %v2393, 1056980736
    %v2458 = vmul.bf16 %v2394, 1056980736
    %v2459 = vmul.bf16 %v2395, 1056980736
    %v2460 = vmul.bf16 %v2396, 1056980736
    %v2461 = vmul.bf16 %v2397, 1056980736
    %v2462 = vmul.bf16 %v2398, 1056980736
    %v2463 = vmul.bf16 %v2335, 1027030327
    %v2464 = vmul.bf16 %v2336, 1027030327
    %v2465 = vmul.bf16 %v2337, 1027030327
    %v2466 = vmul.bf16 %v2338, 1027030327
    %v2467 = vmul.bf16 %v2339, 1027030327
    %v2468 = vmul.bf16 %v2340, 1027030327
    %v2469 = vmul.bf16 %v2341, 1027030327
    %v2470 = vmul.bf16 %v2342, 1027030327
    %v2471 = vmul.bf16 %v2343, 1027030327
    %v2472 = vmul.bf16 %v2344, 1027030327
    %v2473 = vmul.bf16 %v2345, 1027030327
    %v2474 = vmul.bf16 %v2346, 1027030327
    %v2475 = vmul.bf16 %v2347, 1027030327
    %v2476 = vmul.bf16 %v2348, 1027030327
    %v2477 = vmul.bf16 %v2349, 1027030327
    %v2478 = vmul.bf16 %v2350, 1027030327
    %v2479 = vmul.bf16 %v2351, 1027030327
    %v2480 = vmul.bf16 %v2352, 1027030327
    %v2481 = vmul.bf16 %v2353, 1027030327
    %v2482 = vmul.bf16 %v2354, 1027030327
    %v2483 = vmul.bf16 %v2355, 1027030327
    %v2484 = vmul.bf16 %v2356, 1027030327
    %v2485 = vmul.bf16 %v2357, 1027030327
    %v2486 = vmul.bf16 %v2358, 1027030327
    %v2487 = vmul.bf16 %v2359, 1027030327
    %v2488 = vmul.bf16 %v2360, 1027030327
    %v2489 = vmul.bf16 %v2361, 1027030327
    %v2490 = vmul.bf16 %v2362, 1027030327
    %v2491 = vmul.bf16 %v2363, 1027030327
    %v2492 = vmul.bf16 %v2364, 1027030327
    %v2493 = vmul.bf16 %v2365, 1027030327
    %v2494 = vmul.bf16 %v2366, 1027030327
    %v2495 = vmul.bf16 %v2367, 1027030327
    %v2496 = vmul.bf16 %v2368, 1027030327
    %v2497 = vmul.bf16 %v2369, 1027030327
    %v2498 = vmul.bf16 %v2370, 1027030327
    %v2499 = vmul.bf16 %v2371, 1027030327
    %v2500 = vmul.bf16 %v2372, 1027030327
    %v2501 = vmul.bf16 %v2373, 1027030327
    %v2502 = vmul.bf16 %v2374, 1027030327
    %v2503 = vmul.bf16 %v2375, 1027030327
    %v2504 = vmul.bf16 %v2376, 1027030327
    %v2505 = vmul.bf16 %v2377, 1027030327
    %v2506 = vmul.bf16 %v2378, 1027030327
    %v2507 = vmul.bf16 %v2379, 1027030327
    %v2508 = vmul.bf16 %v2380, 1027030327
    %v2509 = vmul.bf16 %v2381, 1027030327
    %v2510 = vmul.bf16 %v2382, 1027030327
    %v2511 = vmul.bf16 %v2383, 1027030327
    %v2512 = vmul.bf16 %v2384, 1027030327
    %v2513 = vmul.bf16 %v2385, 1027030327
    %v2514 = vmul.bf16 %v2386, 1027030327
    %v2515 = vmul.bf16 %v2387, 1027030327
    %v2516 = vmul.bf16 %v2388, 1027030327
    %v2517 = vmul.bf16 %v2389, 1027030327
    %v2518 = vmul.bf16 %v2390, 1027030327
    %v2519 = vmul.bf16 %v2391, 1027030327
    %v2520 = vmul.bf16 %v2392, 1027030327
    %v2521 = vmul.bf16 %v2393, 1027030327
    %v2522 = vmul.bf16 %v2394, 1027030327
    %v2523 = vmul.bf16 %v2395, 1027030327
    %v2524 = vmul.bf16 %v2396, 1027030327
    %v2525 = vmul.bf16 %v2397, 1027030327
    %v2526 = vmul.bf16 %v2398, 1027030327
    %v2527 = vmul.bf16 %v2463, %v2335
    %v2528 = vmul.bf16 %v2464, %v2336
    %v2529 = vmul.bf16 %v2465, %v2337
    %v2530 = vmul.bf16 %v2466, %v2338
    %v2531 = vmul.bf16 %v2467, %v2339
    %v2532 = vmul.bf16 %v2468, %v2340
    %v2533 = vmul.bf16 %v2469, %v2341
    %v2534 = vmul.bf16 %v2470, %v2342
    %v2535 = vmul.bf16 %v2471, %v2343
    %v2536 = vmul.bf16 %v2472, %v2344
    %v2537 = vmul.bf16 %v2473, %v2345
    %v2538 = vmul.bf16 %v2474, %v2346
    %v2539 = vmul.bf16 %v2475, %v2347
    %v2540 = vmul.bf16 %v2476, %v2348
    %v2541 = vmul.bf16 %v2477, %v2349
    %v2542 = vmul.bf16 %v2478, %v2350
    %v2543 = vmul.bf16 %v2479, %v2351
    %v2544 = vmul.bf16 %v2480, %v2352
    %v2545 = vmul.bf16 %v2481, %v2353
    %v2546 = vmul.bf16 %v2482, %v2354
    %v2547 = vmul.bf16 %v2483, %v2355
    %v2548 = vmul.bf16 %v2484, %v2356
    %v2549 = vmul.bf16 %v2485, %v2357
    %v2550 = vmul.bf16 %v2486, %v2358
    %v2551 = vmul.bf16 %v2487, %v2359
    %v2552 = vmul.bf16 %v2488, %v2360
    %v2553 = vmul.bf16 %v2489, %v2361
    %v2554 = vmul.bf16 %v2490, %v2362
    %v2555 = vmul.bf16 %v2491, %v2363
    %v2556 = vmul.bf16 %v2492, %v2364
    %v2557 = vmul.bf16 %v2493, %v2365
    %v2558 = vmul.bf16 %v2494, %v2366
    %v2559 = vmul.bf16 %v2495, %v2367
    %v2560 = vmul.bf16 %v2496, %v2368
    %v2561 = vmul.bf16 %v2497, %v2369
    %v2562 = vmul.bf16 %v2498, %v2370
    %v2563 = vmul.bf16 %v2499, %v2371
    %v2564 = vmul.bf16 %v2500, %v2372
    %v2565 = vmul.bf16 %v2501, %v2373
    %v2566 = vmul.bf16 %v2502, %v2374
    %v2567 = vmul.bf16 %v2503, %v2375
    %v2568 = vmul.bf16 %v2504, %v2376
    %v2569 = vmul.bf16 %v2505, %v2377
    %v2570 = vmul.bf16 %v2506, %v2378
    %v2571 = vmul.bf16 %v2507, %v2379
    %v2572 = vmul.bf16 %v2508, %v2380
    %v2573 = vmul.bf16 %v2509, %v2381
    %v2574 = vmul.bf16 %v2510, %v2382
    %v2575 = vmul.bf16 %v2511, %v2383
    %v2576 = vmul.bf16 %v2512, %v2384
    %v2577 = vmul.bf16 %v2513, %v2385
    %v2578 = vmul.bf16 %v2514, %v2386
    %v2579 = vmul.bf16 %v2515, %v2387
    %v2580 = vmul.bf16 %v2516, %v2388
    %v2581 = vmul.bf16 %v2517, %v2389
    %v2582 = vmul.bf16 %v2518, %v2390
    %v2583 = vmul.bf16 %v2519, %v2391
    %v2584 = vmul.bf16 %v2520, %v2392
    %v2585 = vmul.bf16 %v2521, %v2393
    %v2586 = vmul.bf16 %v2522, %v2394
    %v2587 = vmul.bf16 %v2523, %v2395
    %v2588 = vmul.bf16 %v2524, %v2396
    %v2589 = vmul.bf16 %v2525, %v2397
    %v2590 = vmul.bf16 %v2526, %v2398
    %v2591 = vmul.bf16 %v2527, %v2335
    %v2592 = vmul.bf16 %v2528, %v2336
    %v2593 = vmul.bf16 %v2529, %v2337
    %v2594 = vmul.bf16 %v2530, %v2338
    %v2595 = vmul.bf16 %v2531, %v2339
    %v2596 = vmul.bf16 %v2532, %v2340
    %v2597 = vmul.bf16 %v2533, %v2341
    %v2598 = vmul.bf16 %v2534, %v2342
    %v2599 = vmul.bf16 %v2535, %v2343
    %v2600 = vmul.bf16 %v2536, %v2344
    %v2601 = vmul.bf16 %v2537, %v2345
    %v2602 = vmul.bf16 %v2538, %v2346
    %v2603 = vmul.bf16 %v2539, %v2347
    %v2604 = vmul.bf16 %v2540, %v2348
    %v2605 = vmul.bf16 %v2541, %v2349
    %v2606 = vmul.bf16 %v2542, %v2350
    %v2607 = vmul.bf16 %v2543, %v2351
    %v2608 = vmul.bf16 %v2544, %v2352
    %v2609 = vmul.bf16 %v2545, %v2353
    %v2610 = vmul.bf16 %v2546, %v2354
    %v2611 = vmul.bf16 %v2547, %v2355
    %v2612 = vmul.bf16 %v2548, %v2356
    %v2613 = vmul.bf16 %v2549, %v2357
    %v2614 = vmul.bf16 %v2550, %v2358
    %v2615 = vmul.bf16 %v2551, %v2359
    %v2616 = vmul.bf16 %v2552, %v2360
    %v2617 = vmul.bf16 %v2553, %v2361
    %v2618 = vmul.bf16 %v2554, %v2362
    %v2619 = vmul.bf16 %v2555, %v2363
    %v2620 = vmul.bf16 %v2556, %v2364
    %v2621 = vmul.bf16 %v2557, %v2365
    %v2622 = vmul.bf16 %v2558, %v2366
    %v2623 = vmul.bf16 %v2559, %v2367
    %v2624 = vmul.bf16 %v2560, %v2368
    %v2625 = vmul.bf16 %v2561, %v2369
    %v2626 = vmul.bf16 %v2562, %v2370
    %v2627 = vmul.bf16 %v2563, %v2371
    %v2628 = vmul.bf16 %v2564, %v2372
    %v2629 = vmul.bf16 %v2565, %v2373
    %v2630 = vmul.bf16 %v2566, %v2374
    %v2631 = vmul.bf16 %v2567, %v2375
    %v2632 = vmul.bf16 %v2568, %v2376
    %v2633 = vmul.bf16 %v2569, %v2377
    %v2634 = vmul.bf16 %v2570, %v2378
    %v2635 = vmul.bf16 %v2571, %v2379
    %v2636 = vmul.bf16 %v2572, %v2380
    %v2637 = vmul.bf16 %v2573, %v2381
    %v2638 = vmul.bf16 %v2574, %v2382
    %v2639 = vmul.bf16 %v2575, %v2383
    %v2640 = vmul.bf16 %v2576, %v2384
    %v2641 = vmul.bf16 %v2577, %v2385
    %v2642 = vmul.bf16 %v2578, %v2386
    %v2643 = vmul.bf16 %v2579, %v2387
    %v2644 = vmul.bf16 %v2580, %v2388
    %v2645 = vmul.bf16 %v2581, %v2389
    %v2646 = vmul.bf16 %v2582, %v2390
    %v2647 = vmul.bf16 %v2583, %v2391
    %v2648 = vmul.bf16 %v2584, %v2392
    %v2649 = vmul.bf16 %v2585, %v2393
    %v2650 = vmul.bf16 %v2586, %v2394
    %v2651 = vmul.bf16 %v2587, %v2395
    %v2652 = vmul.bf16 %v2588, %v2396
    %v2653 = vmul.bf16 %v2589, %v2397
    %v2654 = vmul.bf16 %v2590, %v2398
    %v2655 = vadd.bf16 %v2335, %v2591
    %v2656 = vadd.bf16 %v2336, %v2592
    %v2657 = vadd.bf16 %v2337, %v2593
    %v2658 = vadd.bf16 %v2338, %v2594
    %v2659 = vadd.bf16 %v2339, %v2595
    %v2660 = vadd.bf16 %v2340, %v2596
    %v2661 = vadd.bf16 %v2341, %v2597
    %v2662 = vadd.bf16 %v2342, %v2598
    %v2663 = vadd.bf16 %v2343, %v2599
    %v2664 = vadd.bf16 %v2344, %v2600
    %v2665 = vadd.bf16 %v2345, %v2601
    %v2666 = vadd.bf16 %v2346, %v2602
    %v2667 = vadd.bf16 %v2347, %v2603
    %v2668 = vadd.bf16 %v2348, %v2604
    %v2669 = vadd.bf16 %v2349, %v2605
    %v2670 = vadd.bf16 %v2350, %v2606
    %v2671 = vadd.bf16 %v2351, %v2607
    %v2672 = vadd.bf16 %v2352, %v2608
    %v2673 = vadd.bf16 %v2353, %v2609
    %v2674 = vadd.bf16 %v2354, %v2610
    %v2675 = vadd.bf16 %v2355, %v2611
    %v2676 = vadd.bf16 %v2356, %v2612
    %v2677 = vadd.bf16 %v2357, %v2613
    %v2678 = vadd.bf16 %v2358, %v2614
    %v2679 = vadd.bf16 %v2359, %v2615
    %v2680 = vadd.bf16 %v2360, %v2616
    %v2681 = vadd.bf16 %v2361, %v2617
    %v2682 = vadd.bf16 %v2362, %v2618
    %v2683 = vadd.bf16 %v2363, %v2619
    %v2684 = vadd.bf16 %v2364, %v2620
    %v2685 = vadd.bf16 %v2365, %v2621
    %v2686 = vadd.bf16 %v2366, %v2622
    %v2687 = vadd.bf16 %v2367, %v2623
    %v2688 = vadd.bf16 %v2368, %v2624
    %v2689 = vadd.bf16 %v2369, %v2625
    %v2690 = vadd.bf16 %v2370, %v2626
    %v2691 = vadd.bf16 %v2371, %v2627
    %v2692 = vadd.bf16 %v2372, %v2628
    %v2693 = vadd.bf16 %v2373, %v2629
    %v2694 = vadd.bf16 %v2374, %v2630
    %v2695 = vadd.bf16 %v2375, %v2631
    %v2696 = vadd.bf16 %v2376, %v2632
    %v2697 = vadd.bf16 %v2377, %v2633
    %v2698 = vadd.bf16 %v2378, %v2634
    %v2699 = vadd.bf16 %v2379, %v2635
    %v2700 = vadd.bf16 %v2380, %v2636
    %v2701 = vadd.bf16 %v2381, %v2637
    %v2702 = vadd.bf16 %v2382, %v2638
    %v2703 = vadd.bf16 %v2383, %v2639
    %v2704 = vadd.bf16 %v2384, %v2640
    %v2705 = vadd.bf16 %v2385, %v2641
    %v2706 = vadd.bf16 %v2386, %v2642
    %v2707 = vadd.bf16 %v2387, %v2643
    %v2708 = vadd.bf16 %v2388, %v2644
    %v2709 = vadd.bf16 %v2389, %v2645
    %v2710 = vadd.bf16 %v2390, %v2646
    %v2711 = vadd.bf16 %v2391, %v2647
    %v2712 = vadd.bf16 %v2392, %v2648
    %v2713 = vadd.bf16 %v2393, %v2649
    %v2714 = vadd.bf16 %v2394, %v2650
    %v2715 = vadd.bf16 %v2395, %v2651
    %v2716 = vadd.bf16 %v2396, %v2652
    %v2717 = vadd.bf16 %v2397, %v2653
    %v2718 = vadd.bf16 %v2398, %v2654
    %v2719 = vmul.bf16 %v2655, 1061961548
    %v2720 = vmul.bf16 %v2656, 1061961548
    %v2721 = vmul.bf16 %v2657, 1061961548
    %v2722 = vmul.bf16 %v2658, 1061961548
    %v2723 = vmul.bf16 %v2659, 1061961548
    %v2724 = vmul.bf16 %v2660, 1061961548
    %v2725 = vmul.bf16 %v2661, 1061961548
    %v2726 = vmul.bf16 %v2662, 1061961548
    %v2727 = vmul.bf16 %v2663, 1061961548
    %v2728 = vmul.bf16 %v2664, 1061961548
    %v2729 = vmul.bf16 %v2665, 1061961548
    %v2730 = vmul.bf16 %v2666, 1061961548
    %v2731 = vmul.bf16 %v2667, 1061961548
    %v2732 = vmul.bf16 %v2668, 1061961548
    %v2733 = vmul.bf16 %v2669, 1061961548
    %v2734 = vmul.bf16 %v2670, 1061961548
    %v2735 = vmul.bf16 %v2671, 1061961548
    %v2736 = vmul.bf16 %v2672, 1061961548
    %v2737 = vmul.bf16 %v2673, 1061961548
    %v2738 = vmul.bf16 %v2674, 1061961548
    %v2739 = vmul.bf16 %v2675, 1061961548
    %v2740 = vmul.bf16 %v2676, 1061961548
    %v2741 = vmul.bf16 %v2677, 1061961548
    %v2742 = vmul.bf16 %v2678, 1061961548
    %v2743 = vmul.bf16 %v2679, 1061961548
    %v2744 = vmul.bf16 %v2680, 1061961548
    %v2745 = vmul.bf16 %v2681, 1061961548
    %v2746 = vmul.bf16 %v2682, 1061961548
    %v2747 = vmul.bf16 %v2683, 1061961548
    %v2748 = vmul.bf16 %v2684, 1061961548
    %v2749 = vmul.bf16 %v2685, 1061961548
    %v2750 = vmul.bf16 %v2686, 1061961548
    %v2751 = vmul.bf16 %v2687, 1061961548
    %v2752 = vmul.bf16 %v2688, 1061961548
    %v2753 = vmul.bf16 %v2689, 1061961548
    %v2754 = vmul.bf16 %v2690, 1061961548
    %v2755 = vmul.bf16 %v2691, 1061961548
    %v2756 = vmul.bf16 %v2692, 1061961548
    %v2757 = vmul.bf16 %v2693, 1061961548
    %v2758 = vmul.bf16 %v2694, 1061961548
    %v2759 = vmul.bf16 %v2695, 1061961548
    %v2760 = vmul.bf16 %v2696, 1061961548
    %v2761 = vmul.bf16 %v2697, 1061961548
    %v2762 = vmul.bf16 %v2698, 1061961548
    %v2763 = vmul.bf16 %v2699, 1061961548
    %v2764 = vmul.bf16 %v2700, 1061961548
    %v2765 = vmul.bf16 %v2701, 1061961548
    %v2766 = vmul.bf16 %v2702, 1061961548
    %v2767 = vmul.bf16 %v2703, 1061961548
    %v2768 = vmul.bf16 %v2704, 1061961548
    %v2769 = vmul.bf16 %v2705, 1061961548
    %v2770 = vmul.bf16 %v2706, 1061961548
    %v2771 = vmul.bf16 %v2707, 1061961548
    %v2772 = vmul.bf16 %v2708, 1061961548
    %v2773 = vmul.bf16 %v2709, 1061961548
    %v2774 = vmul.bf16 %v2710, 1061961548
    %v2775 = vmul.bf16 %v2711, 1061961548
    %v2776 = vmul.bf16 %v2712, 1061961548
    %v2777 = vmul.bf16 %v2713, 1061961548
    %v2778 = vmul.bf16 %v2714, 1061961548
    %v2779 = vmul.bf16 %v2715, 1061961548
    %v2780 = vmul.bf16 %v2716, 1061961548
    %v2781 = vmul.bf16 %v2717, 1061961548
    %v2782 = vmul.bf16 %v2718, 1061961548
    %v2783 = vtanh.bf16.pop %v2719
    %v2784 = vtanh.bf16.pop %v2720
    %v2785 = vtanh.bf16.pop %v2721
    %v2786 = vtanh.bf16.pop %v2722
    %v2787 = vtanh.bf16.pop %v2723
    %v2788 = vtanh.bf16.pop %v2724
    %v2789 = vtanh.bf16.pop %v2725
    %v2790 = vtanh.bf16.pop %v2726
    %v2791 = vtanh.bf16.pop %v2727
    %v2792 = vtanh.bf16.pop %v2728
    %v2793 = vtanh.bf16.pop %v2729
    %v2794 = vtanh.bf16.pop %v2730
    %v2795 = vtanh.bf16.pop %v2731
    %v2796 = vtanh.bf16.pop %v2732
    %v2797 = vtanh.bf16.pop %v2733
    %v2798 = vtanh.bf16.pop %v2734
    %v2799 = vtanh.bf16.pop %v2735
    %v2800 = vtanh.bf16.pop %v2736
    %v2801 = vtanh.bf16.pop %v2737
    %v2802 = vtanh.bf16.pop %v2738
    %v2803 = vtanh.bf16.pop %v2739
    %v2804 = vtanh.bf16.pop %v2740
    %v2805 = vtanh.bf16.pop %v2741
    %v2806 = vtanh.bf16.pop %v2742
    %v2807 = vtanh.bf16.pop %v2743
    %v2808 = vtanh.bf16.pop %v2744
    %v2809 = vtanh.bf16.pop %v2745
    %v2810 = vtanh.bf16.pop %v2746
    %v2811 = vtanh.bf16.pop %v2747
    %v2812 = vtanh.bf16.pop %v2748
    %v2813 = vtanh.bf16.pop %v2749
    %v2814 = vtanh.bf16.pop %v2750
    %v2815 = vtanh.bf16.pop %v2751
    %v2816 = vtanh.bf16.pop %v2752
    %v2817 = vtanh.bf16.pop %v2753
    %v2818 = vtanh.bf16.pop %v2754
    %v2819 = vtanh.bf16.pop %v2755
    %v2820 = vtanh.bf16.pop %v2756
    %v2821 = vtanh.bf16.pop %v2757
    %v2822 = vtanh.bf16.pop %v2758
    %v2823 = vtanh.bf16.pop %v2759
    %v2824 = vtanh.bf16.pop %v2760
    %v2825 = vtanh.bf16.pop %v2761
    %v2826 = vtanh.bf16.pop %v2762
    %v2827 = vtanh.bf16.pop %v2763
    %v2828 = vtanh.bf16.pop %v2764
    %v2829 = vtanh.bf16.pop %v2765
    %v2830 = vtanh.bf16.pop %v2766
    %v2831 = vtanh.bf16.pop %v2767
    %v2832 = vtanh.bf16.pop %v2768
    %v2833 = vtanh.bf16.pop %v2769
    %v2834 = vtanh.bf16.pop %v2770
    %v2835 = vtanh.bf16.pop %v2771
    %v2836 = vtanh.bf16.pop %v2772
    %v2837 = vtanh.bf16.pop %v2773
    %v2838 = vtanh.bf16.pop %v2774
    %v2839 = vtanh.bf16.pop %v2775
    %v2840 = vtanh.bf16.pop %v2776
    %v2841 = vtanh.bf16.pop %v2777
    %v2842 = vtanh.bf16.pop %v2778
    %v2843 = vtanh.bf16.pop %v2779
    %v2844 = vtanh.bf16.pop %v2780
    %v2845 = vtanh.bf16.pop %v2781
    %v2846 = vtanh.bf16.pop %v2782
    %v2847 = vadd.bf16 %v2783, 1065369472
    %v2848 = vadd.bf16 %v2784, 1065369472
    %v2849 = vadd.bf16 %v2785, 1065369472
    %v2850 = vadd.bf16 %v2786, 1065369472
    %v2851 = vadd.bf16 %v2787, 1065369472
    %v2852 = vadd.bf16 %v2788, 1065369472
    %v2853 = vadd.bf16 %v2789, 1065369472
    %v2854 = vadd.bf16 %v2790, 1065369472
    %v2855 = vadd.bf16 %v2791, 1065369472
    %v2856 = vadd.bf16 %v2792, 1065369472
    %v2857 = vadd.bf16 %v2793, 1065369472
    %v2858 = vadd.bf16 %v2794, 1065369472
    %v2859 = vadd.bf16 %v2795, 1065369472
    %v2860 = vadd.bf16 %v2796, 1065369472
    %v2861 = vadd.bf16 %v2797, 1065369472
    %v2862 = vadd.bf16 %v2798, 1065369472
    %v2863 = vadd.bf16 %v2799, 1065369472
    %v2864 = vadd.bf16 %v2800, 1065369472
    %v2865 = vadd.bf16 %v2801, 1065369472
    %v2866 = vadd.bf16 %v2802, 1065369472
    %v2867 = vadd.bf16 %v2803, 1065369472
    %v2868 = vadd.bf16 %v2804, 1065369472
    %v2869 = vadd.bf16 %v2805, 1065369472
    %v2870 = vadd.bf16 %v2806, 1065369472
    %v2871 = vadd.bf16 %v2807, 1065369472
    %v2872 = vadd.bf16 %v2808, 1065369472
    %v2873 = vadd.bf16 %v2809, 1065369472
    %v2874 = vadd.bf16 %v2810, 1065369472
    %v2875 = vadd.bf16 %v2811, 1065369472
    %v2876 = vadd.bf16 %v2812, 1065369472
    %v2877 = vadd.bf16 %v2813, 1065369472
    %v2878 = vadd.bf16 %v2814, 1065369472
    %v2879 = vadd.bf16 %v2815, 1065369472
    %v2880 = vadd.bf16 %v2816, 1065369472
    %v2881 = vadd.bf16 %v2817, 1065369472
    %v2882 = vadd.bf16 %v2818, 1065369472
    %v2883 = vadd.bf16 %v2819, 1065369472
    %v2884 = vadd.bf16 %v2820, 1065369472
    %v2885 = vadd.bf16 %v2821, 1065369472
    %v2886 = vadd.bf16 %v2822, 1065369472
    %v2887 = vadd.bf16 %v2823, 1065369472
    %v2888 = vadd.bf16 %v2824, 1065369472
    %v2889 = vadd.bf16 %v2825, 1065369472
    %v2890 = vadd.bf16 %v2826, 1065369472
    %v2891 = vadd.bf16 %v2827, 1065369472
    %v2892 = vadd.bf16 %v2828, 1065369472
    %v2893 = vadd.bf16 %v2829, 1065369472
    %v2894 = vadd.bf16 %v2830, 1065369472
    %v2895 = vadd.bf16 %v2831, 1065369472
    %v2896 = vadd.bf16 %v2832, 1065369472
    %v2897 = vadd.bf16 %v2833, 1065369472
    %v2898 = vadd.bf16 %v2834, 1065369472
    %v2899 = vadd.bf16 %v2835, 1065369472
    %v2900 = vadd.bf16 %v2836, 1065369472
    %v2901 = vadd.bf16 %v2837, 1065369472
    %v2902 = vadd.bf16 %v2838, 1065369472
    %v2903 = vadd.bf16 %v2839, 1065369472
    %v2904 = vadd.bf16 %v2840, 1065369472
    %v2905 = vadd.bf16 %v2841, 1065369472
    %v2906 = vadd.bf16 %v2842, 1065369472
    %v2907 = vadd.bf16 %v2843, 1065369472
    %v2908 = vadd.bf16 %v2844, 1065369472
    %v2909 = vadd.bf16 %v2845, 1065369472
    %v2910 = vadd.bf16 %v2846, 1065369472
    %v2911 = vmul.bf16 %v2399, %v2847
    %v2912 = vmul.bf16 %v2400, %v2848
    %v2913 = vmul.bf16 %v2401, %v2849
    %v2914 = vmul.bf16 %v2402, %v2850
    %v2915 = vmul.bf16 %v2403, %v2851
    %v2916 = vmul.bf16 %v2404, %v2852
    %v2917 = vmul.bf16 %v2405, %v2853
    %v2918 = vmul.bf16 %v2406, %v2854
    %v2919 = vmul.bf16 %v2407, %v2855
    %v2920 = vmul.bf16 %v2408, %v2856
    %v2921 = vmul.bf16 %v2409, %v2857
    %v2922 = vmul.bf16 %v2410, %v2858
    %v2923 = vmul.bf16 %v2411, %v2859
    %v2924 = vmul.bf16 %v2412, %v2860
    %v2925 = vmul.bf16 %v2413, %v2861
    %v2926 = vmul.bf16 %v2414, %v2862
    %v2927 = vmul.bf16 %v2415, %v2863
    %v2928 = vmul.bf16 %v2416, %v2864
    %v2929 = vmul.bf16 %v2417, %v2865
    %v2930 = vmul.bf16 %v2418, %v2866
    %v2931 = vmul.bf16 %v2419, %v2867
    %v2932 = vmul.bf16 %v2420, %v2868
    %v2933 = vmul.bf16 %v2421, %v2869
    %v2934 = vmul.bf16 %v2422, %v2870
    %v2935 = vmul.bf16 %v2423, %v2871
    %v2936 = vmul.bf16 %v2424, %v2872
    %v2937 = vmul.bf16 %v2425, %v2873
    %v2938 = vmul.bf16 %v2426, %v2874
    %v2939 = vmul.bf16 %v2427, %v2875
    %v2940 = vmul.bf16 %v2428, %v2876
    %v2941 = vmul.bf16 %v2429, %v2877
    %v2942 = vmul.bf16 %v2430, %v2878
    %v2943 = vmul.bf16 %v2431, %v2879
    %v2944 = vmul.bf16 %v2432, %v2880
    %v2945 = vmul.bf16 %v2433, %v2881
    %v2946 = vmul.bf16 %v2434, %v2882
    %v2947 = vmul.bf16 %v2435, %v2883
    %v2948 = vmul.bf16 %v2436, %v2884
    %v2949 = vmul.bf16 %v2437, %v2885
    %v2950 = vmul.bf16 %v2438, %v2886
    %v2951 = vmul.bf16 %v2439, %v2887
    %v2952 = vmul.bf16 %v2440, %v2888
    %v2953 = vmul.bf16 %v2441, %v2889
    %v2954 = vmul.bf16 %v2442, %v2890
    %v2955 = vmul.bf16 %v2443, %v2891
    %v2956 = vmul.bf16 %v2444, %v2892
    %v2957 = vmul.bf16 %v2445, %v2893
    %v2958 = vmul.bf16 %v2446, %v2894
    %v2959 = vmul.bf16 %v2447, %v2895
    %v2960 = vmul.bf16 %v2448, %v2896
    %v2961 = vmul.bf16 %v2449, %v2897
    %v2962 = vmul.bf16 %v2450, %v2898
    %v2963 = vmul.bf16 %v2451, %v2899
    %v2964 = vmul.bf16 %v2452, %v2900
    %v2965 = vmul.bf16 %v2453, %v2901
    %v2966 = vmul.bf16 %v2454, %v2902
    %v2967 = vmul.bf16 %v2455, %v2903
    %v2968 = vmul.bf16 %v2456, %v2904
    %v2969 = vmul.bf16 %v2457, %v2905
    %v2970 = vmul.bf16 %v2458, %v2906
    %v2971 = vmul.bf16 %v2459, %v2907
    %v2972 = vmul.bf16 %v2460, %v2908
    %v2973 = vmul.bf16 %v2461, %v2909
    %v2974 = vmul.bf16 %v2462, %v2910
    %v2975 = vld [vmem:[%s6] sm:$0xff]
    %v2976 = vld [vmem:[%s6 + $0x8] sm:$0xff]
    %v2977 = vld [vmem:[%s6 + $0x10] sm:$0xff]
    %v2978 = vld [vmem:[%s6 + $0x18] sm:$0xff]
    %v2979 = vld [vmem:[%s6 + $0x20] sm:$0xff]
    %v2980 = vld [vmem:[%s6 + $0x28] sm:$0xff]
    %v2981 = vld [vmem:[%s6 + $0x30] sm:$0xff]
    %v2982 = vld [vmem:[%s6 + $0x38] sm:$0xff]
    %v2983 = vld [vmem:[%s7] sm:$0xff]
    %v2984 = vld [vmem:[%s7 + $0x8] sm:$0xff]
    %v2985 = vld [vmem:[%s7 + $0x10] sm:$0xff]
    %v2986 = vld [vmem:[%s7 + $0x18] sm:$0xff]
    %2988 = vset.pattern.permute.xlu0 0
    %2989 = vperm.xlu0 %2988, %v2983
    %v2990 = vpop.permute.xlu0 %2989
    %2993 = vset.pattern.permute.xlu0 0
    %2994 = vperm.xlu0 %2993, %v2984
    %v2995 = vpop.permute.xlu0 %2994
    %2998 = vset.pattern.permute.xlu0 0
    %2999 = vperm.xlu0 %2998, %v2985
    %v3000 = vpop.permute.xlu0 %2999
    %3003 = vset.pattern.permute.xlu0 0
    %3004 = vperm.xlu0 %3003, %v2986
    %v3005 = vpop.permute.xlu0 %3004
    %v3015 = vunpack.c.l.b16 %v2975
    %v3016 = vunpack.c.h.b16 %v2975
    %v3017 = vunpack.c.l.b16 %v2976
    %v3018 = vunpack.c.h.b16 %v2976
    %v3019 = vunpack.c.l.b16 %v2977
    %v3020 = vunpack.c.h.b16 %v2977
    %v3021 = vunpack.c.l.b16 %v2978
    %v3022 = vunpack.c.h.b16 %v2978
    %v3023 = vunpack.c.l.b16 %v2979
    %v3024 = vunpack.c.h.b16 %v2979
    %v3025 = vunpack.c.l.b16 %v2980
    %v3026 = vunpack.c.h.b16 %v2980
    %v3027 = vunpack.c.l.b16 %v2981
    %v3028 = vunpack.c.h.b16 %v2981
    %v3029 = vunpack.c.l.b16 %v2982
    %v3030 = vunpack.c.h.b16 %v2982
    %v3031 = vpack.c.b16 %v3019, %v3015
    %v3032 = vpack.c.b16 %v3020, %v3016
    %v3033 = vpack.c.b16 %v3021, %v3017
    %v3034 = vpack.c.b16 %v3022, %v3018
    %v3035 = vpack.c.b16 %v3027, %v3023
    %v3036 = vpack.c.b16 %v3028, %v3024
    %v3037 = vpack.c.b16 %v3029, %v3025
    %v3038 = vpack.c.b16 %v3030, %v3026
    %3047 = vmatprep.subr.bf16.mxu0 %v2912
    %3048 = vmatpush1.bf16.msra.mxu0 %v2911
    %3049 = vmatprep.subr.bf16.mxu0 %v2914
    %3050 = vmatpush1.bf16.msra.mxu0 %v2913
    %3051 = vmatprep.subr.bf16.mxu0 %v2916
    %3052 = vmatpush1.bf16.msra.mxu0 %v2915
    %3053 = vmatprep.subr.bf16.mxu0 %v2918
    %3054 = vmatpush1.bf16.msra.mxu0 %v2917
    %3055 = vmatprep.subr.bf16.mxu0 %v2920
    %3056 = vmatpush1.bf16.msra.mxu0 %v2919
    %3057 = vmatprep.subr.bf16.mxu0 %v2922
    %3058 = vmatpush1.bf16.msra.mxu0 %v2921
    %3059 = vmatprep.subr.bf16.mxu0 %v2924
    %3060 = vmatpush1.bf16.msra.mxu0 %v2923
    %3061 = vmatprep.subr.bf16.mxu0 %v2926
    %3062 = vmatpush1.bf16.msra.mxu0 %v2925
    %3063 = vmatprep.subr.bf16.mxu0 %v2928
    %3064 = vmatpush1.bf16.msra.mxu0 %v2927
    %3065 = vmatprep.subr.bf16.mxu0 %v2930
    %3066 = vmatpush1.bf16.msra.mxu0 %v2929
    %3067 = vmatprep.subr.bf16.mxu0 %v2932
    %3068 = vmatpush1.bf16.msra.mxu0 %v2931
    %3069 = vmatprep.subr.bf16.mxu0 %v2934
    %3070 = vmatpush1.bf16.msra.mxu0 %v2933
    %3071 = vmatprep.subr.bf16.mxu0 %v2936
    %3072 = vmatpush1.bf16.msra.mxu0 %v2935
    %3073 = vmatprep.subr.bf16.mxu0 %v2938
    %3074 = vmatpush1.bf16.msra.mxu0 %v2937
    %3075 = vmatprep.subr.bf16.mxu0 %v2940
    %3076 = vmatpush1.bf16.msra.mxu0 %v2939
    %3077 = vmatprep.subr.bf16.mxu0 %v2942
    %3078 = vmatpush1.bf16.msra.mxu0 %v2941
    %3079 = vmatprep.mubr.bf16.mxu0 %v3032
    %3080 = vmatmul.mubr.bf16.gmra.mrb[0].mxu0 %v3031
    %v3081 = vpop.f32.mrb[0].mxu0
    %v3082 = vadd.f32 %v2990, %v3081
    %v3083 = vpop.f32.mrb[0].mxu0
    %v3084 = vadd.f32 %v2990, %v3083
    %v3085 = vpop.f32.mrb[0].mxu0
    %v3086 = vadd.f32 %v2995, %v3085
    %v3087 = vpop.f32.mrb[0].mxu0
    %v3088 = vadd.f32 %v2995, %v3087
    %3089 = vmatprep.mubr.bf16.mxu0 %v3036
    %3090 = vmatmul.mubr.bf16.gmra.mrb[0].mxu0 %v3035
    %v3091 = vpop.f32.mrb[0].mxu0
    %v3092 = vadd.f32 %v3000, %v3091
    %v3093 = vpop.f32.mrb[0].mxu0
    %v3094 = vadd.f32 %v3000, %v3093
    %v3095 = vpop.f32.mrb[0].mxu0
    %v3096 = vadd.f32 %v3005, %v3095
    %v3097 = vpop.f32.mrb[0].mxu0
    %v3098 = vadd.f32 %v3005, %v3097
    %3099 = vdwg.mxu0
    %3100 = vmatprep.subr.bf16.mxu0 %v2944
    %3101 = vmatpush1.bf16.msra.mxu0 %v2943
    %3102 = vmatprep.subr.bf16.mxu0 %v2946
    %3103 = vmatpush1.bf16.msra.mxu0 %v2945
    %3104 = vmatprep.subr.bf16.mxu0 %v2948
    %3105 = vmatpush1.bf16.msra.mxu0 %v2947
    %3106 = vmatprep.subr.bf16.mxu0 %v2950
    %3107 = vmatpush1.bf16.msra.mxu0 %v2949
    %3108 = vmatprep.subr.bf16.mxu0 %v2952
    %3109 = vmatpush1.bf16.msra.mxu0 %v2951
    %3110 = vmatprep.subr.bf16.mxu0 %v2954
    %3111 = vmatpush1.bf16.msra.mxu0 %v2953
    %3112 = vmatprep.subr.bf16.mxu0 %v2956
    %3113 = vmatpush1.bf16.msra.mxu0 %v2955
    %3114 = vmatprep.subr.bf16.mxu0 %v2958
    %3115 = vmatpush1.bf16.msra.mxu0 %v2957
    %3116 = vmatprep.subr.bf16.mxu0 %v2960
    %3117 = vmatpush1.bf16.msra.mxu0 %v2959
    %3118 = vmatprep.subr.bf16.mxu0 %v2962
    %3119 = vmatpush1.bf16.msra.mxu0 %v2961
    %3120 = vmatprep.subr.bf16.mxu0 %v2964
    %3121 = vmatpush1.bf16.msra.mxu0 %v2963
    %3122 = vmatprep.subr.bf16.mxu0 %v2966
    %3123 = vmatpush1.bf16.msra.mxu0 %v2965
    %3124 = vmatprep.subr.bf16.mxu0 %v2968
    %3125 = vmatpush1.bf16.msra.mxu0 %v2967
    %3126 = vmatprep.subr.bf16.mxu0 %v2970
    %3127 = vmatpush1.bf16.msra.mxu0 %v2969
    %3128 = vmatprep.subr.bf16.mxu0 %v2972
    %3129 = vmatpush1.bf16.msra.mxu0 %v2971
    %3130 = vmatprep.subr.bf16.mxu0 %v2974
    %3131 = vmatpush1.bf16.msra.mxu0 %v2973
    %3132 = vmatprep.mubr.bf16.mxu0 %v3034
    %3133 = vmatmul.mubr.bf16.gmra.mrb[0].mxu0 %v3033
    %v3134 = vpop.f32.mrb[0].mxu0
    %v3135 = vadd.f32 %v3082, %v3134
    %v3136 = vpop.f32.mrb[0].mxu0
    %v3137 = vadd.f32 %v3084, %v3136
    %v3138 = vpop.f32.mrb[0].mxu0
    %v3139 = vadd.f32 %v3086, %v3138
    %v3140 = vpop.f32.mrb[0].mxu0
    %v3141 = vadd.f32 %v3088, %v3140
    %3142 = vmatprep.mubr.bf16.mxu0 %v3038
    %3143 = vmatmul.mubr.bf16.gmra.mrb[0].mxu0 %v3037
    %v3144 = vpop.f32.mrb[0].mxu0
    %v3145 = vadd.f32 %v3092, %v3144
    %v3146 = vpop.f32.mrb[0].mxu0
    %v3147 = vadd.f32 %v3094, %v3146
    %v3148 = vpop.f32.mrb[0].mxu0
    %v3149 = vadd.f32 %v3096, %v3148
    %v3150 = vpop.f32.mrb[0].mxu0
    %v3151 = vadd.f32 %v3098, %v3150
    %3152 = vdwg.mxu0
    %v3153 = vmul.f32 %v3135, 0.5
    %v3154 = vmul.f32 %v3137, 0.5
    %v3155 = vmul.f32 %v3139, 0.5
    %v3156 = vmul.f32 %v3141, 0.5
    %v3157 = vmul.f32 %v3145, 0.5
    %v3158 = vmul.f32 %v3147, 0.5
    %v3159 = vmul.f32 %v3149, 0.5
    %v3160 = vmul.f32 %v3151, 0.5
    %v3161 = vmul.f32 %v3135, 0.044715
    %v3162 = vmul.f32 %v3137, 0.044715
    %v3163 = vmul.f32 %v3139, 0.044715
    %v3164 = vmul.f32 %v3141, 0.044715
    %v3165 = vmul.f32 %v3145, 0.044715
    %v3166 = vmul.f32 %v3147, 0.044715
    %v3167 = vmul.f32 %v3149, 0.044715
    %v3168 = vmul.f32 %v3151, 0.044715
    %v3169 = vmul.f32 %v3161, %v3135
    %v3170 = vmul.f32 %v3162, %v3137
    %v3171 = vmul.f32 %v3163, %v3139
    %v3172 = vmul.f32 %v3164, %v3141
    %v3173 = vmul.f32 %v3165, %v3145
    %v3174 = vmul.f32 %v3166, %v3147
    %v3175 = vmul.f32 %v3167, %v3149
    %v3176 = vmul.f32 %v3168, %v3151
    %v3177 = vmul.f32 %v3169, %v3135
    %v3178 = vmul.f32 %v3170, %v3137
    %v3179 = vmul.f32 %v3171, %v3139
    %v3180 = vmul.f32 %v3172, %v3141
    %v3181 = vmul.f32 %v3173, %v3145
    %v3182 = vmul.f32 %v3174, %v3147
    %v3183 = vmul.f32 %v3175, %v3149
    %v3184 = vmul.f32 %v3176, %v3151
    %v3185 = vadd.f32 %v3135, %v3177
    %v3186 = vadd.f32 %v3137, %v3178
    %v3187 = vadd.f32 %v3139, %v3179
    %v3188 = vadd.f32 %v3141, %v3180
    %v3189 = vadd.f32 %v3145, %v3181
    %v3190 = vadd.f32 %v3147, %v3182
    %v3191 = vadd.f32 %v3149, %v3183
    %v3192 = vadd.f32 %v3151, %v3184
    %v3193 = vmul.f32 %v3185, 0.7978846
    %v3194 = vmul.f32 %v3186, 0.7978846
    %v3195 = vmul.f32 %v3187, 0.7978846
    %v3196 = vmul.f32 %v3188, 0.7978846
    %v3197 = vmul.f32 %v3189, 0.7978846
    %v3198 = vmul.f32 %v3190, 0.7978846
    %v3199 = vmul.f32 %v3191, 0.7978846
    %v3200 = vmul.f32 %v3192, 0.7978846
    %v3201 = vtanh.pop %v3193
    %v3202 = vtanh.pop %v3194
    %v3203 = vtanh.pop %v3195
    %v3204 = vtanh.pop %v3196
    %v3205 = vtanh.pop %v3197
    %v3206 = vtanh.pop %v3198
    %v3207 = vtanh.pop %v3199
    %v3208 = vtanh.pop %v3200
    %v3209 = vadd.f32 %v3201, 1.0
    %v3210 = vadd.f32 %v3202, 1.0
    %v3211 = vadd.f32 %v3203, 1.0
    %v3212 = vadd.f32 %v3204, 1.0
    %v3213 = vadd.f32 %v3205, 1.0
    %v3214 = vadd.f32 %v3206, 1.0
    %v3215 = vadd.f32 %v3207, 1.0
    %v3216 = vadd.f32 %v3208, 1.0
    %v3217 = vmul.f32 %v3153, %v3209
    %v3218 = vmul.f32 %v3154, %v3210
    %v3219 = vmul.f32 %v3155, %v3211
    %v3220 = vmul.f32 %v3156, %v3212
    %v3221 = vmul.f32 %v3157, %v3213
    %v3222 = vmul.f32 %v3158, %v3214
    %v3223 = vmul.f32 %v3159, %v3215
    %v3224 = vmul.f32 %v3160, %v3216
    %v3225 = vld [vmem:[%s1] sm:$0xff]
    %v3226 = vld [vmem:[%s1 + $0x8] sm:$0xff]
    %v3227 = vld [vmem:[%s1 + $0x10] sm:$0xff]
    %v3228 = vld [vmem:[%s1 + $0x18] sm:$0xff]
    %v3229 = vld [vmem:[%s1 + $0x20] sm:$0xff]
    %v3230 = vld [vmem:[%s1 + $0x28] sm:$0xff]
    %v3231 = vld [vmem:[%s1 + $0x30] sm:$0xff]
    %v3232 = vld [vmem:[%s1 + $0x38] sm:$0xff]
    %v3233 = vadd.f32 %v3225, %v3217
    %v3234 = vadd.f32 %v3226, %v3218
    %v3235 = vadd.f32 %v3227, %v3219
    %v3236 = vadd.f32 %v3228, %v3220
    %v3237 = vadd.f32 %v3229, %v3221
    %v3238 = vadd.f32 %v3230, %v3222
    %v3239 = vadd.f32 %v3231, %v3223
    %v3240 = vadd.f32 %v3232, %v3224
    %3241 = vst [vmem:[#allocation2] sm:$0xff] %v3233
    %3242 = vst [vmem:[#allocation2 + $0x8] sm:$0xff] %v3234
    %3243 = vst [vmem:[#allocation2 + $0x10] sm:$0xff] %v3235
    %3244 = vst [vmem:[#allocation2 + $0x18] sm:$0xff] %v3236
    %3245 = vst [vmem:[#allocation2 + $0x20] sm:$0xff] %v3237
    %3246 = vst [vmem:[#allocation2 + $0x28] sm:$0xff] %v3238
    %3247 = vst [vmem:[#allocation2 + $0x30] sm:$0xff] %v3239
    %3248 = vst [vmem:[#allocation2 + $0x38] sm:$0xff] %v3240
    // Predicated region
    $region34: #{tpu_custom_call.1} parent=1 // pred_check
      _
    $region35: #{tpu_custom_call.1} parent=1 // pred_check_branch
      %3250 = sbr.rel (0) target = $region37
    $region36: #{tpu_custom_call.1} parent=1 // pred_region
      %s3252 = ssub.s32 1024, 1024
      %3253 = vsyncadd [#allocation3], %s3252
      %s3254 = sshll.u32 [#allocation2], 4
      %s3255 = int_to_ptr.vmem [resolvable:$true] %s3254
      %3260 = dma.vmem_to_hbm [thread:$0]  %s3255, 1024, %s8, [#allocation3], 256, 256, 16
    $region37: #{tpu_custom_call.1} parent=1 // pred_fallthru
      _
    // Predicated region
    $region38: #{tpu_custom_call.1} parent=1 // pred_check
      _
    $region39: #{tpu_custom_call.1} parent=1 // pred_check_branch
      %3262 = sbr.rel (0) target = $region41
    $region40: #{tpu_custom_call.1} parent=1 // pred_region
      %3263 = dma.done [#allocation3], 1024
    $region41: #{tpu_custom_call.1} parent=1 // pred_fallthru
      _
    %3264 = vsyncpa [#allocation3], 1

// kernel: tpu_custom_call.1
$region0: #{tpu_custom_call.1}
  #allocation0 [shape = 'u32[]', space=smem, size = 0x4, offset = 0x4, fixed_abs, tag = 'smem constant byte address 0x4 - core index']
  #allocation1 [shape = 'u32[144,128]{1,0:T(1,128)}', space=vmem, size = 0x12000, scoped, tag = 'internal scratch']
  %s0 = inlined_call_operand.vmem [shape: bf16[288,256], index: 0, kind: input, shape index: {}]
  %s1 = inlined_call_operand.vmem [shape: f32[32,256], index: 1, kind: input, shape index: {}]
  %s2 = inlined_call_operand.vmem [shape: bf16[256,288], index: 2, kind: input, shape index: {}]
  %s3 = inlined_call_operand.vmem [shape: f32[256,1], index: 3, kind: input, shape index: {}]
  %s4 = inlined_call_operand.vmem [shape: bf16[512,256], index: 4, kind: input, shape index: {}]
  %s5 = inlined_call_operand.vmem [shape: f32[512,1], index: 5, kind: input, shape index: {}]
  %s6 = inlined_call_operand.vmem [shape: bf16[32,512], index: 6, kind: input, shape index: {}]
  %s7 = inlined_call_operand.vmem [shape: f32[32,1], index: 7, kind: input, shape index: {}]
  %s8 = inlined_call_operand.hbm [shape: f32[32,256], index: 8, kind: output, shape index: {}]
  %s9 = sld [smem:[#allocation0]]
  $region42: #{tpu_custom_call.1} parent=0
    _
  %s11 = ssub.s32 1, %s9
  %s12 = scalar_select 0, %s11, %s9
  $region1: #{tpu_custom_call.1} parent=0
    #allocation2 [shape = 'u8[32768]{0}', space=vmem, size = 0x8000, scoped, tag = 'output window, operand 0, single buffered']
    #allocation3 [shape = 's32[1]{0}', space=sflag, size = 0x4, scoped, tag = 'scoped memory for tpu_custom_call.1']
    %13 = vsyncpa [#allocation3], 0
    // Predicated region
    $region2: #{tpu_custom_call.1} parent=1 // pred_check
      _
    $region3: #{tpu_custom_call.1} parent=1 // pred_check_branch
      %15 = sbr.rel (0) target = $region5
    $region4: #{tpu_custom_call.1} parent=1 // pred_region
      _
    $region5: #{tpu_custom_call.1} parent=1 // pred_fallthru
      _
    // Predicated region
    $region6: #{tpu_custom_call.1} parent=1 // pred_check
      _
    $region7: #{tpu_custom_call.1} parent=1 // pred_check_branch
      %17 = sbr.rel (0) target = $region9
    $region8: #{tpu_custom_call.1} parent=1 // pred_region
      _
    $region9: #{tpu_custom_call.1} parent=1 // pred_fallthru
      _
    // Predicated region
    $region10: #{tpu_custom_call.1} parent=1 // pred_check
      _
    $region11: #{tpu_custom_call.1} parent=1 // pred_check_branch
      %19 = sbr.rel (0) target = $region13
    $region12: #{tpu_custom_call.1} parent=1 // pred_region
      _
    $region13: #{tpu_custom_call.1} parent=1 // pred_fallthru
      _
    // Predicated region
    $region14: #{tpu_custom_call.1} parent=1 // pred_check
      _
    $region15: #{tpu_custom_call.1} parent=1 // pred_check_branch
      %21 = sbr.rel (0) target = $region17
    $region16: #{tpu_custom_call.1} parent=1 // pred_region
      _
    $region17: #{tpu_custom_call.1} parent=1 // pred_fallthru
      _
    // Predicated region
    $region18: #{tpu_custom_call.1} parent=1 // pred_check
      _
    $region19: #{tpu_custom_call.1} parent=1 // pred_check_branch
      %23 = sbr.rel (0) target = $region21
    $region20: #{tpu_custom_call.1} parent=1 // pred_region
      _
    $region21: #{tpu_custom_call.1} parent=1 // pred_fallthru
      _
    // Predicated region
    $region22: #{tpu_custom_call.1} parent=1 // pred_check
      _
    $region23: #{tpu_custom_call.1} parent=1 // pred_check_branch
      %25 = sbr.rel (0) target = $region25
    $region24: #{tpu_custom_call.1} parent=1 // pred_region
      _
    $region25: #{tpu_custom_call.1} parent=1 // pred_fallthru
      _
    // Predicated region
    $region26: #{tpu_custom_call.1} parent=1 // pred_check
      _
    $region27: #{tpu_custom_call.1} parent=1 // pred_check_branch
      %27 = sbr.rel (0) target = $region29
    $region28: #{tpu_custom_call.1} parent=1 // pred_region
      _
    $region29: #{tpu_custom_call.1} parent=1 // pred_fallthru
      _
    // Predicated region
    $region30: #{tpu_custom_call.1} parent=1 // pred_check
      _
    $region31: #{tpu_custom_call.1} parent=1 // pred_check_branch
      %29 = sbr.rel (0) target = $region33
    $region32: #{tpu_custom_call.1} parent=1 // pred_region
      _
    $region33: #{tpu_custom_call.1} parent=1 // pred_fallthru
      _
    %v35 = vld [vmem:[%s2] sm:$0xff]
    %v36 = vld [vmem:[%s2 + $0x8] sm:$0xf]
    %v37 = vld [vmem:[%s2 + $0xc] sm:$0xff]
    %v38 = vld [vmem:[%s2 + $0x14] sm:$0xf]
    %v39 = vld [vmem:[%s2 + $0x18] sm:$0xff]
    %v40 = vld [vmem:[%s2 + $0x20] sm:$0xf]
    %v41 = vld [vmem:[%s2 + $0x24] sm:$0xff]
    %v42 = vld [vmem:[%s2 + $0x2c] sm:$0xf]
    %v43 = vld [vmem:[%s2 + $0x30] sm:$0xff]
    %v44 = vld [vmem:[%s2 + $0x38] sm:$0xf]
    %v45 = vld [vmem:[%s2 + $0x3c] sm:$0xff]
    %v46 = vld [vmem:[%s2 + $0x44] sm:$0xf]
    %v47 = vld [vmem:[%s2 + $0x48] sm:$0xff]
    %v48 = vld [vmem:[%s2 + $0x50] sm:$0xf]
    %v49 = vld [vmem:[%s2 + $0x54] sm:$0xff]
    %v50 = vld [vmem:[%s2 + $0x5c] sm:$0xf]
    %v51 = vld [vmem:[%s2 + $0x60] sm:$0xff]
    %v52 = vld [vmem:[%s2 + $0x68] sm:$0xf]
    %v53 = vld [vmem:[%s2 + $0x6c] sm:$0xff]
    %v54 = vld [vmem:[%s2 + $0x74] sm:$0xf]
    %v55 = vld [vmem:[%s2 + $0x78] sm:$0xff]
    %v56 = vld [vmem:[%s2 + $0x80] sm:$0xf]
    %v57 = vld [vmem:[%s2 + $0x84] sm:$0xff]
    %v58 = vld [vmem:[%s2 + $0x8c] sm:$0xf]
    %v59 = vld [vmem:[%s2 + $0x90] sm:$0xff]
    %v60 = vld [vmem:[%s2 + $0x98] sm:$0xf]
    %v61 = vld [vmem:[%s2 + $0x9c] sm:$0xff]
    %v62 = vld [vmem:[%s2 + $0xa4] sm:$0xf]
    %v63 = vld [vmem:[%s2 + $0xa8] sm:$0xff]
    %v64 = vld [vmem:[%s2 + $0xb0] sm:$0xf]
    %v65 = vld [vmem:[%s2 + $0xb4] sm:$0xff]
    %v66 = vld [vmem:[%s2 + $0xbc] sm:$0xf]
    %v67 = vld [vmem:[%s2 + $0xc0] sm:$0xff]
    %v68 = vld [vmem:[%s2 + $0xc8] sm:$0xf]
    %v69 = vld [vmem:[%s2 + $0xcc] sm:$0xff]
    %v70 = vld [vmem:[%s2 + $0xd4] sm:$0xf]
    %v71 = vld [vmem:[%s2 + $0xd8] sm:$0xff]
    %v72 = vld [vmem:[%s2 + $0xe0] sm:$0xf]
    %v73 = vld [vmem:[%s2 + $0xe4] sm:$0xff]
    %v74 = vld [vmem:[%s2 + $0xec] sm:$0xf]
    %v75 = vld [vmem:[%s2 + $0xf0] sm:$0xff]
    %v76 = vld [vmem:[%s2 + $0xf8] sm:$0xf]
    %v77 = vld [vmem:[%s2 + $0xfc] sm:$0xff]
    %v78 = vld [vmem:[%s2 + $0x104] sm:$0xf]
    %v79 = vld [vmem:[%s2 + $0x108] sm:$0xff]
    %v80 = vld [vmem:[%s2 + $0x110] sm:$0xf]
    %v81 = vld [vmem:[%s2 + $0x114] sm:$0xff]
    %v82 = vld [vmem:[%s2 + $0x11c] sm:$0xf]
    %v83 = vld [vmem:[%s2 + $0x120] sm:$0xff]
    %v84 = vld [vmem:[%s2 + $0x128] sm:$0xf]
    %v85 = vld [vmem:[%s2 + $0x12c] sm:$0xff]
    %v86 = vld [vmem:[%s2 + $0x134] sm:$0xf]
    %v87 = vld [vmem:[%s2 + $0x138] sm:$0xff]
    %v88 = vld [vmem:[%s2 + $0x140] sm:$0xf]
    %v89 = vld [vmem:[%s2 + $0x144] sm:$0xff]
    %v90 = vld [vmem:[%s2 + $0x14c] sm:$0xf]
    %v91 = vld [vmem:[%s2 + $0x150] sm:$0xff]
    %v92 = vld [vmem:[%s2 + $0x158] sm:$0xf]
    %v93 = vld [vmem:[%s2 + $0x15c] sm:$0xff]
    %v94 = vld [vmem:[%s2 + $0x164] sm:$0xf]
    %v95 = vld [vmem:[%s2 + $0x168] sm:$0xff]
    %v96 = vld [vmem:[%s2 + $0x170] sm:$0xf]
    %v97 = vld [vmem:[%s2 + $0x174] sm:$0xff]
    %v98 = vld [vmem:[%s2 + $0x17c] sm:$0xf]
    %v99 = vld [vmem:[%s0] sm:$0xff]
    %v100 = vld [vmem:[%s0 + $0x8] sm:$0xff]
    %v101 = vld [vmem:[%s0 + $0x10] sm:$0xff]
    %v102 = vld [vmem:[%s0 + $0x18] sm:$0xff]
    %v103 = vld [vmem:[%s0 + $0x20] sm:$0xff]
    %v104 = vld [vmem:[%s0 + $0x28] sm:$0xff]
    %v105 = vld [vmem:[%s0 + $0x30] sm:$0xff]
    %v106 = vld [vmem:[%s0 + $0x38] sm:$0xff]
    %v107 = vld [vmem:[%s0 + $0x40] sm:$0xff]
    %v108 = vld [vmem:[%s0 + $0x48] sm:$0xff]
    %v109 = vld [vmem:[%s0 + $0x50] sm:$0xff]
    %v110 = vld [vmem:[%s0 + $0x58] sm:$0xff]
    %v111 = vld [vmem:[%s0 + $0x60] sm:$0xff]
    %v112 = vld [vmem:[%s0 + $0x68] sm:$0xff]
    %v113 = vld [vmem:[%s0 + $0x70] sm:$0xff]
    %v114 = vld [vmem:[%s0 + $0x78] sm:$0xff]
    %v115 = vld [vmem:[%s0 + $0x80] sm:$0xff]
    %v116 = vld [vmem:[%s0 + $0x88] sm:$0xff]
    %v117 = vld [vmem:[%s0 + $0x90] sm:$0xff]
    %v118 = vld [vmem:[%s0 + $0x98] sm:$0xff]
    %v119 = vld [vmem:[%s0 + $0xa0] sm:$0xff]
    %v120 = vld [vmem:[%s0 + $0xa8] sm:$0xff]
    %v121 = vld [vmem:[%s0 + $0xb0] sm:$0xff]
    %v122 = vld [vmem:[%s0 + $0xb8] sm:$0xff]
    %v123 = vld [vmem:[%s0 + $0xc0] sm:$0xff]
    %v124 = vld [vmem:[%s0 + $0xc8] sm:$0xff]
    %v125 = vld [vmem:[%s0 + $0xd0] sm:$0xff]
    %v126 = vld [vmem:[%s0 + $0xd8] sm:$0xff]
    %v127 = vld [vmem:[%s0 + $0xe0] sm:$0xff]
    %v128 = vld [vmem:[%s0 + $0xe8] sm:$0xff]
    %v129 = vld [vmem:[%s0 + $0xf0] sm:$0xff]
    %v130 = vld [vmem:[%s0 + $0xf8] sm:$0xff]
    %v131 = vld [vmem:[%s0 + $0x100] sm:$0xff]
    %v132 = vld [vmem:[%s0 + $0x108] sm:$0xff]
    %v133 = vld [vmem:[%s0 + $0x110] sm:$0xff]
    %v134 = vld [vmem:[%s0 + $0x118] sm:$0xff]
    %v135 = vld [vmem:[%s3] sm:$0xff]
    %v136 = vld [vmem:[%s3 + $0x8] sm:$0xff]
    %v137 = vld [vmem:[%s3 + $0x10] sm:$0xff]
    %v138 = vld [vmem:[%s3 + $0x18] sm:$0xff]
    %v139 = vld [vmem:[%s3 + $0x20] sm:$0xff]
    %v140 = vld [vmem:[%s3 + $0x28] sm:$0xff]
    %v141 = vld [vmem:[%s3 + $0x30] sm:$0xff]
    %v142 = vld [vmem:[%s3 + $0x38] sm:$0xff]
    %v143 = vld [vmem:[%s3 + $0x40] sm:$0xff]
    %v144 = vld [vmem:[%s3 + $0x48] sm:$0xff]
    %v145 = vld [vmem:[%s3 + $0x50] sm:$0xff]
    %v146 = vld [vmem:[%s3 + $0x58] sm:$0xff]
    %v147 = vld [vmem:[%s3 + $0x60] sm:$0xff]
    %v148 = vld [vmem:[%s3 + $0x68] sm:$0xff]
    %v149 = vld [vmem:[%s3 + $0x70] sm:$0xff]
    %v150 = vld [vmem:[%s3 + $0x78] sm:$0xff]
    %v151 = vld [vmem:[%s3 + $0x80] sm:$0xff]
    %v152 = vld [vmem:[%s3 + $0x88] sm:$0xff]
    %v153 = vld [vmem:[%s3 + $0x90] sm:$0xff]
    %v154 = vld [vmem:[%s3 + $0x98] sm:$0xff]
    %v155 = vld [vmem:[%s3 + $0xa0] sm:$0xff]
    %v156 = vld [vmem:[%s3 + $0xa8] sm:$0xff]
    %v157 = vld [vmem:[%s3 + $0xb0] sm:$0xff]
    %v158 = vld [vmem:[%s3 + $0xb8] sm:$0xff]
    %v159 = vld [vmem:[%s3 + $0xc0] sm:$0xff]
    %v160 = vld [vmem:[%s3 + $0xc8] sm:$0xff]
    %v161 = vld [vmem:[%s3 + $0xd0] sm:$0xff]
    %v162 = vld [vmem:[%s3 + $0xd8] sm:$0xff]
    %v163 = vld [vmem:[%s3 + $0xe0] sm:$0xff]
    %v164 = vld [vmem:[%s3 + $0xe8] sm:$0xff]
    %v165 = vld [vmem:[%s3 + $0xf0] sm:$0xff]
    %v166 = vld [vmem:[%s3 + $0xf8] sm:$0xff]
    %168 = vset.pattern.permute.xlu0 0
    %169 = vperm.xlu0 %168, %v135
    %v170 = vpop.permute.xlu0 %169
    %173 = vset.pattern.permute.xlu0 0
    %174 = vperm.xlu0 %173, %v136
    %v175 = vpop.permute.xlu0 %174
    %178 = vset.pattern.permute.xlu0 0
    %179 = vperm.xlu0 %178, %v137
    %v180 = vpop.permute.xlu0 %179
    %183 = vset.pattern.permute.xlu0 0
    %184 = vperm.xlu0 %183, %v138
    %v185 = vpop.permute.xlu0 %184
    %188 = vset.pattern.permute.xlu0 0
    %189 = vperm.xlu0 %188, %v139
    %v190 = vpop.permute.xlu0 %189
    %193 = vset.pattern.permute.xlu0 0
    %194 = vperm.xlu0 %193, %v140
    %v195 = vpop.permute.xlu0 %194
    %198 = vset.pattern.permute.xlu0 0
    %199 = vperm.xlu0 %198, %v141
    %v200 = vpop.permute.xlu0 %199
    %203 = vset.pattern.permute.xlu0 0
    %204 = vperm.xlu0 %203, %v142
    %v205 = vpop.permute.xlu0 %204
    %208 = vset.pattern.permute.xlu0 0
    %209 = vperm.xlu0 %208, %v143
    %v210 = vpop.permute.xlu0 %209
    %213 = vset.pattern.permute.xlu0 0
    %214 = vperm.xlu0 %213, %v144
    %v215 = vpop.permute.xlu0 %214
    %218 = vset.pattern.permute.xlu0 0
    %219 = vperm.xlu0 %218, %v145
    %v220 = vpop.permute.xlu0 %219
    %223 = vset.pattern.permute.xlu0 0
    %224 = vperm.xlu0 %223, %v146
    %v225 = vpop.permute.xlu0 %224
    %228 = vset.pattern.permute.xlu0 0
    %229 = vperm.xlu0 %228, %v147
    %v230 = vpop.permute.xlu0 %229
    %233 = vset.pattern.permute.xlu0 0
    %234 = vperm.xlu0 %233, %v148
    %v235 = vpop.permute.xlu0 %234
    %238 = vset.pattern.permute.xlu0 0
    %239 = vperm.xlu0 %238, %v149
    %v240 = vpop.permute.xlu0 %239
    %243 = vset.pattern.permute.xlu0 0
    %244 = vperm.xlu0 %243, %v150
    %v245 = vpop.permute.xlu0 %244
    %248 = vset.pattern.permute.xlu0 0
    %249 = vperm.xlu0 %248, %v151
    %v250 = vpop.permute.xlu0 %249
    %253 = vset.pattern.permute.xlu0 0
    %254 = vperm.xlu0 %253, %v152
    %v255 = vpop.permute.xlu0 %254
    %258 = vset.pattern.permute.xlu0 0
    %259 = vperm.xlu0 %258, %v153
    %v260 = vpop.permute.xlu0 %259
    %263 = vset.pattern.permute.xlu0 0
    %264 = vperm.xlu0 %263, %v154
    %v265 = vpop.permute.xlu0 %264
    %268 = vset.pattern.permute.xlu0 0
    %269 = vperm.xlu0 %268, %v155
    %v270 = vpop.permute.xlu0 %269
    %273 = vset.pattern.permute.xlu0 0
    %274 = vperm.xlu0 %273, %v156
    %v275 = vpop.permute.xlu0 %274
    %278 = vset.pattern.permute.xlu0 0
    %279 = vperm.xlu0 %278, %v157
    %v280 = vpop.permute.xlu0 %279
    %283 = vset.pattern.permute.xlu0 0
    %284 = vperm.xlu0 %283, %v158
    %v285 = vpop.permute.xlu0 %284
    %288 = vset.pattern.permute.xlu0 0
    %289 = vperm.xlu0 %288, %v159
    %v290 = vpop.permute.xlu0 %289
    %293 = vset.pattern.permute.xlu0 0
    %294 = vperm.xlu0 %293, %v160
    %v295 = vpop.permute.xlu0 %294
    %298 = vset.pattern.permute.xlu0 0
    %299 = vperm.xlu0 %298, %v161
    %v300 = vpop.permute.xlu0 %299
    %303 = vset.pattern.permute.xlu0 0
    %304 = vperm.xlu0 %303, %v162
    %v305 = vpop.permute.xlu0 %304
    %308 = vset.pattern.permute.xlu0 0
    %309 = vperm.xlu0 %308, %v163
    %v310 = vpop.permute.xlu0 %309
    %313 = vset.pattern.permute.xlu0 0
    %314 = vperm.xlu0 %313, %v164
    %v315 = vpop.permute.xlu0 %314
    %318 = vset.pattern.permute.xlu0 0
    %319 = vperm.xlu0 %318, %v165
    %v320 = vpop.permute.xlu0 %319
    %323 = vset.pattern.permute.xlu0 0
    %324 = vperm.xlu0 %323, %v166
    %v325 = vpop.permute.xlu0 %324
    %v391 = vunpack.c.l.b16 %v35
    %v392 = vunpack.c.h.b16 %v35
    %v393 = vunpack.c.l.b16 %v36
    %v394 = vunpack.c.l.b16 %v37
    %v395 = vunpack.c.h.b16 %v37
    %v396 = vunpack.c.l.b16 %v38
    %v397 = vunpack.c.l.b16 %v39
    %v398 = vunpack.c.h.b16 %v39
    %v399 = vunpack.c.l.b16 %v40
    %v400 = vunpack.c.l.b16 %v41
    %v401 = vunpack.c.h.b16 %v41
    %v402 = vunpack.c.l.b16 %v42
    %v403 = vunpack.c.l.b16 %v43
    %v404 = vunpack.c.h.b16 %v43
    %v405 = vunpack.c.l.b16 %v44
    %v406 = vunpack.c.l.b16 %v45
    %v407 = vunpack.c.h.b16 %v45
    %v408 = vunpack.c.l.b16 %v46
    %v409 = vunpack.c.l.b16 %v47
    %v410 = vunpack.c.h.b16 %v47
    %v411 = vunpack.c.l.b16 %v48
    %v412 = vunpack.c.l.b16 %v49
    %v413 = vunpack.c.h.b16 %v49
    %v414 = vunpack.c.l.b16 %v50
    %v415 = vunpack.c.l.b16 %v51
    %v416 = vunpack.c.h.b16 %v51
    %v417 = vunpack.c.l.b16 %v52
    %v418 = vunpack.c.l.b16 %v53
    %v419 = vunpack.c.h.b16 %v53
    %v420 = vunpack.c.l.b16 %v54
    %v421 = vunpack.c.l.b16 %v55
    %v422 = vunpack.c.h.b16 %v55
    %v423 = vunpack.c.l.b16 %v56
    %v424 = vunpack.c.l.b16 %v57
    %v425 = vunpack.c.h.b16 %v57
    %v426 = vunpack.c.l.b16 %v58
    %v427 = vunpack.c.l.b16 %v59
    %v428 = vunpack.c.h.b16 %v59
    %v429 = vunpack.c.l.b16 %v60
    %v430 = vunpack.c.l.b16 %v61
    %v431 = vunpack.c.h.b16 %v61
    %v432 = vunpack.c.l.b16 %v62
    %v433 = vunpack.c.l.b16 %v63
    %v434 = vunpack.c.h.b16 %v63
    %v435 = vunpack.c.l.b16 %v64
    %v436 = vunpack.c.l.b16 %v65
    %v437 = vunpack.c.h.b16 %v65
    %v438 = vunpack.c.l.b16 %v66
    %v439 = vunpack.c.l.b16 %v67
    %v440 = vunpack.c.h.b16 %v67
    %v441 = vunpack.c.l.b16 %v68
    %v442 = vunpack.c.l.b16 %v69
    %v443 = vunpack.c.h.b16 %v69
    %v444 = vunpack.c.l.b16 %v70
    %v445 = vunpack.c.l.b16 %v71
    %v446 = vunpack.c.h.b16 %v71
    %v447 = vunpack.c.l.b16 %v72
    %v448 = vunpack.c.l.b16 %v73
    %v449 = vunpack.c.h.b16 %v73
    %v450 = vunpack.c.l.b16 %v74
    %v451 = vunpack.c.l.b16 %v75
    %v452 = vunpack.c.h.b16 %v75
    %v453 = vunpack.c.l.b16 %v76
    %v454 = vunpack.c.l.b16 %v77
    %v455 = vunpack.c.h.b16 %v77
    %v456 = vunpack.c.l.b16 %v78
    %v457 = vunpack.c.l.b16 %v79
    %v458 = vunpack.c.h.b16 %v79
    %v459 = vunpack.c.l.b16 %v80
    %v460 = vunpack.c.l.b16 %v81
    %v461 = vunpack.c.h.b16 %v81
    %v462 = vunpack.c.l.b16 %v82
    %v463 = vunpack.c.l.b16 %v83
    %v464 = vunpack.c.h.b16 %v83
    %v465 = vunpack.c.l.b16 %v84
    %v466 = vunpack.c.l.b16 %v85
    %v467 = vunpack.c.h.b16 %v85
    %v468 = vunpack.c.l.b16 %v86
    %v469 = vunpack.c.l.b16 %v87
    %v470 = vunpack.c.h.b16 %v87
    %v471 = vunpack.c.l.b16 %v88
    %v472 = vunpack.c.l.b16 %v89
    %v473 = vunpack.c.h.b16 %v89
    %v474 = vunpack.c.l.b16 %v90
    %v475 = vunpack.c.l.b16 %v91
    %v476 = vunpack.c.h.b16 %v91
    %v477 = vunpack.c.l.b16 %v92
    %v478 = vunpack.c.l.b16 %v93
    %v479 = vunpack.c.h.b16 %v93
    %v480 = vunpack.c.l.b16 %v94
    %v481 = vunpack.c.l.b16 %v95
    %v482 = vunpack.c.h.b16 %v95
    %v483 = vunpack.c.l.b16 %v96
    %v484 = vunpack.c.l.b16 %v97
    %v485 = vunpack.c.h.b16 %v97
    %v486 = vunpack.c.l.b16 %v98
    %v487 = vpack.c.b16 %v394, %v391
    %v488 = vpack.c.b16 %v395, %v392
    %v489 = vpack.c.b16 %v396, %v393
    %v490 = vpack.c.b16 %v400, %v397
    %v491 = vpack.c.b16 %v401, %v398
    %v492 = vpack.c.b16 %v402, %v399
    %v493 = vpack.c.b16 %v406, %v403
    %v494 = vpack.c.b16 %v407, %v404
    %v495 = vpack.c.b16 %v408, %v405
    %v496 = vpack.c.b16 %v412, %v409
    %v497 = vpack.c.b16 %v413, %v410
    %v498 = vpack.c.b16 %v414, %v411
    %v499 = vpack.c.b16 %v418, %v415
    %v500 = vpack.c.b16 %v419, %v416
    %v501 = vpack.c.b16 %v420, %v417
    %v502 = vpack.c.b16 %v424, %v421
    %v503 = vpack.c.b16 %v425, %v422
    %v504 = vpack.c.b16 %v426, %v423
    %v505 = vpack.c.b16 %v430, %v427
    %v506 = vpack.c.b16 %v431, %v428
    %v507 = vpack.c.b16 %v432, %v429
    %v508 = vpack.c.b16 %v436, %v433
    %v509 = vpack.c.b16 %v437, %v434
    %v510 = vpack.c.b16 %v438, %v435
    %v511 = vpack.c.b16 %v442, %v439
    %v512 = vpack.c.b16 %v443, %v440
    %v513 = vpack.c.b16 %v444, %v441
    %v514 = vpack.c.b16 %v448, %v445
    %v515 = vpack.c.b16 %v449, %v446
    %v516 = vpack.c.b16 %v450, %v447
    %v517 = vpack.c.b16 %v454, %v451
    %v518 = vpack.c.b16 %v455, %v452
    %v519 = vpack.c.b16 %v456, %v453
    %v520 = vpack.c.b16 %v460, %v457
    %v521 = vpack.c.b16 %v461, %v458
    %v522 = vpack.c.b16 %v462, %v459
    %v523 = vpack.c.b16 %v466, %v463
    %v524 = vpack.c.b16 %v467, %v464
    %v525 = vpack.c.b16 %v468, %v465
    %v526 = vpack.c.b16 %v472, %v469
    %v527 = vpack.c.b16 %v473, %v470
    %v528 = vpack.c.b16 %v474, %v471
    %v529 = vpack.c.b16 %v478, %v475
    %v530 = vpack.c.b16 %v479, %v476
    %v531 = vpack.c.b16 %v480, %v477
    %v532 = vpack.c.b16 %v484, %v481
    %v533 = vpack.c.b16 %v485, %v482
    %v534 = vpack.c.b16 %v486, %v483
    %v603 = vunpack.c.l.b16 %v99
    %v604 = vunpack.c.h.b16 %v99
    %v605 = vunpack.c.l.b16 %v100
    %v606 = vunpack.c.h.b16 %v100
    %v607 = vunpack.c.l.b16 %v101
    %v608 = vunpack.c.h.b16 %v101
    %v609 = vunpack.c.l.b16 %v102
    %v610 = vunpack.c.h.b16 %v102
    %v611 = vunpack.c.l.b16 %v103
    %v612 = vunpack.c.h.b16 %v103
    %v613 = vunpack.c.l.b16 %v104
    %v614 = vunpack.c.h.b16 %v104
    %v615 = vunpack.c.l.b16 %v105
    %v616 = vunpack.c.h.b16 %v105
    %v617 = vunpack.c.l.b16 %v106
    %v618 = vunpack.c.h.b16 %v106
    %v619 = vunpack.c.l.b16 %v107
    %v620 = vunpack.c.h.b16 %v107
    %v621 = vunpack.c.l.b16 %v108
    %v622 = vunpack.c.h.b16 %v108
    %v623 = vunpack.c.l.b16 %v109
    %v624 = vunpack.c.h.b16 %v109
    %v625 = vunpack.c.l.b16 %v110
    %v626 = vunpack.c.h.b16 %v110
    %v627 = vunpack.c.l.b16 %v111
    %v628 = vunpack.c.h.b16 %v111
    %v629 = vunpack.c.l.b16 %v112
    %v630 = vunpack.c.h.b16 %v112
    %v631 = vunpack.c.l.b16 %v113
    %v632 = vunpack.c.h.b16 %v113
    %v633 = vunpack.c.l.b16 %v114
    %v634 = vunpack.c.h.b16 %v114
    %v635 = vunpack.c.l.b16 %v115
    %v636 = vunpack.c.h.b16 %v115
    %v637 = vunpack.c.l.b16 %v116
    %v638 = vunpack.c.h.b16 %v116
    %v639 = vunpack.c.l.b16 %v117
    %v640 = vunpack.c.h.b16 %v117
    %v641 = vunpack.c.l.b16 %v118
    %v642 = vunpack.c.h.b16 %v118
    %v643 = vunpack.c.l.b16 %v119
    %v644 = vunpack.c.h.b16 %v119
    %v645 = vunpack.c.l.b16 %v120
    %v646 = vunpack.c.h.b16 %v120
    %v647 = vunpack.c.l.b16 %v121
    %v648 = vunpack.c.h.b16 %v121
    %v649 = vunpack.c.l.b16 %v122
    %v650 = vunpack.c.h.b16 %v122
    %v651 = vunpack.c.l.b16 %v123
    %v652 = vunpack.c.h.b16 %v123
    %v653 = vunpack.c.l.b16 %v124
    %v654 = vunpack.c.h.b16 %v124
    %v655 = vunpack.c.l.b16 %v125
    %v656 = vunpack.c.h.b16 %v125
    %v657 = vunpack.c.l.b16 %v126
    %v658 = vunpack.c.h.b16 %v126
    %v659 = vunpack.c.l.b16 %v127
    %v660 = vunpack.c.h.b16 %v127
    %v661 = vunpack.c.l.b16 %v128
    %v662 = vunpack.c.h.b16 %v128
    %v663 = vunpack.c.l.b16 %v129
    %v664 = vunpack.c.h.b16 %v129
    %v665 = vunpack.c.l.b16 %v130
    %v666 = vunpack.c.h.b16 %v130
    %v667 = vunpack.c.l.b16 %v131
    %v668 = vunpack.c.h.b16 %v131
    %v669 = vunpack.c.l.b16 %v132
    %v670 = vunpack.c.h.b16 %v132
    %v671 = vunpack.c.l.b16 %v133
    %v672 = vunpack.c.h.b16 %v133
    %v673 = vunpack.c.l.b16 %v134
    %v674 = vunpack.c.h.b16 %v134
    %v675 = vpack.c.b16 %v605, %v603
    %v676 = vpack.c.b16 %v606, %v604
    %v677 = vpack.c.b16 %v609, %v607
    %v678 = vpack.c.b16 %v610, %v608
    %v679 = vpack.c.b16 %v613, %v611
    %v680 = vpack.c.b16 %v614, %v612
    %v681 = vpack.c.b16 %v617, %v615
    %v682 = vpack.c.b16 %v618, %v616
    %v683 = vpack.c.b16 %v621, %v619
    %v684 = vpack.c.b16 %v622, %v620
    %v685 = vpack.c.b16 %v625, %v623
    %v686 = vpack.c.b16 %v626, %v624
    %v687 = vpack.c.b16 %v629, %v627
    %v688 = vpack.c.b16 %v630, %v628
    %v689 = vpack.c.b16 %v633, %v631
    %v690 = vpack.c.b16 %v634, %v632
    %v691 = vpack.c.b16 %v637, %v635
    %v692 = vpack.c.b16 %v638, %v636
    %v693 = vpack.c.b16 %v641, %v639
    %v694 = vpack.c.b16 %v642, %v640
    %v695 = vpack.c.b16 %v645, %v643
    %v696 = vpack.c.b16 %v646, %v644
    %v697 = vpack.c.b16 %v649, %v647
    %v698 = vpack.c.b16 %v650, %v648
    %v699 = vpack.c.b16 %v653, %v651
    %v700 = vpack.c.b16 %v654, %v652
    %v701 = vpack.c.b16 %v657, %v655
    %v702 = vpack.c.b16 %v658, %v656
    %v703 = vpack.c.b16 %v661, %v659
    %v704 = vpack.c.b16 %v662, %v660
    %v705 = vpack.c.b16 %v665, %v663
    %v706 = vpack.c.b16 %v666, %v664
    %v707 = vpack.c.b16 %v669, %v667
    %v708 = vpack.c.b16 %v670, %v668
    %v709 = vpack.c.b16 %v673, %v671
    %v710 = vpack.c.b16 %v674, %v672
    %vm747 = vcmask 261120
    %v749 = vsel %vm747, %v489, 0
    %v752 = vsel %vm747, %v492, 0
    %v755 = vsel %vm747, %v495, 0
    %v758 = vsel %vm747, %v498, 0
    %v761 = vsel %vm747, %v501, 0
    %v764 = vsel %vm747, %v504, 0
    %v767 = vsel %vm747, %v507, 0
    %v770 = vsel %vm747, %v510, 0
    %v773 = vsel %vm747, %v513, 0
    %v776 = vsel %vm747, %v516, 0
    %v779 = vsel %vm747, %v519, 0
    %v782 = vsel %vm747, %v522, 0
    %v785 = vsel %vm747, %v525, 0
    %v788 = vsel %vm747, %v528, 0
    %v791 = vsel %vm747, %v531, 0
    %v794 = vsel %vm747, %v534, 0
    %796 = vmatprep.subr.bf16.mxu0 %v676
    %797 = vmatpush1.bf16.msra.mxu0 %v675
    %798 = vmatprep.subr.bf16.mxu0 %v678
    %799 = vmatpush1.bf16.msra.mxu0 %v677
    %800 = vmatprep.subr.bf16.mxu0 %v680
    %801 = vmatpush1.bf16.msra.mxu0 %v679
    %802 = vmatprep.subr.bf16.mxu0 %v682
    %803 = vmatpush1.bf16.msra.mxu0 %v681
    %804 = vmatprep.subr.bf16.mxu0 %v684
    %805 = vmatpush1.bf16.msra.mxu0 %v683
    %806 = vmatprep.subr.bf16.mxu0 %v686
    %807 = vmatpush1.bf16.msra.mxu0 %v685
    %808 = vmatprep.subr.bf16.mxu0 %v688
    %809 = vmatpush1.bf16.msra.mxu0 %v687
    %810 = vmatprep.subr.bf16.mxu0 %v690
    %811 = vmatpush1.bf16.msra.mxu0 %v689
    %812 = vmatprep.subr.bf16.mxu0 %v692
    %813 = vmatpush1.bf16.msra.mxu0 %v691
    %814 = vmatprep.subr.bf16.mxu0 %v694
    %815 = vmatpush1.bf16.msra.mxu0 %v693
    %816 = vmatprep.subr.bf16.mxu0 %v696
    %817 = vmatpush1.bf16.msra.mxu0 %v695
    %818 = vmatprep.subr.bf16.mxu0 %v698
    %819 = vmatpush1.bf16.msra.mxu0 %v697
    %820 = vmatprep.subr.bf16.mxu0 %v700
    %821 = vmatpush1.bf16.msra.mxu0 %v699
    %822 = vmatprep.subr.bf16.mxu0 %v702
    %823 = vmatpush1.bf16.msra.mxu0 %v701
    %824 = vmatprep.subr.bf16.mxu0 %v704
    %825 = vmatpush1.bf16.msra.mxu0 %v703
    %826 = vmatprep.subr.bf16.mxu0 %v706
    %827 = vmatpush1.bf16.msra.mxu0 %v705
    %828 = vmatprep.mubr.bf16.mxu0 %v488
    %829 = vmatmul.mubr.bf16.gmra.mrb[0].mxu0 %v487
    %v830 = vpop.f32.mrb[0].mxu0
    %v831 = vadd.f32 %v170, %v830
    %v832 = vpop.f32.mrb[0].mxu0
    %v833 = vadd.f32 %v170, %v832
    %v834 = vpop.f32.mrb[0].mxu0
    %v835 = vadd.f32 %v175, %v834
    %v836 = vpop.f32.mrb[0].mxu0
    %v837 = vadd.f32 %v175, %v836
    %838 = vmatprep.mubr.bf16.mxu0 %v491
    %839 = vmatmul.mubr.bf16.gmra.mrb[0].mxu0 %v490
    %v840 = vpop.f32.mrb[0].mxu0
    %v841 = vadd.f32 %v180, %v840
    %v842 = vpop.f32.mrb[0].mxu0
    %v843 = vadd.f32 %v180, %v842
    %v844 = vpop.f32.mrb[0].mxu0
    %v845 = vadd.f32 %v185, %v844
    %v846 = vpop.f32.mrb[0].mxu0
    %v847 = vadd.f32 %v185, %v846
    %848 = vmatprep.mubr.bf16.mxu0 %v494
    %849 = vmatmul.mubr.bf16.gmra.mrb[0].mxu0 %v493
    %v850 = vpop.f32.mrb[0].mxu0
    %v851 = vadd.f32 %v190, %v850
    %v852 = vpop.f32.mrb[0].mxu0
    %v853 = vadd.f32 %v190, %v852
    %v854 = vpop.f32.mrb[0].mxu0
    %v855 = vadd.f32 %v195, %v854
    %v856 = vpop.f32.mrb[0].mxu0
    %v857 = vadd.f32 %v195, %v856
    %858 = vmatprep.mubr.bf16.mxu0 %v497
    %859 = vmatmul.mubr.bf16.gmra.mrb[0].mxu0 %v496
    %v860 = vpop.f32.mrb[0].mxu0
    %v861 = vadd.f32 %v200, %v860
    %v862 = vpop.f32.mrb[0].mxu0
    %v863 = vadd.f32 %v200, %v862
    %v864 = vpop.f32.mrb[0].mxu0
    %v865 = vadd.f32 %v205, %v864
    %v866 = vpop.f32.mrb[0].mxu0
    %v867 = vadd.f32 %v205, %v866
    %868 = vmatprep.mubr.bf16.mxu0 %v500
    %869 = vmatmul.mubr.bf16.gmra.mrb[0].mxu0 %v499
    %v870 = vpop.f32.mrb[0].mxu0
    %v871 = vadd.f32 %v210, %v870
    %v872 = vpop.f32.mrb[0].mxu0
    %v873 = vadd.f32 %v210, %v872
    %v874 = vpop.f32.mrb[0].mxu0
    %v875 = vadd.f32 %v215, %v874
    %v876 = vpop.f32.mrb[0].mxu0
    %v877 = vadd.f32 %v215, %v876
    %878 = vmatprep.mubr.bf16.mxu0 %v503
    %879 = vmatmul.mubr.bf16.gmra.mrb[0].mxu0 %v502
    %v880 = vpop.f32.mrb[0].mxu0
    %v881 = vadd.f32 %v220, %v880
    %v882 = vpop.f32.mrb[0].mxu0
    %v883 = vadd.f32 %v220, %v882
    %v884 = vpop.f32.mrb[0].mxu0
    %v885 = vadd.f32 %v225, %v884
    %v886 = vpop.f32.mrb[0].mxu0
    %v887 = vadd.f32 %v225, %v886
    %888 = vmatprep.mubr.bf16.mxu0 %v506
    %889 = vmatmul.mubr.bf16.gmra.mrb[0].mxu0 %v505
    %v890 = vpop.f32.mrb[0].mxu0
    %v891 = vadd.f32 %v230, %v890
    %v892 = vpop.f32.mrb[0].mxu0
    %v893 = vadd.f32 %v230, %v892
    %v894 = vpop.f32.mrb[0].mxu0
    %v895 = vadd.f32 %v235, %v894
    %v896 = vpop.f32.mrb[0].mxu0
    %v897 = vadd.f32 %v235, %v896
    %898 = vmatprep.mubr.bf16.mxu0 %v509
    %899 = vmatmul.mubr.bf16.gmra.mrb[0].mxu0 %v508
    %v900 = vpop.f32.mrb[0].mxu0
    %v901 = vadd.f32 %v240, %v900
    %v902 = vpop.f32.mrb[0].mxu0
    %v903 = vadd.f32 %v240, %v902
    %v904 = vpop.f32.mrb[0].mxu0
    %v905 = vadd.f32 %v245, %v904
    %v906 = vpop.f32.mrb[0].mxu0
    %v907 = vadd.f32 %v245, %v906
    %908 = vmatprep.mubr.bf16.mxu0 %v512
    %909 = vmatmul.mubr.bf16.gmra.mrb[0].mxu0 %v511
    %v910 = vpop.f32.mrb[0].mxu0
    %v911 = vadd.f32 %v250, %v910
    %v912 = vpop.f32.mrb[0].mxu0
    %v913 = vadd.f32 %v250, %v912
    %v914 = vpop.f32.mrb[0].mxu0
    %v915 = vadd.f32 %v255, %v914
    %v916 = vpop.f32.mrb[0].mxu0
    %v917 = vadd.f32 %v255, %v916
    %918 = vmatprep.mubr.bf16.mxu0 %v515
    %919 = vmatmul.mubr.bf16.gmra.mrb[0].mxu0 %v514
    %v920 = vpop.f32.mrb[0].mxu0
    %v921 = vadd.f32 %v260, %v920
    %v922 = vpop.f32.mrb[0].mxu0
    %v923 = vadd.f32 %v260, %v922
    %v924 = vpop.f32.mrb[0].mxu0
    %v925 = vadd.f32 %v265, %v924
    %v926 = vpop.f32.mrb[0].mxu0
    %v927 = vadd.f32 %v265, %v926
    %928 = vmatprep.mubr.bf16.mxu0 %v518
    %929 = vmatmul.mubr.bf16.gmra.mrb[0].mxu0 %v517
    %v930 = vpop.f32.mrb[0].mxu0
    %v931 = vadd.f32 %v270, %v930
    %v932 = vpop.f32.mrb[0].mxu0
    %v933 = vadd.f32 %v270, %v932
    %v934 = vpop.f32.mrb[0].mxu0
    %v935 = vadd.f32 %v275, %v934
    %v936 = vpop.f32.mrb[0].mxu0
    %v937 = vadd.f32 %v275, %v936
    %938 = vmatprep.mubr.bf16.mxu0 %v521
    %939 = vmatmul.mubr.bf16.gmra.mrb[0].mxu0 %v520
    %v940 = vpop.f32.mrb[0].mxu0
    %v941 = vadd.f32 %v280, %v940
    %v942 = vpop.f32.mrb[0].mxu0
    %v943 = vadd.f32 %v280, %v942
    %v944 = vpop.f32.mrb[0].mxu0
    %v945 = vadd.f32 %v285, %v944
    %v946 = vpop.f32.mrb[0].mxu0
    %v947 = vadd.f32 %v285, %v946
    %948 = vmatprep.mubr.bf16.mxu0 %v524
    %949 = vmatmul.mubr.bf16.gmra.mrb[0].mxu0 %v523
    %v950 = vpop.f32.mrb[0].mxu0
    %v951 = vadd.f32 %v290, %v950
    %v952 = vpop.f32.mrb[0].mxu0
    %v953 = vadd.f32 %v290, %v952
    %v954 = vpop.f32.mrb[0].mxu0
    %v955 = vadd.f32 %v295, %v954
    %v956 = vpop.f32.mrb[0].mxu0
    %v957 = vadd.f32 %v295, %v956
    %958 = vmatprep.mubr.bf16.mxu0 %v527
    %959 = vmatmul.mubr.bf16.gmra.mrb[0].mxu0 %v526
    %v960 = vpop.f32.mrb[0].mxu0
    %v961 = vadd.f32 %v300, %v960
    %v962 = vpop.f32.mrb[0].mxu0
    %v963 = vadd.f32 %v300, %v962
    %v964 = vpop.f32.mrb[0].mxu0
    %v965 = vadd.f32 %v305, %v964
    %v966 = vpop.f32.mrb[0].mxu0
    %v967 = vadd.f32 %v305, %v966
    %968 = vmatprep.mubr.bf16.mxu0 %v530
    %969 = vmatmul.mubr.bf16.gmra.mrb[0].mxu0 %v529
    %v970 = vpop.f32.mrb[0].mxu0
    %v971 = vadd.f32 %v310, %v970
    %v972 = vpop.f32.mrb[0].mxu0
    %v973 = vadd.f32 %v310, %v972
    %v974 = vpop.f32.mrb[0].mxu0
    %v975 = vadd.f32 %v315, %v974
    %v976 = vpop.f32.mrb[0].mxu0
    %v977 = vadd.f32 %v315, %v976
    %978 = vmatprep.mubr.bf16.mxu0 %v533
    %979 = vmatmul.mubr.bf16.gmra.mrb[0].mxu0 %v532
    %v980 = vpop.f32.mrb[0].mxu0
    %v981 = vadd.f32 %v320, %v980
    %v982 = vpop.f32.mrb[0].mxu0
    %v983 = vadd.f32 %v320, %v982
    %v984 = vpop.f32.mrb[0].mxu0
    %v985 = vadd.f32 %v325, %v984
    %v986 = vpop.f32.mrb[0].mxu0
    %v987 = vadd.f32 %v325, %v986
    %988 = vdwg.mxu0
    %989 = vmatprep.subr.bf16.mxu0 %v708
    %990 = vmatpush1.bf16.msra.mxu0 %v707
    %991 = vmatprep.subr.bf16.mxu0 %v710
    %992 = vmatpush1.bf16.msra.mxu0 %v709
    %993 = vmatprep.subr.bf16.mxu0 0
    %994 = vmatpush1.bf16.msra.mxu0 0
    %995 = vmatprep.subr.bf16.mxu0 0
    %996 = vmatpush1.bf16.msra.mxu0 0
    %997 = vmatprep.subr.bf16.mxu0 0
    %998 = vmatpush1.bf16.msra.mxu0 0
    %999 = vmatprep.subr.bf16.mxu0 0
    %1000 = vmatpush1.bf16.msra.mxu0 0
    %1001 = vmatprep.subr.bf16.mxu0 0
    %1002 = vmatpush1.bf16.msra.mxu0 0
    %1003 = vmatprep.subr.bf16.mxu0 0
    %1004 = vmatpush1.bf16.msra.mxu0 0
    %1005 = vmatprep.subr.bf16.mxu0 0
    %1006 = vmatpush1.bf16.msra.mxu0 0
    %1007 = vmatprep.subr.bf16.mxu0 0
    %1008 = vmatpush1.bf16.msra.mxu0 0
    %1009 = vmatprep.subr.bf16.mxu0 0
    %1010 = vmatpush1.bf16.msra.mxu0 0
    %1011 = vmatprep.subr.bf16.mxu0 0
    %1012 = vmatpush1.bf16.msra.mxu0 0
    %1013 = vmatprep.subr.bf16.mxu0 0
    %1014 = vmatpush1.bf16.msra.mxu0 0
    %1015 = vmatprep.subr.bf16.mxu0 0
    %1016 = vmatpush1.bf16.msra.mxu0 0
    %1017 = vmatprep.subr.bf16.mxu0 0
    %1018 = vmatpush1.bf16.msra.mxu0 0
    %1019 = vmatprep.subr.bf16.mxu0 0
    %1020 = vmatpush1.bf16.msra.mxu0 0
    %1021 = vmatprep.mubr.bf16.mxu0 0
    %1022 = vmatmul.mubr.bf16.gmra.mrb[0].mxu0 %v749
    %v1023 = vpop.f32.mrb[0].mxu0
    %v1024 = vadd.f32 %v831, %v1023
    %v1025 = vpop.f32.mrb[0].mxu0
    %v1026 = vadd.f32 %v833, %v1025
    %v1027 = vpop.f32.mrb[0].mxu0
    %v1028 = vadd.f32 %v835, %v1027
    %v1029 = vpop.f32.mrb[0].mxu0
    %v1030 = vadd.f32 %v837, %v1029
    %1031 = vmatprep.mubr.bf16.mxu0 0
    %1032 = vmatmul.mubr.bf16.gmra.mrb[0].mxu0 %v752
    %v1033 = vpop.f32.mrb[0].mxu0
    %v1034 = vadd.f32 %v841, %v1033
    %v1035 = vpop.f32.mrb[0].mxu0
    %v1036 = vadd.f32 %v843, %v1035
    %v1037 = vpop.f32.mrb[0].mxu0
    %v1038 = vadd.f32 %v845, %v1037
    %v1039 = vpop.f32.mrb[0].mxu0
    %v1040 = vadd.f32 %v847, %v1039
    %1041 = vmatprep.mubr.bf16.mxu0 0
    %1042 = vmatmul.mubr.bf16.gmra.mrb[0].mxu0 %v755
    %v1043 = vpop.f32.mrb[0].mxu0
    %v1044 = vadd.f32 %v851, %v1043
    %v1045 = vpop.f32.mrb[0].mxu0
    %v1046 = vadd.f32 %v853, %v1045
    %v1047 = vpop.f32.mrb[0].mxu0
    %v1048 = vadd.f32 %v855, %v1047
    %v1049 = vpop.f32.mrb[0].mxu0
    %v1050 = vadd.f32 %v857, %v1049
    %1051 = vmatprep.mubr.bf16.mxu0 0
    %1052 = vmatmul.mubr.bf16.gmra.mrb[0].mxu0 %v758
    %v1053 = vpop.f32.mrb[0].mxu0
    %v1054 = vadd.f32 %v861, %v1053
    %v1055 = vpop.f32.mrb[0].mxu0
    %v1056 = vadd.f32 %v863, %v1055
    %v1057 = vpop.f32.mrb[0].mxu0
    %v1058 = vadd.f32 %v865, %v1057
    %v1059 = vpop.f32.mrb[0].mxu0
    %v1060 = vadd.f32 %v867, %v1059
    %1061 = vmatprep.mubr.bf16.mxu0 0
    %1062 = vmatmul.mubr.bf16.gmra.mrb[0].mxu0 %v761
    %v1063 = vpop.f32.mrb[0].mxu0
    %v1064 = vadd.f32 %v871, %v1063
    %v1065 = vpop.f32.mrb[0].mxu0
    %v1066 = vadd.f32 %v873, %v1065
    %v1067 = vpop.f32.mrb[0].mxu0
    %v1068 = vadd.f32 %v875, %v1067
    %v1069 = vpop.f32.mrb[0].mxu0
    %v1070 = vadd.f32 %v877, %v1069
    %1071 = vmatprep.mubr.bf16.mxu0 0
    %1072 = vmatmul.mubr.bf16.gmra.mrb[0].mxu0 %v764
    %v1073 = vpop.f32.mrb[0].mxu0
    %v1074 = vadd.f32 %v881, %v1073
    %v1075 = vpop.f32.mrb[0].mxu0
    %v1076 = vadd.f32 %v883, %v1075
    %v1077 = vpop.f32.mrb[0].mxu0
    %v1078 = vadd.f32 %v885, %v1077
    %v1079 = vpop.f32.mrb[0].mxu0
    %v1080 = vadd.f32 %v887, %v1079
    %1081 = vmatprep.mubr.bf16.mxu0 0
    %1082 = vmatmul.mubr.bf16.gmra.mrb[0].mxu0 %v767
    %v1083 = vpop.f32.mrb[0].mxu0
    %v1084 = vadd.f32 %v891, %v1083
    %v1085 = vpop.f32.mrb[0].mxu0
    %v1086 = vadd.f32 %v893, %v1085
    %v1087 = vpop.f32.mrb[0].mxu0
    %v1088 = vadd.f32 %v895, %v1087
    %v1089 = vpop.f32.mrb[0].mxu0
    %v1090 = vadd.f32 %v897, %v1089
    %1091 = vmatprep.mubr.bf16.mxu0 0
    %1092 = vmatmul.mubr.bf16.gmra.mrb[0].mxu0 %v770
    %v1093 = vpop.f32.mrb[0].mxu0
    %v1094 = vadd.f32 %v901, %v1093
    %v1095 = vpop.f32.mrb[0].mxu0
    %v1096 = vadd.f32 %v903, %v1095
    %v1097 = vpop.f32.mrb[0].mxu0
    %v1098 = vadd.f32 %v905, %v1097
    %v1099 = vpop.f32.mrb[0].mxu0
    %v1100 = vadd.f32 %v907, %v1099
    %1101 = vmatprep.mubr.bf16.mxu0 0
    %1102 = vmatmul.mubr.bf16.gmra.mrb[0].mxu0 %v773
    %v1103 = vpop.f32.mrb[0].mxu0
    %v1104 = vadd.f32 %v911, %v1103
    %v1105 = vpop.f32.mrb[0].mxu0
    %v1106 = vadd.f32 %v913, %v1105
    %v1107 = vpop.f32.mrb[0].mxu0
    %v1108 = vadd.f32 %v915, %v1107
    %v1109 = vpop.f32.mrb[0].mxu0
    %v1110 = vadd.f32 %v917, %v1109
    %1111 = vmatprep.mubr.bf16.mxu0 0
    %1112 = vmatmul.mubr.bf16.gmra.mrb[0].mxu0 %v776
    %v1113 = vpop.f32.mrb[0].mxu0
    %v1114 = vadd.f32 %v921, %v1113
    %v1115 = vpop.f32.mrb[0].mxu0
    %v1116 = vadd.f32 %v923, %v1115
    %v1117 = vpop.f32.mrb[0].mxu0
    %v1118 = vadd.f32 %v925, %v1117
    %v1119 = vpop.f32.mrb[0].mxu0
    %v1120 = vadd.f32 %v927, %v1119
    %1121 = vmatprep.mubr.bf16.mxu0 0
    %1122 = vmatmul.mubr.bf16.gmra.mrb[0].mxu0 %v779
    %v1123 = vpop.f32.mrb[0].mxu0
    %v1124 = vadd.f32 %v931, %v1123
    %v1125 = vpop.f32.mrb[0].mxu0
    %v1126 = vadd.f32 %v933, %v1125
    %v1127 = vpop.f32.mrb[0].mxu0
    %v1128 = vadd.f32 %v935, %v1127
    %v1129 = vpop.f32.mrb[0].mxu0
    %v1130 = vadd.f32 %v937, %v1129
    %1131 = vmatprep.mubr.bf16.mxu0 0
    %1132 = vmatmul.mubr.bf16.gmra.mrb[0].mxu0 %v782
    %v1133 = vpop.f32.mrb[0].mxu0
    %v1134 = vadd.f32 %v941, %v1133
    %v1135 = vpop.f32.mrb[0].mxu0
    %v1136 = vadd.f32 %v943, %v1135
    %v1137 = vpop.f32.mrb[0].mxu0
    %v1138 = vadd.f32 %v945, %v1137
    %v1139 = vpop.f32.mrb[0].mxu0
    %v1140 = vadd.f32 %v947, %v1139
    %1141 = vmatprep.mubr.bf16.mxu0 0
    %1142 = vmatmul.mubr.bf16.gmra.mrb[0].mxu0 %v785
    %v1143 = vpop.f32.mrb[0].mxu0
    %v1144 = vadd.f32 %v951, %v1143
    %v1145 = vpop.f32.mrb[0].mxu0
    %v1146 = vadd.f32 %v953, %v1145
    %v1147 = vpop.f32.mrb[0].mxu0
    %v1148 = vadd.f32 %v955, %v1147
    %v1149 = vpop.f32.mrb[0].mxu0
    %v1150 = vadd.f32 %v957, %v1149
    %1151 = vmatprep.mubr.bf16.mxu0 0
    %1152 = vmatmul.mubr.bf16.gmra.mrb[0].mxu0 %v788
    %v1153 = vpop.f32.mrb[0].mxu0
    %v1154 = vadd.f32 %v961, %v1153
    %v1155 = vpop.f32.mrb[0].mxu0
    %v1156 = vadd.f32 %v963, %v1155
    %v1157 = vpop.f32.mrb[0].mxu0
    %v1158 = vadd.f32 %v965, %v1157
    %v1159 = vpop.f32.mrb[0].mxu0
    %v1160 = vadd.f32 %v967, %v1159
    %1161 = vmatprep.mubr.bf16.mxu0 0
    %1162 = vmatmul.mubr.bf16.gmra.mrb[0].mxu0 %v791
    %v1163 = vpop.f32.mrb[0].mxu0
    %v1164 = vadd.f32 %v971, %v1163
    %v1165 = vpop.f32.mrb[0].mxu0
    %v1166 = vadd.f32 %v973, %v1165
    %v1167 = vpop.f32.mrb[0].mxu0
    %v1168 = vadd.f32 %v975, %v1167
    %v1169 = vpop.f32.mrb[0].mxu0
    %v1170 = vadd.f32 %v977, %v1169
    %1171 = vmatprep.mubr.bf16.mxu0 0
    %1172 = vmatmul.mubr.bf16.gmra.mrb[0].mxu0 %v794
    %v1173 = vpop.f32.mrb[0].mxu0
    %v1174 = vadd.f32 %v981, %v1173
    %v1175 = vpop.f32.mrb[0].mxu0
    %v1176 = vadd.f32 %v983, %v1175
    %v1177 = vpop.f32.mrb[0].mxu0
    %v1178 = vadd.f32 %v985, %v1177
    %v1179 = vpop.f32.mrb[0].mxu0
    %v1180 = vadd.f32 %v987, %v1179
    %1181 = vdwg.mxu0
    %v1182 = vld [vmem:[%s4] sm:$0xff]
    %v1183 = vld [vmem:[%s4 + $0x8] sm:$0xff]
    %v1184 = vld [vmem:[%s4 + $0x10] sm:$0xff]
    %v1185 = vld [vmem:[%s4 + $0x18] sm:$0xff]
    %v1186 = vld [vmem:[%s4 + $0x20] sm:$0xff]
    %v1187 = vld [vmem:[%s4 + $0x28] sm:$0xff]
    %v1188 = vld [vmem:[%s4 + $0x30] sm:$0xff]
    %v1189 = vld [vmem:[%s4 + $0x38] sm:$0xff]
    %v1190 = vld [vmem:[%s4 + $0x40] sm:$0xff]
    %v1191 = vld [vmem:[%s4 + $0x48] sm:$0xff]
    %v1192 = vld [vmem:[%s4 + $0x50] sm:$0xff]
    %v1193 = vld [vmem:[%s4 + $0x58] sm:$0xff]
    %v1194 = vld [vmem:[%s4 + $0x60] sm:$0xff]
    %v1195 = vld [vmem:[%s4 + $0x68] sm:$0xff]
    %v1196 = vld [vmem:[%s4 + $0x70] sm:$0xff]
    %v1197 = vld [vmem:[%s4 + $0x78] sm:$0xff]
    %v1198 = vld [vmem:[%s4 + $0x80] sm:$0xff]
    %v1199 = vld [vmem:[%s4 + $0x88] sm:$0xff]
    %v1200 = vld [vmem:[%s4 + $0x90] sm:$0xff]
    %v1201 = vld [vmem:[%s4 + $0x98] sm:$0xff]
    %v1202 = vld [vmem:[%s4 + $0xa0] sm:$0xff]
    %v1203 = vld [vmem:[%s4 + $0xa8] sm:$0xff]
    %v1204 = vld [vmem:[%s4 + $0xb0] sm:$0xff]
    %v1205 = vld [vmem:[%s4 + $0xb8] sm:$0xff]
    %v1206 = vld [vmem:[%s4 + $0xc0] sm:$0xff]
    %v1207 = vld [vmem:[%s4 + $0xc8] sm:$0xff]
    %v1208 = vld [vmem:[%s4 + $0xd0] sm:$0xff]
    %v1209 = vld [vmem:[%s4 + $0xd8] sm:$0xff]
    %v1210 = vld [vmem:[%s4 + $0xe0] sm:$0xff]
    %v1211 = vld [vmem:[%s4 + $0xe8] sm:$0xff]
    %v1212 = vld [vmem:[%s4 + $0xf0] sm:$0xff]
    %v1213 = vld [vmem:[%s4 + $0xf8] sm:$0xff]
    %v1214 = vld [vmem:[%s4 + $0x100] sm:$0xff]
    %v1215 = vld [vmem:[%s4 + $0x108] sm:$0xff]
    %v1216 = vld [vmem:[%s4 + $0x110] sm:$0xff]
    %v1217 = vld [vmem:[%s4 + $0x118] sm:$0xff]
    %v1218 = vld [vmem:[%s4 + $0x120] sm:$0xff]
    %v1219 = vld [vmem:[%s4 + $0x128] sm:$0xff]
    %v1220 = vld [vmem:[%s4 + $0x130] sm:$0xff]
    %v1221 = vld [vmem:[%s4 + $0x138] sm:$0xff]
    %v1222 = vld [vmem:[%s4 + $0x140] sm:$0xff]
    %v1223 = vld [vmem:[%s4 + $0x148] sm:$0xff]
    %v1224 = vld [vmem:[%s4 + $0x150] sm:$0xff]
    %v1225 = vld [vmem:[%s4 + $0x158] sm:$0xff]
    %v1226 = vld [vmem:[%s4 + $0x160] sm:$0xff]
    %v1227 = vld [vmem:[%s4 + $0x168] sm:$0xff]
    %v1228 = vld [vmem:[%s4 + $0x170] sm:$0xff]
    %v1229 = vld [vmem:[%s4 + $0x178] sm:$0xff]
    %v1230 = vld [vmem:[%s4 + $0x180] sm:$0xff]
    %v1231 = vld [vmem:[%s4 + $0x188] sm:$0xff]
    %v1232 = vld [vmem:[%s4 + $0x190] sm:$0xff]
    %v1233 = vld [vmem:[%s4 + $0x198] sm:$0xff]
    %v1234 = vld [vmem:[%s4 + $0x1a0] sm:$0xff]
    %v1235 = vld [vmem:[%s4 + $0x1a8] sm:$0xff]
    %v1236 = vld [vmem:[%s4 + $0x1b0] sm:$0xff]
    %v1237 = vld [vmem:[%s4 + $0x1b8] sm:$0xff]
    %v1238 = vld [vmem:[%s4 + $0x1c0] sm:$0xff]
    %v1239 = vld [vmem:[%s4 + $0x1c8] sm:$0xff]
    %v1240 = vld [vmem:[%s4 + $0x1d0] sm:$0xff]
    %v1241 = vld [vmem:[%s4 + $0x1d8] sm:$0xff]
    %v1242 = vld [vmem:[%s4 + $0x1e0] sm:$0xff]
    %v1243 = vld [vmem:[%s4 + $0x1e8] sm:$0xff]
    %v1244 = vld [vmem:[%s4 + $0x1f0] sm:$0xff]
    %v1245 = vld [vmem:[%s4 + $0x1f8] sm:$0xff]
    %v1246 = vpack.c.bf16 %v1028, %v1024
    %v1247 = vpack.c.bf16 %v1030, %v1026
    %v1248 = vpack.c.bf16 %v1038, %v1034
    %v1249 = vpack.c.bf16 %v1040, %v1036
    %v1250 = vpack.c.bf16 %v1048, %v1044
    %v1251 = vpack.c.bf16 %v1050, %v1046
    %v1252 = vpack.c.bf16 %v1058, %v1054
    %v1253 = vpack.c.bf16 %v1060, %v1056
    %v1254 = vpack.c.bf16 %v1068, %v1064
    %v1255 = vpack.c.bf16 %v1070, %v1066
    %v1256 = vpack.c.bf16 %v1078, %v1074
    %v1257 = vpack.c.bf16 %v1080, %v1076
    %v1258 = vpack.c.bf16 %v1088, %v1084
    %v1259 = vpack.c.bf16 %v1090, %v1086
    %v1260 = vpack.c.bf16 %v1098, %v1094
    %v1261 = vpack.c.bf16 %v1100, %v1096
    %v1262 = vpack.c.bf16 %v1108, %v1104
    %v1263 = vpack.c.bf16 %v1110, %v1106
    %v1264 = vpack.c.bf16 %v1118, %v1114
    %v1265 = vpack.c.bf16 %v1120, %v1116
    %v1266 = vpack.c.bf16 %v1128, %v1124
    %v1267 = vpack.c.bf16 %v1130, %v1126
    %v1268 = vpack.c.bf16 %v1138, %v1134
    %v1269 = vpack.c.bf16 %v1140, %v1136
    %v1270 = vpack.c.bf16 %v1148, %v1144
    %v1271 = vpack.c.bf16 %v1150, %v1146
    %v1272 = vpack.c.bf16 %v1158, %v1154
    %v1273 = vpack.c.bf16 %v1160, %v1156
    %v1274 = vpack.c.bf16 %v1168, %v1164
    %v1275 = vpack.c.bf16 %v1170, %v1166
    %v1276 = vpack.c.bf16 %v1178, %v1174
    %v1277 = vpack.c.bf16 %v1180, %v1176
    %v1278 = vld [vmem:[%s5] sm:$0xff]
    %v1279 = vld [vmem:[%s5 + $0x8] sm:$0xff]
    %v1280 = vld [vmem:[%s5 + $0x10] sm:$0xff]
    %v1281 = vld [vmem:[%s5 + $0x18] sm:$0xff]
    %v1282 = vld [vmem:[%s5 + $0x20] sm:$0xff]
    %v1283 = vld [vmem:[%s5 + $0x28] sm:$0xff]
    %v1284 = vld [vmem:[%s5 + $0x30] sm:$0xff]
    %v1285 = vld [vmem:[%s5 + $0x38] sm:$0xff]
    %v1286 = vld [vmem:[%s5 + $0x40] sm:$0xff]
    %v1287 = vld [vmem:[%s5 + $0x48] sm:$0xff]
    %v1288 = vld [vmem:[%s5 + $0x50] sm:$0xff]
    %v1289 = vld [vmem:[%s5 + $0x58] sm:$0xff]
    %v1290 = vld [vmem:[%s5 + $0x60] sm:$0xff]
    %v1291 = vld [vmem:[%s5 + $0x68] sm:$0xff]
    %v1292 = vld [vmem:[%s5 + $0x70] sm:$0xff]
    %v1293 = vld [vmem:[%s5 + $0x78] sm:$0xff]
    %v1294 = vld [vmem:[%s5 + $0x80] sm:$0xff]
    %v1295 = vld [vmem:[%s5 + $0x88] sm:$0xff]
    %v1296 = vld [vmem:[%s5 + $0x90] sm:$0xff]
    %v1297 = vld [vmem:[%s5 + $0x98] sm:$0xff]
    %v1298 = vld [vmem:[%s5 + $0xa0] sm:$0xff]
    %v1299 = vld [vmem:[%s5 + $0xa8] sm:$0xff]
    %v1300 = vld [vmem:[%s5 + $0xb0] sm:$0xff]
    %v1301 = vld [vmem:[%s5 + $0xb8] sm:$0xff]
    %v1302 = vld [vmem:[%s5 + $0xc0] sm:$0xff]
    %v1303 = vld [vmem:[%s5 + $0xc8] sm:$0xff]
    %v1304 = vld [vmem:[%s5 + $0xd0] sm:$0xff]
    %v1305 = vld [vmem:[%s5 + $0xd8] sm:$0xff]
    %v1306 = vld [vmem:[%s5 + $0xe0] sm:$0xff]
    %v1307 = vld [vmem:[%s5 + $0xe8] sm:$0xff]
    %v1308 = vld [vmem:[%s5 + $0xf0] sm:$0xff]
    %v1309 = vld [vmem:[%s5 + $0xf8] sm:$0xff]
    %v1310 = vld [vmem:[%s5 + $0x100] sm:$0xff]
    %v1311 = vld [vmem:[%s5 + $0x108] sm:$0xff]
    %v1312 = vld [vmem:[%s5 + $0x110] sm:$0xff]
    %v1313 = vld [vmem:[%s5 + $0x118] sm:$0xff]
    %v1314 = vld [vmem:[%s5 + $0x120] sm:$0xff]
    %v1315 = vld [vmem:[%s5 + $0x128] sm:$0xff]
    %v1316 = vld [vmem:[%s5 + $0x130] sm:$0xff]
    %v1317 = vld [vmem:[%s5 + $0x138] sm:$0xff]
    %v1318 = vld [vmem:[%s5 + $0x140] sm:$0xff]
    %v1319 = vld [vmem:[%s5 + $0x148] sm:$0xff]
    %v1320 = vld [vmem:[%s5 + $0x150] sm:$0xff]
    %v1321 = vld [vmem:[%s5 + $0x158] sm:$0xff]
    %v1322 = vld [vmem:[%s5 + $0x160] sm:$0xff]
    %v1323 = vld [vmem:[%s5 + $0x168] sm:$0xff]
    %v1324 = vld [vmem:[%s5 + $0x170] sm:$0xff]
    %v1325 = vld [vmem:[%s5 + $0x178] sm:$0xff]
    %v1326 = vld [vmem:[%s5 + $0x180] sm:$0xff]
    %v1327 = vld [vmem:[%s5 + $0x188] sm:$0xff]
    %v1328 = vld [vmem:[%s5 + $0x190] sm:$0xff]
    %v1329 = vld [vmem:[%s5 + $0x198] sm:$0xff]
    %v1330 = vld [vmem:[%s5 + $0x1a0] sm:$0xff]
    %v1331 = vld [vmem:[%s5 + $0x1a8] sm:$0xff]
    %v1332 = vld [vmem:[%s5 + $0x1b0] sm:$0xff]
    %v1333 = vld [vmem:[%s5 + $0x1b8] sm:$0xff]
    %v1334 = vld [vmem:[%s5 + $0x1c0] sm:$0xff]
    %v1335 = vld [vmem:[%s5 + $0x1c8] sm:$0xff]
    %v1336 = vld [vmem:[%s5 + $0x1d0] sm:$0xff]
    %v1337 = vld [vmem:[%s5 + $0x1d8] sm:$0xff]
    %v1338 = vld [vmem:[%s5 + $0x1e0] sm:$0xff]
    %v1339 = vld [vmem:[%s5 + $0x1e8] sm:$0xff]
    %v1340 = vld [vmem:[%s5 + $0x1f0] sm:$0xff]
    %v1341 = vld [vmem:[%s5 + $0x1f8] sm:$0xff]
    %1343 = vset.pattern.permute.xlu0 0
    %1344 = vperm.xlu0 %1343, %v1278
    %v1345 = vpop.permute.xlu0 %1344
    %1348 = vset.pattern.permute.xlu0 0
    %1349 = vperm.xlu0 %1348, %v1279
    %v1350 = vpop.permute.xlu0 %1349
    %1353 = vset.pattern.permute.xlu0 0
    %1354 = vperm.xlu0 %1353, %v1280
    %v1355 = vpop.permute.xlu0 %1354
    %1358 = vset.pattern.permute.xlu0 0
    %1359 = vperm.xlu0 %1358, %v1281
    %v1360 = vpop.permute.xlu0 %1359
    %1363 = vset.pattern.permute.xlu0 0
    %1364 = vperm.xlu0 %1363, %v1282
    %v1365 = vpop.permute.xlu0 %1364
    %1368 = vset.pattern.permute.xlu0 0
    %1369 = vperm.xlu0 %1368, %v1283
    %v1370 = vpop.permute.xlu0 %1369
    %1373 = vset.pattern.permute.xlu0 0
    %1374 = vperm.xlu0 %1373, %v1284
    %v1375 = vpop.permute.xlu0 %1374
    %1378 = vset.pattern.permute.xlu0 0
    %1379 = vperm.xlu0 %1378, %v1285
    %v1380 = vpop.permute.xlu0 %1379
    %1383 = vset.pattern.permute.xlu0 0
    %1384 = vperm.xlu0 %1383, %v1286
    %v1385 = vpop.permute.xlu0 %1384
    %1388 = vset.pattern.permute.xlu0 0
    %1389 = vperm.xlu0 %1388, %v1287
    %v1390 = vpop.permute.xlu0 %1389
    %1393 = vset.pattern.permute.xlu0 0
    %1394 = vperm.xlu0 %1393, %v1288
    %v1395 = vpop.permute.xlu0 %1394
    %1398 = vset.pattern.permute.xlu0 0
    %1399 = vperm.xlu0 %1398, %v1289
    %v1400 = vpop.permute.xlu0 %1399
    %1403 = vset.pattern.permute.xlu0 0
    %1404 = vperm.xlu0 %1403, %v1290
    %v1405 = vpop.permute.xlu0 %1404
    %1408 = vset.pattern.permute.xlu0 0
    %1409 = vperm.xlu0 %1408, %v1291
    %v1410 = vpop.permute.xlu0 %1409
    %1413 = vset.pattern.permute.xlu0 0
    %1414 = vperm.xlu0 %1413, %v1292
    %v1415 = vpop.permute.xlu0 %1414
    %1418 = vset.pattern.permute.xlu0 0
    %1419 = vperm.xlu0 %1418, %v1293
    %v1420 = vpop.permute.xlu0 %1419
    %1423 = vset.pattern.permute.xlu0 0
    %1424 = vperm.xlu0 %1423, %v1294
    %v1425 = vpop.permute.xlu0 %1424
    %1428 = vset.pattern.permute.xlu0 0
    %1429 = vperm.xlu0 %1428, %v1295
    %v1430 = vpop.permute.xlu0 %1429
    %1433 = vset.pattern.permute.xlu0 0
    %1434 = vperm.xlu0 %1433, %v1296
    %v1435 = vpop.permute.xlu0 %1434
    %1438 = vset.pattern.permute.xlu0 0
    %1439 = vperm.xlu0 %1438, %v1297
    %v1440 = vpop.permute.xlu0 %1439
    %1443 = vset.pattern.permute.xlu0 0
    %1444 = vperm.xlu0 %1443, %v1298
    %v1445 = vpop.permute.xlu0 %1444
    %1448 = vset.pattern.permute.xlu0 0
    %1449 = vperm.xlu0 %1448, %v1299
    %v1450 = vpop.permute.xlu0 %1449
    %1453 = vset.pattern.permute.xlu0 0
    %1454 = vperm.xlu0 %1453, %v1300
    %v1455 = vpop.permute.xlu0 %1454
    %1458 = vset.pattern.permute.xlu0 0
    %1459 = vperm.xlu0 %1458, %v1301
    %v1460 = vpop.permute.xlu0 %1459
    %1463 = vset.pattern.permute.xlu0 0
    %1464 = vperm.xlu0 %1463, %v1302
    %v1465 = vpop.permute.xlu0 %1464
    %1468 = vset.pattern.permute.xlu0 0
    %1469 = vperm.xlu0 %1468, %v1303
    %v1470 = vpop.permute.xlu0 %1469
    %1473 = vset.pattern.permute.xlu0 0
    %1474 = vperm.xlu0 %1473, %v1304
    %v1475 = vpop.permute.xlu0 %1474
    %1478 = vset.pattern.permute.xlu0 0
    %1479 = vperm.xlu0 %1478, %v1305
    %v1480 = vpop.permute.xlu0 %1479
    %1483 = vset.pattern.permute.xlu0 0
    %1484 = vperm.xlu0 %1483, %v1306
    %v1485 = vpop.permute.xlu0 %1484
    %1488 = vset.pattern.permute.xlu0 0
    %1489 = vperm.xlu0 %1488, %v1307
    %v1490 = vpop.permute.xlu0 %1489
    %1493 = vset.pattern.permute.xlu0 0
    %1494 = vperm.xlu0 %1493, %v1308
    %v1495 = vpop.permute.xlu0 %1494
    %1498 = vset.pattern.permute.xlu0 0
    %1499 = vperm.xlu0 %1498, %v1309
    %v1500 = vpop.permute.xlu0 %1499
    %1503 = vset.pattern.permute.xlu0 0
    %1504 = vperm.xlu0 %1503, %v1310
    %v1505 = vpop.permute.xlu0 %1504
    %1508 = vset.pattern.permute.xlu0 0
    %1509 = vperm.xlu0 %1508, %v1311
    %v1510 = vpop.permute.xlu0 %1509
    %1513 = vset.pattern.permute.xlu0 0
    %1514 = vperm.xlu0 %1513, %v1312
    %v1515 = vpop.permute.xlu0 %1514
    %1518 = vset.pattern.permute.xlu0 0
    %1519 = vperm.xlu0 %1518, %v1313
    %v1520 = vpop.permute.xlu0 %1519
    %1523 = vset.pattern.permute.xlu0 0
    %1524 = vperm.xlu0 %1523, %v1314
    %v1525 = vpop.permute.xlu0 %1524
    %1528 = vset.pattern.permute.xlu0 0
    %1529 = vperm.xlu0 %1528, %v1315
    %v1530 = vpop.permute.xlu0 %1529
    %1533 = vset.pattern.permute.xlu0 0
    %1534 = vperm.xlu0 %1533, %v1316
    %v1535 = vpop.permute.xlu0 %1534
    %1538 = vset.pattern.permute.xlu0 0
    %1539 = vperm.xlu0 %1538, %v1317
    %v1540 = vpop.permute.xlu0 %1539
    %1543 = vset.pattern.permute.xlu0 0
    %1544 = vperm.xlu0 %1543, %v1318
    %v1545 = vpop.permute.xlu0 %1544
    %1548 = vset.pattern.permute.xlu0 0
    %1549 = vperm.xlu0 %1548, %v1319
    %v1550 = vpop.permute.xlu0 %1549
    %1553 = vset.pattern.permute.xlu0 0
    %1554 = vperm.xlu0 %1553, %v1320
    %v1555 = vpop.permute.xlu0 %1554
    %1558 = vset.pattern.permute.xlu0 0
    %1559 = vperm.xlu0 %1558, %v1321
    %v1560 = vpop.permute.xlu0 %1559
    %1563 = vset.pattern.permute.xlu0 0
    %1564 = vperm.xlu0 %1563, %v1322
    %v1565 = vpop.permute.xlu0 %1564
    %1568 = vset.pattern.permute.xlu0 0
    %1569 = vperm.xlu0 %1568, %v1323
    %v1570 = vpop.permute.xlu0 %1569
    %1573 = vset.pattern.permute.xlu0 0
    %1574 = vperm.xlu0 %1573, %v1324
    %v1575 = vpop.permute.xlu0 %1574
    %1578 = vset.pattern.permute.xlu0 0
    %1579 = vperm.xlu0 %1578, %v1325
    %v1580 = vpop.permute.xlu0 %1579
    %1583 = vset.pattern.permute.xlu0 0
    %1584 = vperm.xlu0 %1583, %v1326
    %v1585 = vpop.permute.xlu0 %1584
    %1588 = vset.pattern.permute.xlu0 0
    %1589 = vperm.xlu0 %1588, %v1327
    %v1590 = vpop.permute.xlu0 %1589
    %1593 = vset.pattern.permute.xlu0 0
    %1594 = vperm.xlu0 %1593, %v1328
    %v1595 = vpop.permute.xlu0 %1594
    %1598 = vset.pattern.permute.xlu0 0
    %1599 = vperm.xlu0 %1598, %v1329
    %v1600 = vpop.permute.xlu0 %1599
    %1603 = vset.pattern.permute.xlu0 0
    %1604 = vperm.xlu0 %1603, %v1330
    %v1605 = vpop.permute.xlu0 %1604
    %1608 = vset.pattern.permute.xlu0 0
    %1609 = vperm.xlu0 %1608, %v1331
    %v1610 = vpop.permute.xlu0 %1609
    %1613 = vset.pattern.permute.xlu0 0
    %1614 = vperm.xlu0 %1613, %v1332
    %v1615 = vpop.permute.xlu0 %1614
    %1618 = vset.pattern.permute.xlu0 0
    %1619 = vperm.xlu0 %1618, %v1333
    %v1620 = vpop.permute.xlu0 %1619
    %1623 = vset.pattern.permute.xlu0 0
    %1624 = vperm.xlu0 %1623, %v1334
    %v1625 = vpop.permute.xlu0 %1624
    %1628 = vset.pattern.permute.xlu0 0
    %1629 = vperm.xlu0 %1628, %v1335
    %v1630 = vpop.permute.xlu0 %1629
    %1633 = vset.pattern.permute.xlu0 0
    %1634 = vperm.xlu0 %1633, %v1336
    %v1635 = vpop.permute.xlu0 %1634
    %1638 = vset.pattern.permute.xlu0 0
    %1639 = vperm.xlu0 %1638, %v1337
    %v1640 = vpop.permute.xlu0 %1639
    %1643 = vset.pattern.permute.xlu0 0
    %1644 = vperm.xlu0 %1643, %v1338
    %v1645 = vpop.permute.xlu0 %1644
    %1648 = vset.pattern.permute.xlu0 0
    %1649 = vperm.xlu0 %1648, %v1339
    %v1650 = vpop.permute.xlu0 %1649
    %1653 = vset.pattern.permute.xlu0 0
    %1654 = vperm.xlu0 %1653, %v1340
    %v1655 = vpop.permute.xlu0 %1654
    %1658 = vset.pattern.permute.xlu0 0
    %1659 = vperm.xlu0 %1658, %v1341
    %v1660 = vpop.permute.xlu0 %1659
    %v1726 = vunpack.c.l.b16 %v1182
    %v1727 = vunpack.c.h.b16 %v1182
    %v1728 = vunpack.c.l.b16 %v1183
    %v1729 = vunpack.c.h.b16 %v1183
    %v1730 = vunpack.c.l.b16 %v1184
    %v1731 = vunpack.c.h.b16 %v1184
    %v1732 = vunpack.c.l.b16 %v1185
    %v1733 = vunpack.c.h.b16 %v1185
    %v1734 = vunpack.c.l.b16 %v1186
    %v1735 = vunpack.c.h.b16 %v1186
    %v1736 = vunpack.c.l.b16 %v1187
    %v1737 = vunpack.c.h.b16 %v1187
    %v1738 = vunpack.c.l.b16 %v1188
    %v1739 = vunpack.c.h.b16 %v1188
    %v1740 = vunpack.c.l.b16 %v1189
    %v1741 = vunpack.c.h.b16 %v1189
    %v1742 = vunpack.c.l.b16 %v1190
    %v1743 = vunpack.c.h.b16 %v1190
    %v1744 = vunpack.c.l.b16 %v1191
    %v1745 = vunpack.c.h.b16 %v1191
    %v1746 = vunpack.c.l.b16 %v1192
    %v1747 = vunpack.c.h.b16 %v1192
    %v1748 = vunpack.c.l.b16 %v1193
    %v1749 = vunpack.c.h.b16 %v1193
    %v1750 = vunpack.c.l.b16 %v1194
    %v1751 = vunpack.c.h.b16 %v1194
    %v1752 = vunpack.c.l.b16 %v1195
    %v1753 = vunpack.c.h.b16 %v1195
    %v1754 = vunpack.c.l.b16 %v1196
    %v1755 = vunpack.c.h.b16 %v1196
    %v1756 = vunpack.c.l.b16 %v1197
    %v1757 = vunpack.c.h.b16 %v1197
    %v1758 = vunpack.c.l.b16 %v1198
    %v1759 = vunpack.c.h.b16 %v1198
    %v1760 = vunpack.c.l.b16 %v1199
    %v1761 = vunpack.c.h.b16 %v1199
    %v1762 = vunpack.c.l.b16 %v1200
    %v1763 = vunpack.c.h.b16 %v1200
    %v1764 = vunpack.c.l.b16 %v1201
    %v1765 = vunpack.c.h.b16 %v1201
    %v1766 = vunpack.c.l.b16 %v1202
    %v1767 = vunpack.c.h.b16 %v1202
    %v1768 = vunpack.c.l.b16 %v1203
    %v1769 = vunpack.c.h.b16 %v1203
    %v1770 = vunpack.c.l.b16 %v1204
    %v1771 = vunpack.c.h.b16 %v1204
    %v1772 = vunpack.c.l.b16 %v1205
    %v1773 = vunpack.c.h.b16 %v1205
    %v1774 = vunpack.c.l.b16 %v1206
    %v1775 = vunpack.c.h.b16 %v1206
    %v1776 = vunpack.c.l.b16 %v1207
    %v1777 = vunpack.c.h.b16 %v1207
    %v1778 = vunpack.c.l.b16 %v1208
    %v1779 = vunpack.c.h.b16 %v1208
    %v1780 = vunpack.c.l.b16 %v1209
    %v1781 = vunpack.c.h.b16 %v1209
    %v1782 = vunpack.c.l.b16 %v1210
    %v1783 = vunpack.c.h.b16 %v1210
    %v1784 = vunpack.c.l.b16 %v1211
    %v1785 = vunpack.c.h.b16 %v1211
    %v1786 = vunpack.c.l.b16 %v1212
    %v1787 = vunpack.c.h.b16 %v1212
    %v1788 = vunpack.c.l.b16 %v1213
    %v1789 = vunpack.c.h.b16 %v1213
    %v1790 = vunpack.c.l.b16 %v1214
    %v1791 = vunpack.c.h.b16 %v1214
    %v1792 = vunpack.c.l.b16 %v1215
    %v1793 = vunpack.c.h.b16 %v1215
    %v1794 = vunpack.c.l.b16 %v1216
    %v1795 = vunpack.c.h.b16 %v1216
    %v1796 = vunpack.c.l.b16 %v1217
    %v1797 = vunpack.c.h.b16 %v1217
    %v1798 = vunpack.c.l.b16 %v1218
    %v1799 = vunpack.c.h.b16 %v1218
    %v1800 = vunpack.c.l.b16 %v1219
    %v1801 = vunpack.c.h.b16 %v1219
    %v1802 = vunpack.c.l.b16 %v1220
    %v1803 = vunpack.c.h.b16 %v1220
    %v1804 = vunpack.c.l.b16 %v1221
    %v1805 = vunpack.c.h.b16 %v1221
    %v1806 = vunpack.c.l.b16 %v1222
    %v1807 = vunpack.c.h.b16 %v1222
    %v1808 = vunpack.c.l.b16 %v1223
    %v1809 = vunpack.c.h.b16 %v1223
    %v1810 = vunpack.c.l.b16 %v1224
    %v1811 = vunpack.c.h.b16 %v1224
    %v1812 = vunpack.c.l.b16 %v1225
    %v1813 = vunpack.c.h.b16 %v1225
    %v1814 = vunpack.c.l.b16 %v1226
    %v1815 = vunpack.c.h.b16 %v1226
    %v1816 = vunpack.c.l.b16 %v1227
    %v1817 = vunpack.c.h.b16 %v1227
    %v1818 = vunpack.c.l.b16 %v1228
    %v1819 = vunpack.c.h.b16 %v1228
    %v1820 = vunpack.c.l.b16 %v1229
    %v1821 = vunpack.c.h.b16 %v1229
    %v1822 = vunpack.c.l.b16 %v1230
    %v1823 = vunpack.c.h.b16 %v1230
    %v1824 = vunpack.c.l.b16 %v1231
    %v1825 = vunpack.c.h.b16 %v1231
    %v1826 = vunpack.c.l.b16 %v1232
    %v1827 = vunpack.c.h.b16 %v1232
    %v1828 = vunpack.c.l.b16 %v1233
    %v1829 = vunpack.c.h.b16 %v1233
    %v1830 = vunpack.c.l.b16 %v1234
    %v1831 = vunpack.c.h.b16 %v1234
    %v1832 = vunpack.c.l.b16 %v1235
    %v1833 = vunpack.c.h.b16 %v1235
    %v1834 = vunpack.c.l.b16 %v1236
    %v1835 = vunpack.c.h.b16 %v1236
    %v1836 = vunpack.c.l.b16 %v1237
    %v1837 = vunpack.c.h.b16 %v1237
    %v1838 = vunpack.c.l.b16 %v1238
    %v1839 = vunpack.c.h.b16 %v1238
    %v1840 = vunpack.c.l.b16 %v1239
    %v1841 = vunpack.c.h.b16 %v1239
    %v1842 = vunpack.c.l.b16 %v1240
    %v1843 = vunpack.c.h.b16 %v1240
    %v1844 = vunpack.c.l.b16 %v1241
    %v1845 = vunpack.c.h.b16 %v1241
    %v1846 = vunpack.c.l.b16 %v1242
    %v1847 = vunpack.c.h.b16 %v1242
    %v1848 = vunpack.c.l.b16 %v1243
    %v1849 = vunpack.c.h.b16 %v1243
    %v1850 = vunpack.c.l.b16 %v1244
    %v1851 = vunpack.c.h.b16 %v1244
    %v1852 = vunpack.c.l.b16 %v1245
    %v1853 = vunpack.c.h.b16 %v1245
    %v1854 = vpack.c.b16 %v1728, %v1726
    %v1855 = vpack.c.b16 %v1729, %v1727
    %v1856 = vpack.c.b16 %v1732, %v1730
    %v1857 = vpack.c.b16 %v1733, %v1731
    %v1858 = vpack.c.b16 %v1736, %v1734
    %v1859 = vpack.c.b16 %v1737, %v1735
    %v1860 = vpack.c.b16 %v1740, %v1738
    %v1861 = vpack.c.b16 %v1741, %v1739
    %v1862 = vpack.c.b16 %v1744, %v1742
    %v1863 = vpack.c.b16 %v1745, %v1743
    %v1864 = vpack.c.b16 %v1748, %v1746
    %v1865 = vpack.c.b16 %v1749, %v1747
    %v1866 = vpack.c.b16 %v1752, %v1750
    %v1867 = vpack.c.b16 %v1753, %v1751
    %v1868 = vpack.c.b16 %v1756, %v1754
    %v1869 = vpack.c.b16 %v1757, %v1755
    %v1870 = vpack.c.b16 %v1760, %v1758
    %v1871 = vpack.c.b16 %v1761, %v1759
    %v1872 = vpack.c.b16 %v1764, %v1762
    %v1873 = vpack.c.b16 %v1765, %v1763
    %v1874 = vpack.c.b16 %v1768, %v1766
    %v1875 = vpack.c.b16 %v1769, %v1767
    %v1876 = vpack.c.b16 %v1772, %v1770
    %v1877 = vpack.c.b16 %v1773, %v1771
    %v1878 = vpack.c.b16 %v1776, %v1774
    %v1879 = vpack.c.b16 %v1777, %v1775
    %v1880 = vpack.c.b16 %v1780, %v1778
    %v1881 = vpack.c.b16 %v1781, %v1779
    %v1882 = vpack.c.b16 %v1784, %v1782
    %v1883 = vpack.c.b16 %v1785, %v1783
    %v1884 = vpack.c.b16 %v1788, %v1786
    %v1885 = vpack.c.b16 %v1789, %v1787
    %v1886 = vpack.c.b16 %v1792, %v1790
    %v1887 = vpack.c.b16 %v1793, %v1791
    %v1888 = vpack.c.b16 %v1796, %v1794
    %v1889 = vpack.c.b16 %v1797, %v1795
    %v1890 = vpack.c.b16 %v1800, %v1798
    %v1891 = vpack.c.b16 %v1801, %v1799
    %v1892 = vpack.c.b16 %v1804, %v1802
    %v1893 = vpack.c.b16 %v1805, %v1803
    %v1894 = vpack.c.b16 %v1808, %v1806
    %v1895 = vpack.c.b16 %v1809, %v1807
    %v1896 = vpack.c.b16 %v1812, %v1810
    %v1897 = vpack.c.b16 %v1813, %v1811
    %v1898 = vpack.c.b16 %v1816, %v1814
    %v1899 = vpack.c.b16 %v1817, %v1815
    %v1900 = vpack.c.b16 %v1820, %v1818
    %v1901 = vpack.c.b16 %v1821, %v1819
    %v1902 = vpack.c.b16 %v1824, %v1822
    %v1903 = vpack.c.b16 %v1825, %v1823
    %v1904 = vpack.c.b16 %v1828, %v1826
    %v1905 = vpack.c.b16 %v1829, %v1827
    %v1906 = vpack.c.b16 %v1832, %v1830
    %v1907 = vpack.c.b16 %v1833, %v1831
    %v1908 = vpack.c.b16 %v1836, %v1834
    %v1909 = vpack.c.b16 %v1837, %v1835
    %v1910 = vpack.c.b16 %v1840, %v1838
    %v1911 = vpack.c.b16 %v1841, %v1839
    %v1912 = vpack.c.b16 %v1844, %v1842
    %v1913 = vpack.c.b16 %v1845, %v1843
    %v1914 = vpack.c.b16 %v1848, %v1846
    %v1915 = vpack.c.b16 %v1849, %v1847
    %v1916 = vpack.c.b16 %v1852, %v1850
    %v1917 = vpack.c.b16 %v1853, %v1851
    %1982 = vmatprep.subr.bf16.mxu0 %v1247
    %1983 = vmatpush1.bf16.msra.mxu0 %v1246
    %1984 = vmatprep.subr.bf16.mxu0 %v1249
    %1985 = vmatpush1.bf16.msra.mxu0 %v1248
    %1986 = vmatprep.subr.bf16.mxu0 %v1251
    %1987 = vmatpush1.bf16.msra.mxu0 %v1250
    %1988 = vmatprep.subr.bf16.mxu0 %v1253
    %1989 = vmatpush1.bf16.msra.mxu0 %v1252
    %1990 = vmatprep.subr.bf16.mxu0 %v1255
    %1991 = vmatpush1.bf16.msra.mxu0 %v1254
    %1992 = vmatprep.subr.bf16.mxu0 %v1257
    %1993 = vmatpush1.bf16.msra.mxu0 %v1256
    %1994 = vmatprep.subr.bf16.mxu0 %v1259
    %1995 = vmatpush1.bf16.msra.mxu0 %v1258
    %1996 = vmatprep.subr.bf16.mxu0 %v1261
    %1997 = vmatpush1.bf16.msra.mxu0 %v1260
    %1998 = vmatprep.subr.bf16.mxu0 %v1263
    %1999 = vmatpush1.bf16.msra.mxu0 %v1262
    %2000 = vmatprep.subr.bf16.mxu0 %v1265
    %2001 = vmatpush1.bf16.msra.mxu0 %v1264
    %2002 = vmatprep.subr.bf16.mxu0 %v1267
    %2003 = vmatpush1.bf16.msra.mxu0 %v1266
    %2004 = vmatprep.subr.bf16.mxu0 %v1269
    %2005 = vmatpush1.bf16.msra.mxu0 %v1268
    %2006 = vmatprep.subr.bf16.mxu0 %v1271
    %2007 = vmatpush1.bf16.msra.mxu0 %v1270
    %2008 = vmatprep.subr.bf16.mxu0 %v1273
    %2009 = vmatpush1.bf16.msra.mxu0 %v1272
    %2010 = vmatprep.subr.bf16.mxu0 %v1275
    %2011 = vmatpush1.bf16.msra.mxu0 %v1274
    %2012 = vmatprep.subr.bf16.mxu0 %v1277
    %2013 = vmatpush1.bf16.msra.mxu0 %v1276
    %2014 = vmatprep.mubr.bf16.mxu0 %v1855
    %2015 = vmatmul.mubr.bf16.gmra.mrb[0].mxu0 %v1854
    %v2016 = vpop.f32.mrb[0].mxu0
    %v2017 = vadd.f32 %v1345, %v2016
    %v2018 = vpop.f32.mrb[0].mxu0
    %v2019 = vadd.f32 %v1345, %v2018
    %v2020 = vpop.f32.mrb[0].mxu0
    %v2021 = vadd.f32 %v1350, %v2020
    %v2022 = vpop.f32.mrb[0].mxu0
    %v2023 = vadd.f32 %v1350, %v2022
    %2024 = vmatprep.mubr.bf16.mxu0 %v1857
    %2025 = vmatmul.mubr.bf16.gmra.mrb[0].mxu0 %v1856
    %v2026 = vpop.f32.mrb[0].mxu0
    %v2027 = vadd.f32 %v1355, %v2026
    %v2028 = vpop.f32.mrb[0].mxu0
    %v2029 = vadd.f32 %v1355, %v2028
    %v2030 = vpop.f32.mrb[0].mxu0
    %v2031 = vadd.f32 %v1360, %v2030
    %v2032 = vpop.f32.mrb[0].mxu0
    %v2033 = vadd.f32 %v1360, %v2032
    %2034 = vmatprep.mubr.bf16.mxu0 %v1859
    %2035 = vmatmul.mubr.bf16.gmra.mrb[0].mxu0 %v1858
    %v2036 = vpop.f32.mrb[0].mxu0
    %v2037 = vadd.f32 %v1365, %v2036
    %v2038 = vpop.f32.mrb[0].mxu0
    %v2039 = vadd.f32 %v1365, %v2038
    %v2040 = vpop.f32.mrb[0].mxu0
    %v2041 = vadd.f32 %v1370, %v2040
    %v2042 = vpop.f32.mrb[0].mxu0
    %v2043 = vadd.f32 %v1370, %v2042
    %2044 = vmatprep.mubr.bf16.mxu0 %v1861
    %2045 = vmatmul.mubr.bf16.gmra.mrb[0].mxu0 %v1860
    %v2046 = vpop.f32.mrb[0].mxu0
    %v2047 = vadd.f32 %v1375, %v2046
    %v2048 = vpop.f32.mrb[0].mxu0
    %v2049 = vadd.f32 %v1375, %v2048
    %v2050 = vpop.f32.mrb[0].mxu0
    %v2051 = vadd.f32 %v1380, %v2050
    %v2052 = vpop.f32.mrb[0].mxu0
    %v2053 = vadd.f32 %v1380, %v2052
    %2054 = vmatprep.mubr.bf16.mxu0 %v1863
    %2055 = vmatmul.mubr.bf16.gmra.mrb[0].mxu0 %v1862
    %v2056 = vpop.f32.mrb[0].mxu0
    %v2057 = vadd.f32 %v1385, %v2056
    %v2058 = vpop.f32.mrb[0].mxu0
    %v2059 = vadd.f32 %v1385, %v2058
    %v2060 = vpop.f32.mrb[0].mxu0
    %v2061 = vadd.f32 %v1390, %v2060
    %v2062 = vpop.f32.mrb[0].mxu0
    %v2063 = vadd.f32 %v1390, %v2062
    %2064 = vmatprep.mubr.bf16.mxu0 %v1865
    %2065 = vmatmul.mubr.bf16.gmra.mrb[0].mxu0 %v1864
    %v2066 = vpop.f32.mrb[0].mxu0
    %v2067 = vadd.f32 %v1395, %v2066
    %v2068 = vpop.f32.mrb[0].mxu0
    %v2069 = vadd.f32 %v1395, %v2068
    %v2070 = vpop.f32.mrb[0].mxu0
    %v2071 = vadd.f32 %v1400, %v2070
    %v2072 = vpop.f32.mrb[0].mxu0
    %v2073 = vadd.f32 %v1400, %v2072
    %2074 = vmatprep.mubr.bf16.mxu0 %v1867
    %2075 = vmatmul.mubr.bf16.gmra.mrb[0].mxu0 %v1866
    %v2076 = vpop.f32.mrb[0].mxu0
    %v2077 = vadd.f32 %v1405, %v2076
    %v2078 = vpop.f32.mrb[0].mxu0
    %v2079 = vadd.f32 %v1405, %v2078
    %v2080 = vpop.f32.mrb[0].mxu0
    %v2081 = vadd.f32 %v1410, %v2080
    %v2082 = vpop.f32.mrb[0].mxu0
    %v2083 = vadd.f32 %v1410, %v2082
    %2084 = vmatprep.mubr.bf16.mxu0 %v1869
    %2085 = vmatmul.mubr.bf16.gmra.mrb[0].mxu0 %v1868
    %v2086 = vpop.f32.mrb[0].mxu0
    %v2087 = vadd.f32 %v1415, %v2086
    %v2088 = vpop.f32.mrb[0].mxu0
    %v2089 = vadd.f32 %v1415, %v2088
    %v2090 = vpop.f32.mrb[0].mxu0
    %v2091 = vadd.f32 %v1420, %v2090
    %v2092 = vpop.f32.mrb[0].mxu0
    %v2093 = vadd.f32 %v1420, %v2092
    %2094 = vmatprep.mubr.bf16.mxu0 %v1871
    %2095 = vmatmul.mubr.bf16.gmra.mrb[0].mxu0 %v1870
    %v2096 = vpop.f32.mrb[0].mxu0
    %v2097 = vadd.f32 %v1425, %v2096
    %v2098 = vpop.f32.mrb[0].mxu0
    %v2099 = vadd.f32 %v1425, %v2098
    %v2100 = vpop.f32.mrb[0].mxu0
    %v2101 = vadd.f32 %v1430, %v2100
    %v2102 = vpop.f32.mrb[0].mxu0
    %v2103 = vadd.f32 %v1430, %v2102
    %2104 = vmatprep.mubr.bf16.mxu0 %v1873
    %2105 = vmatmul.mubr.bf16.gmra.mrb[0].mxu0 %v1872
    %v2106 = vpop.f32.mrb[0].mxu0
    %v2107 = vadd.f32 %v1435, %v2106
    %v2108 = vpop.f32.mrb[0].mxu0
    %v2109 = vadd.f32 %v1435, %v2108
    %v2110 = vpop.f32.mrb[0].mxu0
    %v2111 = vadd.f32 %v1440, %v2110
    %v2112 = vpop.f32.mrb[0].mxu0
    %v2113 = vadd.f32 %v1440, %v2112
    %2114 = vmatprep.mubr.bf16.mxu0 %v1875
    %2115 = vmatmul.mubr.bf16.gmra.mrb[0].mxu0 %v1874
    %v2116 = vpop.f32.mrb[0].mxu0
    %v2117 = vadd.f32 %v1445, %v2116
    %v2118 = vpop.f32.mrb[0].mxu0
    %v2119 = vadd.f32 %v1445, %v2118
    %v2120 = vpop.f32.mrb[0].mxu0
    %v2121 = vadd.f32 %v1450, %v2120
    %v2122 = vpop.f32.mrb[0].mxu0
    %v2123 = vadd.f32 %v1450, %v2122
    %2124 = vmatprep.mubr.bf16.mxu0 %v1877
    %2125 = vmatmul.mubr.bf16.gmra.mrb[0].mxu0 %v1876
    %v2126 = vpop.f32.mrb[0].mxu0
    %v2127 = vadd.f32 %v1455, %v2126
    %v2128 = vpop.f32.mrb[0].mxu0
    %v2129 = vadd.f32 %v1455, %v2128
    %v2130 = vpop.f32.mrb[0].mxu0
    %v2131 = vadd.f32 %v1460, %v2130
    %v2132 = vpop.f32.mrb[0].mxu0
    %v2133 = vadd.f32 %v1460, %v2132
    %2134 = vmatprep.mubr.bf16.mxu0 %v1879
    %2135 = vmatmul.mubr.bf16.gmra.mrb[0].mxu0 %v1878
    %v2136 = vpop.f32.mrb[0].mxu0
    %v2137 = vadd.f32 %v1465, %v2136
    %v2138 = vpop.f32.mrb[0].mxu0
    %v2139 = vadd.f32 %v1465, %v2138
    %v2140 = vpop.f32.mrb[0].mxu0
    %v2141 = vadd.f32 %v1470, %v2140
    %v2142 = vpop.f32.mrb[0].mxu0
    %v2143 = vadd.f32 %v1470, %v2142
    %2144 = vmatprep.mubr.bf16.mxu0 %v1881
    %2145 = vmatmul.mubr.bf16.gmra.mrb[0].mxu0 %v1880
    %v2146 = vpop.f32.mrb[0].mxu0
    %v2147 = vadd.f32 %v1475, %v2146
    %v2148 = vpop.f32.mrb[0].mxu0
    %v2149 = vadd.f32 %v1475, %v2148
    %v2150 = vpop.f32.mrb[0].mxu0
    %v2151 = vadd.f32 %v1480, %v2150
    %v2152 = vpop.f32.mrb[0].mxu0
    %v2153 = vadd.f32 %v1480, %v2152
    %2154 = vmatprep.mubr.bf16.mxu0 %v1883
    %2155 = vmatmul.mubr.bf16.gmra.mrb[0].mxu0 %v1882
    %v2156 = vpop.f32.mrb[0].mxu0
    %v2157 = vadd.f32 %v1485, %v2156
    %v2158 = vpop.f32.mrb[0].mxu0
    %v2159 = vadd.f32 %v1485, %v2158
    %v2160 = vpop.f32.mrb[0].mxu0
    %v2161 = vadd.f32 %v1490, %v2160
    %v2162 = vpop.f32.mrb[0].mxu0
    %v2163 = vadd.f32 %v1490, %v2162
    %2164 = vmatprep.mubr.bf16.mxu0 %v1885
    %2165 = vmatmul.mubr.bf16.gmra.mrb[0].mxu0 %v1884
    %v2166 = vpop.f32.mrb[0].mxu0
    %v2167 = vadd.f32 %v1495, %v2166
    %v2168 = vpop.f32.mrb[0].mxu0
    %v2169 = vadd.f32 %v1495, %v2168
    %v2170 = vpop.f32.mrb[0].mxu0
    %v2171 = vadd.f32 %v1500, %v2170
    %v2172 = vpop.f32.mrb[0].mxu0
    %v2173 = vadd.f32 %v1500, %v2172
    %2174 = vmatprep.mubr.bf16.mxu0 %v1887
    %2175 = vmatmul.mubr.bf16.gmra.mrb[0].mxu0 %v1886
    %v2176 = vpop.f32.mrb[0].mxu0
    %v2177 = vadd.f32 %v1505, %v2176
    %v2178 = vpop.f32.mrb[0].mxu0
    %v2179 = vadd.f32 %v1505, %v2178
    %v2180 = vpop.f32.mrb[0].mxu0
    %v2181 = vadd.f32 %v1510, %v2180
    %v2182 = vpop.f32.mrb[0].mxu0
    %v2183 = vadd.f32 %v1510, %v2182
    %2184 = vmatprep.mubr.bf16.mxu0 %v1889
    %2185 = vmatmul.mubr.bf16.gmra.mrb[0].mxu0 %v1888
    %v2186 = vpop.f32.mrb[0].mxu0
    %v2187 = vadd.f32 %v1515, %v2186
    %v2188 = vpop.f32.mrb[0].mxu0
    %v2189 = vadd.f32 %v1515, %v2188
    %v2190 = vpop.f32.mrb[0].mxu0
    %v2191 = vadd.f32 %v1520, %v2190
    %v2192 = vpop.f32.mrb[0].mxu0
    %v2193 = vadd.f32 %v1520, %v2192
    %2194 = vmatprep.mubr.bf16.mxu0 %v1891
    %2195 = vmatmul.mubr.bf16.gmra.mrb[0].mxu0 %v1890
    %v2196 = vpop.f32.mrb[0].mxu0
    %v2197 = vadd.f32 %v1525, %v2196
    %v2198 = vpop.f32.mrb[0].mxu0
    %v2199 = vadd.f32 %v1525, %v2198
    %v2200 = vpop.f32.mrb[0].mxu0
    %v2201 = vadd.f32 %v1530, %v2200
    %v2202 = vpop.f32.mrb[0].mxu0
    %v2203 = vadd.f32 %v1530, %v2202
    %2204 = vmatprep.mubr.bf16.mxu0 %v1893
    %2205 = vmatmul.mubr.bf16.gmra.mrb[0].mxu0 %v1892
    %v2206 = vpop.f32.mrb[0].mxu0
    %v2207 = vadd.f32 %v1535, %v2206
    %v2208 = vpop.f32.mrb[0].mxu0
    %v2209 = vadd.f32 %v1535, %v2208
    %v2210 = vpop.f32.mrb[0].mxu0
    %v2211 = vadd.f32 %v1540, %v2210
    %v2212 = vpop.f32.mrb[0].mxu0
    %v2213 = vadd.f32 %v1540, %v2212
    %2214 = vmatprep.mubr.bf16.mxu0 %v1895
    %2215 = vmatmul.mubr.bf16.gmra.mrb[0].mxu0 %v1894
    %v2216 = vpop.f32.mrb[0].mxu0
    %v2217 = vadd.f32 %v1545, %v2216
    %v2218 = vpop.f32.mrb[0].mxu0
    %v2219 = vadd.f32 %v1545, %v2218
    %v2220 = vpop.f32.mrb[0].mxu0
    %v2221 = vadd.f32 %v1550, %v2220
    %v2222 = vpop.f32.mrb[0].mxu0
    %v2223 = vadd.f32 %v1550, %v2222
    %2224 = vmatprep.mubr.bf16.mxu0 %v1897
    %2225 = vmatmul.mubr.bf16.gmra.mrb[0].mxu0 %v1896
    %v2226 = vpop.f32.mrb[0].mxu0
    %v2227 = vadd.f32 %v1555, %v2226
    %v2228 = vpop.f32.mrb[0].mxu0
    %v2229 = vadd.f32 %v1555, %v2228
    %v2230 = vpop.f32.mrb[0].mxu0
    %v2231 = vadd.f32 %v1560, %v2230
    %v2232 = vpop.f32.mrb[0].mxu0
    %v2233 = vadd.f32 %v1560, %v2232
    %2234 = vmatprep.mubr.bf16.mxu0 %v1899
    %2235 = vmatmul.mubr.bf16.gmra.mrb[0].mxu0 %v1898
    %v2236 = vpop.f32.mrb[0].mxu0
    %v2237 = vadd.f32 %v1565, %v2236
    %v2238 = vpop.f32.mrb[0].mxu0
    %v2239 = vadd.f32 %v1565, %v2238
    %v2240 = vpop.f32.mrb[0].mxu0
    %v2241 = vadd.f32 %v1570, %v2240
    %v2242 = vpop.f32.mrb[0].mxu0
    %v2243 = vadd.f32 %v1570, %v2242
    %2244 = vmatprep.mubr.bf16.mxu0 %v1901
    %2245 = vmatmul.mubr.bf16.gmra.mrb[0].mxu0 %v1900
    %v2246 = vpop.f32.mrb[0].mxu0
    %v2247 = vadd.f32 %v1575, %v2246
    %v2248 = vpop.f32.mrb[0].mxu0
    %v2249 = vadd.f32 %v1575, %v2248
    %v2250 = vpop.f32.mrb[0].mxu0
    %v2251 = vadd.f32 %v1580, %v2250
    %v2252 = vpop.f32.mrb[0].mxu0
    %v2253 = vadd.f32 %v1580, %v2252
    %2254 = vmatprep.mubr.bf16.mxu0 %v1903
    %2255 = vmatmul.mubr.bf16.gmra.mrb[0].mxu0 %v1902
    %v2256 = vpop.f32.mrb[0].mxu0
    %v2257 = vadd.f32 %v1585, %v2256
    %v2258 = vpop.f32.mrb[0].mxu0
    %v2259 = vadd.f32 %v1585, %v2258
    %v2260 = vpop.f32.mrb[0].mxu0
    %v2261 = vadd.f32 %v1590, %v2260
    %v2262 = vpop.f32.mrb[0].mxu0
    %v2263 = vadd.f32 %v1590, %v2262
    %2264 = vmatprep.mubr.bf16.mxu0 %v1905
    %2265 = vmatmul.mubr.bf16.gmra.mrb[0].mxu0 %v1904
    %v2266 = vpop.f32.mrb[0].mxu0
    %v2267 = vadd.f32 %v1595, %v2266
    %v2268 = vpop.f32.mrb[0].mxu0
    %v2269 = vadd.f32 %v1595, %v2268
    %v2270 = vpop.f32.mrb[0].mxu0
    %v2271 = vadd.f32 %v1600, %v2270
    %v2272 = vpop.f32.mrb[0].mxu0
    %v2273 = vadd.f32 %v1600, %v2272
    %2274 = vmatprep.mubr.bf16.mxu0 %v1907
    %2275 = vmatmul.mubr.bf16.gmra.mrb[0].mxu0 %v1906
    %v2276 = vpop.f32.mrb[0].mxu0
    %v2277 = vadd.f32 %v1605, %v2276
    %v2278 = vpop.f32.mrb[0].mxu0
    %v2279 = vadd.f32 %v1605, %v2278
    %v2280 = vpop.f32.mrb[0].mxu0
    %v2281 = vadd.f32 %v1610, %v2280
    %v2282 = vpop.f32.mrb[0].mxu0
    %v2283 = vadd.f32 %v1610, %v2282
    %2284 = vmatprep.mubr.bf16.mxu0 %v1909
    %2285 = vmatmul.mubr.bf16.gmra.mrb[0].mxu0 %v1908
    %v2286 = vpop.f32.mrb[0].mxu0
    %v2287 = vadd.f32 %v1615, %v2286
    %v2288 = vpop.f32.mrb[0].mxu0
    %v2289 = vadd.f32 %v1615, %v2288
    %v2290 = vpop.f32.mrb[0].mxu0
    %v2291 = vadd.f32 %v1620, %v2290
    %v2292 = vpop.f32.mrb[0].mxu0
    %v2293 = vadd.f32 %v1620, %v2292
    %2294 = vmatprep.mubr.bf16.mxu0 %v1911
    %2295 = vmatmul.mubr.bf16.gmra.mrb[0].mxu0 %v1910
    %v2296 = vpop.f32.mrb[0].mxu0
    %v2297 = vadd.f32 %v1625, %v2296
    %v2298 = vpop.f32.mrb[0].mxu0
    %v2299 = vadd.f32 %v1625, %v2298
    %v2300 = vpop.f32.mrb[0].mxu0
    %v2301 = vadd.f32 %v1630, %v2300
    %v2302 = vpop.f32.mrb[0].mxu0
    %v2303 = vadd.f32 %v1630, %v2302
    %2304 = vmatprep.mubr.bf16.mxu0 %v1913
    %2305 = vmatmul.mubr.bf16.gmra.mrb[0].mxu0 %v1912
    %v2306 = vpop.f32.mrb[0].mxu0
    %v2307 = vadd.f32 %v1635, %v2306
    %v2308 = vpop.f32.mrb[0].mxu0
    %v2309 = vadd.f32 %v1635, %v2308
    %v2310 = vpop.f32.mrb[0].mxu0
    %v2311 = vadd.f32 %v1640, %v2310
    %v2312 = vpop.f32.mrb[0].mxu0
    %v2313 = vadd.f32 %v1640, %v2312
    %2314 = vmatprep.mubr.bf16.mxu0 %v1915
    %2315 = vmatmul.mubr.bf16.gmra.mrb[0].mxu0 %v1914
    %v2316 = vpop.f32.mrb[0].mxu0
    %v2317 = vadd.f32 %v1645, %v2316
    %v2318 = vpop.f32.mrb[0].mxu0
    %v2319 = vadd.f32 %v1645, %v2318
    %v2320 = vpop.f32.mrb[0].mxu0
    %v2321 = vadd.f32 %v1650, %v2320
    %v2322 = vpop.f32.mrb[0].mxu0
    %v2323 = vadd.f32 %v1650, %v2322
    %2324 = vmatprep.mubr.bf16.mxu0 %v1917
    %2325 = vmatmul.mubr.bf16.gmra.mrb[0].mxu0 %v1916
    %v2326 = vpop.f32.mrb[0].mxu0
    %v2327 = vadd.f32 %v1655, %v2326
    %v2328 = vpop.f32.mrb[0].mxu0
    %v2329 = vadd.f32 %v1655, %v2328
    %v2330 = vpop.f32.mrb[0].mxu0
    %v2331 = vadd.f32 %v1660, %v2330
    %v2332 = vpop.f32.mrb[0].mxu0
    %v2333 = vadd.f32 %v1660, %v2332
    %2334 = vdwg.mxu0
    %v2335 = vpack.c.bf16 %v2021, %v2017
    %v2336 = vpack.c.bf16 %v2023, %v2019
    %v2337 = vpack.c.bf16 %v2031, %v2027
    %v2338 = vpack.c.bf16 %v2033, %v2029
    %v2339 = vpack.c.bf16 %v2041, %v2037
    %v2340 = vpack.c.bf16 %v2043, %v2039
    %v2341 = vpack.c.bf16 %v2051, %v2047
    %v2342 = vpack.c.bf16 %v2053, %v2049
    %v2343 = vpack.c.bf16 %v2061, %v2057
    %v2344 = vpack.c.bf16 %v2063, %v2059
    %v2345 = vpack.c.bf16 %v2071, %v2067
    %v2346 = vpack.c.bf16 %v2073, %v2069
    %v2347 = vpack.c.bf16 %v2081, %v2077
    %v2348 = vpack.c.bf16 %v2083, %v2079
    %v2349 = vpack.c.bf16 %v2091, %v2087
    %v2350 = vpack.c.bf16 %v2093, %v2089
    %v2351 = vpack.c.bf16 %v2101, %v2097
    %v2352 = vpack.c.bf16 %v2103, %v2099
    %v2353 = vpack.c.bf16 %v2111, %v2107
    %v2354 = vpack.c.bf16 %v2113, %v2109
    %v2355 = vpack.c.bf16 %v2121, %v2117
    %v2356 = vpack.c.bf16 %v2123, %v2119
    %v2357 = vpack.c.bf16 %v2131, %v2127
    %v2358 = vpack.c.bf16 %v2133, %v2129
    %v2359 = vpack.c.bf16 %v2141, %v2137
    %v2360 = vpack.c.bf16 %v2143, %v2139
    %v2361 = vpack.c.bf16 %v2151, %v2147
    %v2362 = vpack.c.bf16 %v2153, %v2149
    %v2363 = vpack.c.bf16 %v2161, %v2157
    %v2364 = vpack.c.bf16 %v2163, %v2159
    %v2365 = vpack.c.bf16 %v2171, %v2167
    %v2366 = vpack.c.bf16 %v2173, %v2169
    %v2367 = vpack.c.bf16 %v2181, %v2177
    %v2368 = vpack.c.bf16 %v2183, %v2179
    %v2369 = vpack.c.bf16 %v2191, %v2187
    %v2370 = vpack.c.bf16 %v2193, %v2189
    %v2371 = vpack.c.bf16 %v2201, %v2197
    %v2372 = vpack.c.bf16 %v2203, %v2199
    %v2373 = vpack.c.bf16 %v2211, %v2207
    %v2374 = vpack.c.bf16 %v2213, %v2209
    %v2375 = vpack.c.bf16 %v2221, %v2217
    %v2376 = vpack.c.bf16 %v2223, %v2219
    %v2377 = vpack.c.bf16 %v2231, %v2227
    %v2378 = vpack.c.bf16 %v2233, %v2229
    %v2379 = vpack.c.bf16 %v2241, %v2237
    %v2380 = vpack.c.bf16 %v2243, %v2239
    %v2381 = vpack.c.bf16 %v2251, %v2247
    %v2382 = vpack.c.bf16 %v2253, %v2249
    %v2383 = vpack.c.bf16 %v2261, %v2257
    %v2384 = vpack.c.bf16 %v2263, %v2259
    %v2385 = vpack.c.bf16 %v2271, %v2267
    %v2386 = vpack.c.bf16 %v2273, %v2269
    %v2387 = vpack.c.bf16 %v2281, %v2277
    %v2388 = vpack.c.bf16 %v2283, %v2279
    %v2389 = vpack.c.bf16 %v2291, %v2287
    %v2390 = vpack.c.bf16 %v2293, %v2289
    %v2391 = vpack.c.bf16 %v2301, %v2297
    %v2392 = vpack.c.bf16 %v2303, %v2299
    %v2393 = vpack.c.bf16 %v2311, %v2307
    %v2394 = vpack.c.bf16 %v2313, %v2309
    %v2395 = vpack.c.bf16 %v2321, %v2317
    %v2396 = vpack.c.bf16 %v2323, %v2319
    %v2397 = vpack.c.bf16 %v2331, %v2327
    %v2398 = vpack.c.bf16 %v2333, %v2329
    %v2399 = vmul.bf16 %v2335, 1056980736
    %v2400 = vmul.bf16 %v2336, 1056980736
    %v2401 = vmul.bf16 %v2337, 1056980736
    %v2402 = vmul.bf16 %v2338, 1056980736
    %v2403 = vmul.bf16 %v2339, 1056980736
    %v2404 = vmul.bf16 %v2340, 1056980736
    %v2405 = vmul.bf16 %v2341, 1056980736
    %v2406 = vmul.bf16 %v2342, 1056980736
    %v2407 = vmul.bf16 %v2343, 1056980736
    %v2408 = vmul.bf16 %v2344, 1056980736
    %v2409 = vmul.bf16 %v2345, 1056980736
    %v2410 = vmul.bf16 %v2346, 1056980736
    %v2411 = vmul.bf16 %v2347, 1056980736
    %v2412 = vmul.bf16 %v2348, 1056980736
    %v2413 = vmul.bf16 %v2349, 1056980736
    %v2414 = vmul.bf16 %v2350, 1056980736
    %v2415 = vmul.bf16 %v2351, 1056980736
    %v2416 = vmul.bf16 %v2352, 1056980736
    %v2417 = vmul.bf16 %v2353, 1056980736
    %v2418 = vmul.bf16 %v2354, 1056980736
    %v2419 = vmul.bf16 %v2355, 1056980736
    %v2420 = vmul.bf16 %v2356, 1056980736
    %v2421 = vmul.bf16 %v2357, 1056980736
    %v2422 = vmul.bf16 %v2358, 1056980736
    %v2423 = vmul.bf16 %v2359, 1056980736
    %v2424 = vmul.bf16 %v2360, 1056980736
    %v2425 = vmul.bf16 %v2361, 1056980736
    %v2426 = vmul.bf16 %v2362, 1056980736
    %v2427 = vmul.bf16 %v2363, 1056980736
    %v2428 = vmul.bf16 %v2364, 1056980736
    %v2429 = vmul.bf16 %v2365, 1056980736
    %v2430 = vmul.bf16 %v2366, 1056980736
    %v2431 = vmul.bf16 %v2367, 1056980736
    %v2432 = vmul.bf16 %v2368, 1056980736
    %v2433 = vmul.bf16 %v2369, 1056980736
    %v2434 = vmul.bf16 %v2370, 1056980736
    %v2435 = vmul.bf16 %v2371, 1056980736
    %v2436 = vmul.bf16 %v2372, 1056980736
    %v2437 = vmul.bf16 %v2373, 1056980736
    %v2438 = vmul.bf16 %v2374, 1056980736
    %v2439 = vmul.bf16 %v2375, 1056980736
    %v2440 = vmul.bf16 %v2376, 1056980736
    %v2441 = vmul.bf16 %v2377, 1056980736
    %v2442 = vmul.bf16 %v2378, 1056980736
    %v2443 = vmul.bf16 %v2379, 1056980736
    %v2444 = vmul.bf16 %v2380, 1056980736
    %v2445 = vmul.bf16 %v2381, 1056980736
    %v2446 = vmul.bf16 %v2382, 1056980736
    %v2447 = vmul.bf16 %v2383, 1056980736
    %v2448 = vmul.bf16 %v2384, 1056980736
    %v2449 = vmul.bf16 %v2385, 1056980736
    %v2450 = vmul.bf16 %v2386, 1056980736
    %v2451 = vmul.bf16 %v2387, 1056980736
    %v2452 = vmul.bf16 %v2388, 1056980736
    %v2453 = vmul.bf16 %v2389, 1056980736
    %v2454 = vmul.bf16 %v2390, 1056980736
    %v2455 = vmul.bf16 %v2391, 1056980736
    %v2456 = vmul.bf16 %v2392, 1056980736
    %v2457 = vmul.bf16 %v2393, 1056980736
    %v2458 = vmul.bf16 %v2394, 1056980736
    %v2459 = vmul.bf16 %v2395, 1056980736
    %v2460 = vmul.bf16 %v2396, 1056980736
    %v2461 = vmul.bf16 %v2397, 1056980736
    %v2462 = vmul.bf16 %v2398, 1056980736
    %v2463 = vmul.bf16 %v2335, 1027030327
    %v2464 = vmul.bf16 %v2336, 1027030327
    %v2465 = vmul.bf16 %v2337, 1027030327
    %v2466 = vmul.bf16 %v2338, 1027030327
    %v2467 = vmul.bf16 %v2339, 1027030327
    %v2468 = vmul.bf16 %v2340, 1027030327
    %v2469 = vmul.bf16 %v2341, 1027030327
    %v2470 = vmul.bf16 %v2342, 1027030327
    %v2471 = vmul.bf16 %v2343, 1027030327
    %v2472 = vmul.bf16 %v2344, 1027030327
    %v2473 = vmul.bf16 %v2345, 1027030327
    %v2474 = vmul.bf16 %v2346, 1027030327
    %v2475 = vmul.bf16 %v2347, 1027030327
    %v2476 = vmul.bf16 %v2348, 1027030327
    %v2477 = vmul.bf16 %v2349, 1027030327
    %v2478 = vmul.bf16 %v2350, 1027030327
    %v2479 = vmul.bf16 %v2351, 1027030327
    %v2480 = vmul.bf16 %v2352, 1027030327
    %v2481 = vmul.bf16 %v2353, 1027030327
    %v2482 = vmul.bf16 %v2354, 1027030327
    %v2483 = vmul.bf16 %v2355, 1027030327
    %v2484 = vmul.bf16 %v2356, 1027030327
    %v2485 = vmul.bf16 %v2357, 1027030327
    %v2486 = vmul.bf16 %v2358, 1027030327
    %v2487 = vmul.bf16 %v2359, 1027030327
    %v2488 = vmul.bf16 %v2360, 1027030327
    %v2489 = vmul.bf16 %v2361, 1027030327
    %v2490 = vmul.bf16 %v2362, 1027030327
    %v2491 = vmul.bf16 %v2363, 1027030327
    %v2492 = vmul.bf16 %v2364, 1027030327
    %v2493 = vmul.bf16 %v2365, 1027030327
    %v2494 = vmul.bf16 %v2366, 1027030327
    %v2495 = vmul.bf16 %v2367, 1027030327
    %v2496 = vmul.bf16 %v2368, 1027030327
    %v2497 = vmul.bf16 %v2369, 1027030327
    %v2498 = vmul.bf16 %v2370, 1027030327
    %v2499 = vmul.bf16 %v2371, 1027030327
    %v2500 = vmul.bf16 %v2372, 1027030327
    %v2501 = vmul.bf16 %v2373, 1027030327
    %v2502 = vmul.bf16 %v2374, 1027030327
    %v2503 = vmul.bf16 %v2375, 1027030327
    %v2504 = vmul.bf16 %v2376, 1027030327
    %v2505 = vmul.bf16 %v2377, 1027030327
    %v2506 = vmul.bf16 %v2378, 1027030327
    %v2507 = vmul.bf16 %v2379, 1027030327
    %v2508 = vmul.bf16 %v2380, 1027030327
    %v2509 = vmul.bf16 %v2381, 1027030327
    %v2510 = vmul.bf16 %v2382, 1027030327
    %v2511 = vmul.bf16 %v2383, 1027030327
    %v2512 = vmul.bf16 %v2384, 1027030327
    %v2513 = vmul.bf16 %v2385, 1027030327
    %v2514 = vmul.bf16 %v2386, 1027030327
    %v2515 = vmul.bf16 %v2387, 1027030327
    %v2516 = vmul.bf16 %v2388, 1027030327
    %v2517 = vmul.bf16 %v2389, 1027030327
    %v2518 = vmul.bf16 %v2390, 1027030327
    %v2519 = vmul.bf16 %v2391, 1027030327
    %v2520 = vmul.bf16 %v2392, 1027030327
    %v2521 = vmul.bf16 %v2393, 1027030327
    %v2522 = vmul.bf16 %v2394, 1027030327
    %v2523 = vmul.bf16 %v2395, 1027030327
    %v2524 = vmul.bf16 %v2396, 1027030327
    %v2525 = vmul.bf16 %v2397, 1027030327
    %v2526 = vmul.bf16 %v2398, 1027030327
    %v2527 = vmul.bf16 %v2463, %v2335
    %v2528 = vmul.bf16 %v2464, %v2336
    %v2529 = vmul.bf16 %v2465, %v2337
    %v2530 = vmul.bf16 %v2466, %v2338
    %v2531 = vmul.bf16 %v2467, %v2339
    %v2532 = vmul.bf16 %v2468, %v2340
    %v2533 = vmul.bf16 %v2469, %v2341
    %v2534 = vmul.bf16 %v2470, %v2342
    %v2535 = vmul.bf16 %v2471, %v2343
    %v2536 = vmul.bf16 %v2472, %v2344
    %v2537 = vmul.bf16 %v2473, %v2345
    %v2538 = vmul.bf16 %v2474, %v2346
    %v2539 = vmul.bf16 %v2475, %v2347
    %v2540 = vmul.bf16 %v2476, %v2348
    %v2541 = vmul.bf16 %v2477, %v2349
    %v2542 = vmul.bf16 %v2478, %v2350
    %v2543 = vmul.bf16 %v2479, %v2351
    %v2544 = vmul.bf16 %v2480, %v2352
    %v2545 = vmul.bf16 %v2481, %v2353
    %v2546 = vmul.bf16 %v2482, %v2354
    %v2547 = vmul.bf16 %v2483, %v2355
    %v2548 = vmul.bf16 %v2484, %v2356
    %v2549 = vmul.bf16 %v2485, %v2357
    %v2550 = vmul.bf16 %v2486, %v2358
    %v2551 = vmul.bf16 %v2487, %v2359
    %v2552 = vmul.bf16 %v2488, %v2360
    %v2553 = vmul.bf16 %v2489, %v2361
    %v2554 = vmul.bf16 %v2490, %v2362
    %v2555 = vmul.bf16 %v2491, %v2363
    %v2556 = vmul.bf16 %v2492, %v2364
    %v2557 = vmul.bf16 %v2493, %v2365
    %v2558 = vmul.bf16 %v2494, %v2366
    %v2559 = vmul.bf16 %v2495, %v2367
    %v2560 = vmul.bf16 %v2496, %v2368
    %v2561 = vmul.bf16 %v2497, %v2369
    %v2562 = vmul.bf16 %v2498, %v2370
    %v2563 = vmul.bf16 %v2499, %v2371
    %v2564 = vmul.bf16 %v2500, %v2372
    %v2565 = vmul.bf16 %v2501, %v2373
    %v2566 = vmul.bf16 %v2502, %v2374
    %v2567 = vmul.bf16 %v2503, %v2375
    %v2568 = vmul.bf16 %v2504, %v2376
    %v2569 = vmul.bf16 %v2505, %v2377
    %v2570 = vmul.bf16 %v2506, %v2378
    %v2571 = vmul.bf16 %v2507, %v2379
    %v2572 = vmul.bf16 %v2508, %v2380
    %v2573 = vmul.bf16 %v2509, %v2381
    %v2574 = vmul.bf16 %v2510, %v2382
    %v2575 = vmul.bf16 %v2511, %v2383
    %v2576 = vmul.bf16 %v2512, %v2384
    %v2577 = vmul.bf16 %v2513, %v2385
    %v2578 = vmul.bf16 %v2514, %v2386
    %v2579 = vmul.bf16 %v2515, %v2387
    %v2580 = vmul.bf16 %v2516, %v2388
    %v2581 = vmul.bf16 %v2517, %v2389
    %v2582 = vmul.bf16 %v2518, %v2390
    %v2583 = vmul.bf16 %v2519, %v2391
    %v2584 = vmul.bf16 %v2520, %v2392
    %v2585 = vmul.bf16 %v2521, %v2393
    %v2586 = vmul.bf16 %v2522, %v2394
    %v2587 = vmul.bf16 %v2523, %v2395
    %v2588 = vmul.bf16 %v2524, %v2396
    %v2589 = vmul.bf16 %v2525, %v2397
    %v2590 = vmul.bf16 %v2526, %v2398
    %v2591 = vmul.bf16 %v2527, %v2335
    %v2592 = vmul.bf16 %v2528, %v2336
    %v2593 = vmul.bf16 %v2529, %v2337
    %v2594 = vmul.bf16 %v2530, %v2338
    %v2595 = vmul.bf16 %v2531, %v2339
    %v2596 = vmul.bf16 %v2532, %v2340
    %v2597 = vmul.bf16 %v2533, %v2341
    %v2598 = vmul.bf16 %v2534, %v2342
    %v2599 = vmul.bf16 %v2535, %v2343
    %v2600 = vmul.bf16 %v2536, %v2344
    %v2601 = vmul.bf16 %v2537, %v2345
    %v2602 = vmul.bf16 %v2538, %v2346
    %v2603 = vmul.bf16 %v2539, %v2347
    %v2604 = vmul.bf16 %v2540, %v2348
    %v2605 = vmul.bf16 %v2541, %v2349
    %v2606 = vmul.bf16 %v2542, %v2350
    %v2607 = vmul.bf16 %v2543, %v2351
    %v2608 = vmul.bf16 %v2544, %v2352
    %v2609 = vmul.bf16 %v2545, %v2353
    %v2610 = vmul.bf16 %v2546, %v2354
    %v2611 = vmul.bf16 %v2547, %v2355
    %v2612 = vmul.bf16 %v2548, %v2356
    %v2613 = vmul.bf16 %v2549, %v2357
    %v2614 = vmul.bf16 %v2550, %v2358
    %v2615 = vmul.bf16 %v2551, %v2359
    %v2616 = vmul.bf16 %v2552, %v2360
    %v2617 = vmul.bf16 %v2553, %v2361
    %v2618 = vmul.bf16 %v2554, %v2362
    %v2619 = vmul.bf16 %v2555, %v2363
    %v2620 = vmul.bf16 %v2556, %v2364
    %v2621 = vmul.bf16 %v2557, %v2365
    %v2622 = vmul.bf16 %v2558, %v2366
    %v2623 = vmul.bf16 %v2559, %v2367
    %v2624 = vmul.bf16 %v2560, %v2368
    %v2625 = vmul.bf16 %v2561, %v2369
    %v2626 = vmul.bf16 %v2562, %v2370
    %v2627 = vmul.bf16 %v2563, %v2371
    %v2628 = vmul.bf16 %v2564, %v2372
    %v2629 = vmul.bf16 %v2565, %v2373
    %v2630 = vmul.bf16 %v2566, %v2374
    %v2631 = vmul.bf16 %v2567, %v2375
    %v2632 = vmul.bf16 %v2568, %v2376
    %v2633 = vmul.bf16 %v2569, %v2377
    %v2634 = vmul.bf16 %v2570, %v2378
    %v2635 = vmul.bf16 %v2571, %v2379
    %v2636 = vmul.bf16 %v2572, %v2380
    %v2637 = vmul.bf16 %v2573, %v2381
    %v2638 = vmul.bf16 %v2574, %v2382
    %v2639 = vmul.bf16 %v2575, %v2383
    %v2640 = vmul.bf16 %v2576, %v2384
    %v2641 = vmul.bf16 %v2577, %v2385
    %v2642 = vmul.bf16 %v2578, %v2386
    %v2643 = vmul.bf16 %v2579, %v2387
    %v2644 = vmul.bf16 %v2580, %v2388
    %v2645 = vmul.bf16 %v2581, %v2389
    %v2646 = vmul.bf16 %v2582, %v2390
    %v2647 = vmul.bf16 %v2583, %v2391
    %v2648 = vmul.bf16 %v2584, %v2392
    %v2649 = vmul.bf16 %v2585, %v2393
    %v2650 = vmul.bf16 %v2586, %v2394
    %v2651 = vmul.bf16 %v2587, %v2395
    %v2652 = vmul.bf16 %v2588, %v2396
    %v2653 = vmul.bf16 %v2589, %v2397
    %v2654 = vmul.bf16 %v2590, %v2398
    %v2655 = vadd.bf16 %v2335, %v2591
    %v2656 = vadd.bf16 %v2336, %v2592
    %v2657 = vadd.bf16 %v2337, %v2593
    %v2658 = vadd.bf16 %v2338, %v2594
    %v2659 = vadd.bf16 %v2339, %v2595
    %v2660 = vadd.bf16 %v2340, %v2596
    %v2661 = vadd.bf16 %v2341, %v2597
    %v2662 = vadd.bf16 %v2342, %v2598
    %v2663 = vadd.bf16 %v2343, %v2599
    %v2664 = vadd.bf16 %v2344, %v2600
    %v2665 = vadd.bf16 %v2345, %v2601
    %v2666 = vadd.bf16 %v2346, %v2602
    %v2667 = vadd.bf16 %v2347, %v2603
    %v2668 = vadd.bf16 %v2348, %v2604
    %v2669 = vadd.bf16 %v2349, %v2605
    %v2670 = vadd.bf16 %v2350, %v2606
    %v2671 = vadd.bf16 %v2351, %v2607
    %v2672 = vadd.bf16 %v2352, %v2608
    %v2673 = vadd.bf16 %v2353, %v2609
    %v2674 = vadd.bf16 %v2354, %v2610
    %v2675 = vadd.bf16 %v2355, %v2611
    %v2676 = vadd.bf16 %v2356, %v2612
    %v2677 = vadd.bf16 %v2357, %v2613
    %v2678 = vadd.bf16 %v2358, %v2614
    %v2679 = vadd.bf16 %v2359, %v2615
    %v2680 = vadd.bf16 %v2360, %v2616
    %v2681 = vadd.bf16 %v2361, %v2617
    %v2682 = vadd.bf16 %v2362, %v2618
    %v2683 = vadd.bf16 %v2363, %v2619
    %v2684 = vadd.bf16 %v2364, %v2620
    %v2685 = vadd.bf16 %v2365, %v2621
    %v2686 = vadd.bf16 %v2366, %v2622
    %v2687 = vadd.bf16 %v2367, %v2623
    %v2688 = vadd.bf16 %v2368, %v2624
    %v2689 = vadd.bf16 %v2369, %v2625
    %v2690 = vadd.bf16 %v2370, %v2626
    %v2691 = vadd.bf16 %v2371, %v2627
    %v2692 = vadd.bf16 %v2372, %v2628
    %v2693 = vadd.bf16 %v2373, %v2629
    %v2694 = vadd.bf16 %v2374, %v2630
    %v2695 = vadd.bf16 %v2375, %v2631
    %v2696 = vadd.bf16 %v2376, %v2632
    %v2697 = vadd.bf16 %v2377, %v2633
    %v2698 = vadd.bf16 %v2378, %v2634
    %v2699 = vadd.bf16 %v2379, %v2635
    %v2700 = vadd.bf16 %v2380, %v2636
    %v2701 = vadd.bf16 %v2381, %v2637
    %v2702 = vadd.bf16 %v2382, %v2638
    %v2703 = vadd.bf16 %v2383, %v2639
    %v2704 = vadd.bf16 %v2384, %v2640
    %v2705 = vadd.bf16 %v2385, %v2641
    %v2706 = vadd.bf16 %v2386, %v2642
    %v2707 = vadd.bf16 %v2387, %v2643
    %v2708 = vadd.bf16 %v2388, %v2644
    %v2709 = vadd.bf16 %v2389, %v2645
    %v2710 = vadd.bf16 %v2390, %v2646
    %v2711 = vadd.bf16 %v2391, %v2647
    %v2712 = vadd.bf16 %v2392, %v2648
    %v2713 = vadd.bf16 %v2393, %v2649
    %v2714 = vadd.bf16 %v2394, %v2650
    %v2715 = vadd.bf16 %v2395, %v2651
    %v2716 = vadd.bf16 %v2396, %v2652
    %v2717 = vadd.bf16 %v2397, %v2653
    %v2718 = vadd.bf16 %v2398, %v2654
    %v2719 = vmul.bf16 %v2655, 1061961548
    %v2720 = vmul.bf16 %v2656, 1061961548
    %v2721 = vmul.bf16 %v2657, 1061961548
    %v2722 = vmul.bf16 %v2658, 1061961548
    %v2723 = vmul.bf16 %v2659, 1061961548
    %v2724 = vmul.bf16 %v2660, 1061961548
    %v2725 = vmul.bf16 %v2661, 1061961548
    %v2726 = vmul.bf16 %v2662, 1061961548
    %v2727 = vmul.bf16 %v2663, 1061961548
    %v2728 = vmul.bf16 %v2664, 1061961548
    %v2729 = vmul.bf16 %v2665, 1061961548
    %v2730 = vmul.bf16 %v2666, 1061961548
    %v2731 = vmul.bf16 %v2667, 1061961548
    %v2732 = vmul.bf16 %v2668, 1061961548
    %v2733 = vmul.bf16 %v2669, 1061961548
    %v2734 = vmul.bf16 %v2670, 1061961548
    %v2735 = vmul.bf16 %v2671, 1061961548
    %v2736 = vmul.bf16 %v2672, 1061961548
    %v2737 = vmul.bf16 %v2673, 1061961548
    %v2738 = vmul.bf16 %v2674, 1061961548
    %v2739 = vmul.bf16 %v2675, 1061961548
    %v2740 = vmul.bf16 %v2676, 1061961548
    %v2741 = vmul.bf16 %v2677, 1061961548
    %v2742 = vmul.bf16 %v2678, 1061961548
    %v2743 = vmul.bf16 %v2679, 1061961548
    %v2744 = vmul.bf16 %v2680, 1061961548
    %v2745 = vmul.bf16 %v2681, 1061961548
    %v2746 = vmul.bf16 %v2682, 1061961548
    %v2747 = vmul.bf16 %v2683, 1061961548
    %v2748 = vmul.bf16 %v2684, 1061961548
    %v2749 = vmul.bf16 %v2685, 1061961548
    %v2750 = vmul.bf16 %v2686, 1061961548
    %v2751 = vmul.bf16 %v2687, 1061961548
    %v2752 = vmul.bf16 %v2688, 1061961548
    %v2753 = vmul.bf16 %v2689, 1061961548
    %v2754 = vmul.bf16 %v2690, 1061961548
    %v2755 = vmul.bf16 %v2691, 1061961548
    %v2756 = vmul.bf16 %v2692, 1061961548
    %v2757 = vmul.bf16 %v2693, 1061961548
    %v2758 = vmul.bf16 %v2694, 1061961548
    %v2759 = vmul.bf16 %v2695, 1061961548
    %v2760 = vmul.bf16 %v2696, 1061961548
    %v2761 = vmul.bf16 %v2697, 1061961548
    %v2762 = vmul.bf16 %v2698, 1061961548
    %v2763 = vmul.bf16 %v2699, 1061961548
    %v2764 = vmul.bf16 %v2700, 1061961548
    %v2765 = vmul.bf16 %v2701, 1061961548
    %v2766 = vmul.bf16 %v2702, 1061961548
    %v2767 = vmul.bf16 %v2703, 1061961548
    %v2768 = vmul.bf16 %v2704, 1061961548
    %v2769 = vmul.bf16 %v2705, 1061961548
    %v2770 = vmul.bf16 %v2706, 1061961548
    %v2771 = vmul.bf16 %v2707, 1061961548
    %v2772 = vmul.bf16 %v2708, 1061961548
    %v2773 = vmul.bf16 %v2709, 1061961548
    %v2774 = vmul.bf16 %v2710, 1061961548
    %v2775 = vmul.bf16 %v2711, 1061961548
    %v2776 = vmul.bf16 %v2712, 1061961548
    %v2777 = vmul.bf16 %v2713, 1061961548
    %v2778 = vmul.bf16 %v2714, 1061961548
    %v2779 = vmul.bf16 %v2715, 1061961548
    %v2780 = vmul.bf16 %v2716, 1061961548
    %v2781 = vmul.bf16 %v2717, 1061961548
    %v2782 = vmul.bf16 %v2718, 1061961548
    %v2783 = vtanh.bf16.pop %v2719
    %v2784 = vtanh.bf16.pop %v2720
    %v2785 = vtanh.bf16.pop %v2721
    %v2786 = vtanh.bf16.pop %v2722
    %v2787 = vtanh.bf16.pop %v2723
    %v2788 = vtanh.bf16.pop %v2724
    %v2789 = vtanh.bf16.pop %v2725
    %v2790 = vtanh.bf16.pop %v2726
    %v2791 = vtanh.bf16.pop %v2727
    %v2792 = vtanh.bf16.pop %v2728
    %v2793 = vtanh.bf16.pop %v2729
    %v2794 = vtanh.bf16.pop %v2730
    %v2795 = vtanh.bf16.pop %v2731
    %v2796 = vtanh.bf16.pop %v2732
    %v2797 = vtanh.bf16.pop %v2733
    %v2798 = vtanh.bf16.pop %v2734
    %v2799 = vtanh.bf16.pop %v2735
    %v2800 = vtanh.bf16.pop %v2736
    %v2801 = vtanh.bf16.pop %v2737
    %v2802 = vtanh.bf16.pop %v2738
    %v2803 = vtanh.bf16.pop %v2739
    %v2804 = vtanh.bf16.pop %v2740
    %v2805 = vtanh.bf16.pop %v2741
    %v2806 = vtanh.bf16.pop %v2742
    %v2807 = vtanh.bf16.pop %v2743
    %v2808 = vtanh.bf16.pop %v2744
    %v2809 = vtanh.bf16.pop %v2745
    %v2810 = vtanh.bf16.pop %v2746
    %v2811 = vtanh.bf16.pop %v2747
    %v2812 = vtanh.bf16.pop %v2748
    %v2813 = vtanh.bf16.pop %v2749
    %v2814 = vtanh.bf16.pop %v2750
    %v2815 = vtanh.bf16.pop %v2751
    %v2816 = vtanh.bf16.pop %v2752
    %v2817 = vtanh.bf16.pop %v2753
    %v2818 = vtanh.bf16.pop %v2754
    %v2819 = vtanh.bf16.pop %v2755
    %v2820 = vtanh.bf16.pop %v2756
    %v2821 = vtanh.bf16.pop %v2757
    %v2822 = vtanh.bf16.pop %v2758
    %v2823 = vtanh.bf16.pop %v2759
    %v2824 = vtanh.bf16.pop %v2760
    %v2825 = vtanh.bf16.pop %v2761
    %v2826 = vtanh.bf16.pop %v2762
    %v2827 = vtanh.bf16.pop %v2763
    %v2828 = vtanh.bf16.pop %v2764
    %v2829 = vtanh.bf16.pop %v2765
    %v2830 = vtanh.bf16.pop %v2766
    %v2831 = vtanh.bf16.pop %v2767
    %v2832 = vtanh.bf16.pop %v2768
    %v2833 = vtanh.bf16.pop %v2769
    %v2834 = vtanh.bf16.pop %v2770
    %v2835 = vtanh.bf16.pop %v2771
    %v2836 = vtanh.bf16.pop %v2772
    %v2837 = vtanh.bf16.pop %v2773
    %v2838 = vtanh.bf16.pop %v2774
    %v2839 = vtanh.bf16.pop %v2775
    %v2840 = vtanh.bf16.pop %v2776
    %v2841 = vtanh.bf16.pop %v2777
    %v2842 = vtanh.bf16.pop %v2778
    %v2843 = vtanh.bf16.pop %v2779
    %v2844 = vtanh.bf16.pop %v2780
    %v2845 = vtanh.bf16.pop %v2781
    %v2846 = vtanh.bf16.pop %v2782
    %v2847 = vadd.bf16 %v2783, 1065369472
    %v2848 = vadd.bf16 %v2784, 1065369472
    %v2849 = vadd.bf16 %v2785, 1065369472
    %v2850 = vadd.bf16 %v2786, 1065369472
    %v2851 = vadd.bf16 %v2787, 1065369472
    %v2852 = vadd.bf16 %v2788, 1065369472
    %v2853 = vadd.bf16 %v2789, 1065369472
    %v2854 = vadd.bf16 %v2790, 1065369472
    %v2855 = vadd.bf16 %v2791, 1065369472
    %v2856 = vadd.bf16 %v2792, 1065369472
    %v2857 = vadd.bf16 %v2793, 1065369472
    %v2858 = vadd.bf16 %v2794, 1065369472
    %v2859 = vadd.bf16 %v2795, 1065369472
    %v2860 = vadd.bf16 %v2796, 1065369472
    %v2861 = vadd.bf16 %v2797, 1065369472
    %v2862 = vadd.bf16 %v2798, 1065369472
    %v2863 = vadd.bf16 %v2799, 1065369472
    %v2864 = vadd.bf16 %v2800, 1065369472
    %v2865 = vadd.bf16 %v2801, 1065369472
    %v2866 = vadd.bf16 %v2802, 1065369472
    %v2867 = vadd.bf16 %v2803, 1065369472
    %v2868 = vadd.bf16 %v2804, 1065369472
    %v2869 = vadd.bf16 %v2805, 1065369472
    %v2870 = vadd.bf16 %v2806, 1065369472
    %v2871 = vadd.bf16 %v2807, 1065369472
    %v2872 = vadd.bf16 %v2808, 1065369472
    %v2873 = vadd.bf16 %v2809, 1065369472
    %v2874 = vadd.bf16 %v2810, 1065369472
    %v2875 = vadd.bf16 %v2811, 1065369472
    %v2876 = vadd.bf16 %v2812, 1065369472
    %v2877 = vadd.bf16 %v2813, 1065369472
    %v2878 = vadd.bf16 %v2814, 1065369472
    %v2879 = vadd.bf16 %v2815, 1065369472
    %v2880 = vadd.bf16 %v2816, 1065369472
    %v2881 = vadd.bf16 %v2817, 1065369472
    %v2882 = vadd.bf16 %v2818, 1065369472
    %v2883 = vadd.bf16 %v2819, 1065369472
    %v2884 = vadd.bf16 %v2820, 1065369472
    %v2885 = vadd.bf16 %v2821, 1065369472
    %v2886 = vadd.bf16 %v2822, 1065369472
    %v2887 = vadd.bf16 %v2823, 1065369472
    %v2888 = vadd.bf16 %v2824, 1065369472
    %v2889 = vadd.bf16 %v2825, 1065369472
    %v2890 = vadd.bf16 %v2826, 1065369472
    %v2891 = vadd.bf16 %v2827, 1065369472
    %v2892 = vadd.bf16 %v2828, 1065369472
    %v2893 = vadd.bf16 %v2829, 1065369472
    %v2894 = vadd.bf16 %v2830, 1065369472
    %v2895 = vadd.bf16 %v2831, 1065369472
    %v2896 = vadd.bf16 %v2832, 1065369472
    %v2897 = vadd.bf16 %v2833, 1065369472
    %v2898 = vadd.bf16 %v2834, 1065369472
    %v2899 = vadd.bf16 %v2835, 1065369472
    %v2900 = vadd.bf16 %v2836, 1065369472
    %v2901 = vadd.bf16 %v2837, 1065369472
    %v2902 = vadd.bf16 %v2838, 1065369472
    %v2903 = vadd.bf16 %v2839, 1065369472
    %v2904 = vadd.bf16 %v2840, 1065369472
    %v2905 = vadd.bf16 %v2841, 1065369472
    %v2906 = vadd.bf16 %v2842, 1065369472
    %v2907 = vadd.bf16 %v2843, 1065369472
    %v2908 = vadd.bf16 %v2844, 1065369472
    %v2909 = vadd.bf16 %v2845, 1065369472
    %v2910 = vadd.bf16 %v2846, 1065369472
    %v2911 = vmul.bf16 %v2399, %v2847
    %v2912 = vmul.bf16 %v2400, %v2848
    %v2913 = vmul.bf16 %v2401, %v2849
    %v2914 = vmul.bf16 %v2402, %v2850
    %v2915 = vmul.bf16 %v2403, %v2851
    %v2916 = vmul.bf16 %v2404, %v2852
    %v2917 = vmul.bf16 %v2405, %v2853
    %v2918 = vmul.bf16 %v2406, %v2854
    %v2919 = vmul.bf16 %v2407, %v2855
    %v2920 = vmul.bf16 %v2408, %v2856
    %v2921 = vmul.bf16 %v2409, %v2857
    %v2922 = vmul.bf16 %v2410, %v2858
    %v2923 = vmul.bf16 %v2411, %v2859
    %v2924 = vmul.bf16 %v2412, %v2860
    %v2925 = vmul.bf16 %v2413, %v2861
    %v2926 = vmul.bf16 %v2414, %v2862
    %v2927 = vmul.bf16 %v2415, %v2863
    %v2928 = vmul.bf16 %v2416, %v2864
    %v2929 = vmul.bf16 %v2417, %v2865
    %v2930 = vmul.bf16 %v2418, %v2866
    %v2931 = vmul.bf16 %v2419, %v2867
    %v2932 = vmul.bf16 %v2420, %v2868
    %v2933 = vmul.bf16 %v2421, %v2869
    %v2934 = vmul.bf16 %v2422, %v2870
    %v2935 = vmul.bf16 %v2423, %v2871
    %v2936 = vmul.bf16 %v2424, %v2872
    %v2937 = vmul.bf16 %v2425, %v2873
    %v2938 = vmul.bf16 %v2426, %v2874
    %v2939 = vmul.bf16 %v2427, %v2875
    %v2940 = vmul.bf16 %v2428, %v2876
    %v2941 = vmul.bf16 %v2429, %v2877
    %v2942 = vmul.bf16 %v2430, %v2878
    %v2943 = vmul.bf16 %v2431, %v2879
    %v2944 = vmul.bf16 %v2432, %v2880
    %v2945 = vmul.bf16 %v2433, %v2881
    %v2946 = vmul.bf16 %v2434, %v2882
    %v2947 = vmul.bf16 %v2435, %v2883
    %v2948 = vmul.bf16 %v2436, %v2884
    %v2949 = vmul.bf16 %v2437, %v2885
    %v2950 = vmul.bf16 %v2438, %v2886
    %v2951 = vmul.bf16 %v2439, %v2887
    %v2952 = vmul.bf16 %v2440, %v2888
    %v2953 = vmul.bf16 %v2441, %v2889
    %v2954 = vmul.bf16 %v2442, %v2890
    %v2955 = vmul.bf16 %v2443, %v2891
    %v2956 = vmul.bf16 %v2444, %v2892
    %v2957 = vmul.bf16 %v2445, %v2893
    %v2958 = vmul.bf16 %v2446, %v2894
    %v2959 = vmul.bf16 %v2447, %v2895
    %v2960 = vmul.bf16 %v2448, %v2896
    %v2961 = vmul.bf16 %v2449, %v2897
    %v2962 = vmul.bf16 %v2450, %v2898
    %v2963 = vmul.bf16 %v2451, %v2899
    %v2964 = vmul.bf16 %v2452, %v2900
    %v2965 = vmul.bf16 %v2453, %v2901
    %v2966 = vmul.bf16 %v2454, %v2902
    %v2967 = vmul.bf16 %v2455, %v2903
    %v2968 = vmul.bf16 %v2456, %v2904
    %v2969 = vmul.bf16 %v2457, %v2905
    %v2970 = vmul.bf16 %v2458, %v2906
    %v2971 = vmul.bf16 %v2459, %v2907
    %v2972 = vmul.bf16 %v2460, %v2908
    %v2973 = vmul.bf16 %v2461, %v2909
    %v2974 = vmul.bf16 %v2462, %v2910
    %v2975 = vld [vmem:[%s6] sm:$0xff]
    %v2976 = vld [vmem:[%s6 + $0x8] sm:$0xff]
    %v2977 = vld [vmem:[%s6 + $0x10] sm:$0xff]
    %v2978 = vld [vmem:[%s6 + $0x18] sm:$0xff]
    %v2979 = vld [vmem:[%s6 + $0x20] sm:$0xff]
    %v2980 = vld [vmem:[%s6 + $0x28] sm:$0xff]
    %v2981 = vld [vmem:[%s6 + $0x30] sm:$0xff]
    %v2982 = vld [vmem:[%s6 + $0x38] sm:$0xff]
    %v2983 = vld [vmem:[%s7] sm:$0xff]
    %v2984 = vld [vmem:[%s7 + $0x8] sm:$0xff]
    %v2985 = vld [vmem:[%s7 + $0x10] sm:$0xff]
    %v2986 = vld [vmem:[%s7 + $0x18] sm:$0xff]
    %2988 = vset.pattern.permute.xlu0 0
    %2989 = vperm.xlu0 %2988, %v2983
    %v2990 = vpop.permute.xlu0 %2989
    %2993 = vset.pattern.permute.xlu0 0
    %2994 = vperm.xlu0 %2993, %v2984
    %v2995 = vpop.permute.xlu0 %2994
    %2998 = vset.pattern.permute.xlu0 0
    %2999 = vperm.xlu0 %2998, %v2985
    %v3000 = vpop.permute.xlu0 %2999
    %3003 = vset.pattern.permute.xlu0 0
    %3004 = vperm.xlu0 %3003, %v2986
    %v3005 = vpop.permute.xlu0 %3004
    %v3015 = vunpack.c.l.b16 %v2975
    %v3016 = vunpack.c.h.b16 %v2975
    %v3017 = vunpack.c.l.b16 %v2976
    %v3018 = vunpack.c.h.b16 %v2976
    %v3019 = vunpack.c.l.b16 %v2977
    %v3020 = vunpack.c.h.b16 %v2977
    %v3021 = vunpack.c.l.b16 %v2978
    %v3022 = vunpack.c.h.b16 %v2978
    %v3023 = vunpack.c.l.b16 %v2979
    %v3024 = vunpack.c.h.b16 %v2979
    %v3025 = vunpack.c.l.b16 %v2980
    %v3026 = vunpack.c.h.b16 %v2980
    %v3027 = vunpack.c.l.b16 %v2981
    %v3028 = vunpack.c.h.b16 %v2981
    %v3029 = vunpack.c.l.b16 %v2982
    %v3030 = vunpack.c.h.b16 %v2982
    %v3031 = vpack.c.b16 %v3019, %v3015
    %v3032 = vpack.c.b16 %v3020, %v3016
    %v3033 = vpack.c.b16 %v3021, %v3017
    %v3034 = vpack.c.b16 %v3022, %v3018
    %v3035 = vpack.c.b16 %v3027, %v3023
    %v3036 = vpack.c.b16 %v3028, %v3024
    %v3037 = vpack.c.b16 %v3029, %v3025
    %v3038 = vpack.c.b16 %v3030, %v3026
    %3047 = vmatprep.subr.bf16.mxu0 %v2912
    %3048 = vmatpush1.bf16.msra.mxu0 %v2911
    %3049 = vmatprep.subr.bf16.mxu0 %v2914
    %3050 = vmatpush1.bf16.msra.mxu0 %v2913
    %3051 = vmatprep.subr.bf16.mxu0 %v2916
    %3052 = vmatpush1.bf16.msra.mxu0 %v2915
    %3053 = vmatprep.subr.bf16.mxu0 %v2918
    %3054 = vmatpush1.bf16.msra.mxu0 %v2917
    %3055 = vmatprep.subr.bf16.mxu0 %v2920
    %3056 = vmatpush1.bf16.msra.mxu0 %v2919
    %3057 = vmatprep.subr.bf16.mxu0 %v2922
    %3058 = vmatpush1.bf16.msra.mxu0 %v2921
    %3059 = vmatprep.subr.bf16.mxu0 %v2924
    %3060 = vmatpush1.bf16.msra.mxu0 %v2923
    %3061 = vmatprep.subr.bf16.mxu0 %v2926
    %3062 = vmatpush1.bf16.msra.mxu0 %v2925
    %3063 = vmatprep.subr.bf16.mxu0 %v2928
    %3064 = vmatpush1.bf16.msra.mxu0 %v2927
    %3065 = vmatprep.subr.bf16.mxu0 %v2930
    %3066 = vmatpush1.bf16.msra.mxu0 %v2929
    %3067 = vmatprep.subr.bf16.mxu0 %v2932
    %3068 = vmatpush1.bf16.msra.mxu0 %v2931
    %3069 = vmatprep.subr.bf16.mxu0 %v2934
    %3070 = vmatpush1.bf16.msra.mxu0 %v2933
    %3071 = vmatprep.subr.bf16.mxu0 %v2936
    %3072 = vmatpush1.bf16.msra.mxu0 %v2935
    %3073 = vmatprep.subr.bf16.mxu0 %v2938
    %3074 = vmatpush1.bf16.msra.mxu0 %v2937
    %3075 = vmatprep.subr.bf16.mxu0 %v2940
    %3076 = vmatpush1.bf16.msra.mxu0 %v2939
    %3077 = vmatprep.subr.bf16.mxu0 %v2942
    %3078 = vmatpush1.bf16.msra.mxu0 %v2941
    %3079 = vmatprep.mubr.bf16.mxu0 %v3032
    %3080 = vmatmul.mubr.bf16.gmra.mrb[0].mxu0 %v3031
    %v3081 = vpop.f32.mrb[0].mxu0
    %v3082 = vadd.f32 %v2990, %v3081
    %v3083 = vpop.f32.mrb[0].mxu0
    %v3084 = vadd.f32 %v2990, %v3083
    %v3085 = vpop.f32.mrb[0].mxu0
    %v3086 = vadd.f32 %v2995, %v3085
    %v3087 = vpop.f32.mrb[0].mxu0
    %v3088 = vadd.f32 %v2995, %v3087
    %3089 = vmatprep.mubr.bf16.mxu0 %v3036
    %3090 = vmatmul.mubr.bf16.gmra.mrb[0].mxu0 %v3035
    %v3091 = vpop.f32.mrb[0].mxu0
    %v3092 = vadd.f32 %v3000, %v3091
    %v3093 = vpop.f32.mrb[0].mxu0
    %v3094 = vadd.f32 %v3000, %v3093
    %v3095 = vpop.f32.mrb[0].mxu0
    %v3096 = vadd.f32 %v3005, %v3095
    %v3097 = vpop.f32.mrb[0].mxu0
    %v3098 = vadd.f32 %v3005, %v3097
    %3099 = vdwg.mxu0
    %3100 = vmatprep.subr.bf16.mxu0 %v2944
    %3101 = vmatpush1.bf16.msra.mxu0 %v2943
    %3102 = vmatprep.subr.bf16.mxu0 %v2946
    %3103 = vmatpush1.bf16.msra.mxu0 %v2945
    %3104 = vmatprep.subr.bf16.mxu0 %v2948
    %3105 = vmatpush1.bf16.msra.mxu0 %v2947
    %3106 = vmatprep.subr.bf16.mxu0 %v2950
    %3107 = vmatpush1.bf16.msra.mxu0 %v2949
    %3108 = vmatprep.subr.bf16.mxu0 %v2952
    %3109 = vmatpush1.bf16.msra.mxu0 %v2951
    %3110 = vmatprep.subr.bf16.mxu0 %v2954
    %3111 = vmatpush1.bf16.msra.mxu0 %v2953
    %3112 = vmatprep.subr.bf16.mxu0 %v2956
    %3113 = vmatpush1.bf16.msra.mxu0 %v2955
    %3114 = vmatprep.subr.bf16.mxu0 %v2958
    %3115 = vmatpush1.bf16.msra.mxu0 %v2957
    %3116 = vmatprep.subr.bf16.mxu0 %v2960
    %3117 = vmatpush1.bf16.msra.mxu0 %v2959
    %3118 = vmatprep.subr.bf16.mxu0 %v2962
    %3119 = vmatpush1.bf16.msra.mxu0 %v2961
    %3120 = vmatprep.subr.bf16.mxu0 %v2964
    %3121 = vmatpush1.bf16.msra.mxu0 %v2963
    %3122 = vmatprep.subr.bf16.mxu0 %v2966
    %3123 = vmatpush1.bf16.msra.mxu0 %v2965
    %3124 = vmatprep.subr.bf16.mxu0 %v2968
    %3125 = vmatpush1.bf16.msra.mxu0 %v2967
    %3126 = vmatprep.subr.bf16.mxu0 %v2970
    %3127 = vmatpush1.bf16.msra.mxu0 %v2969
    %3128 = vmatprep.subr.bf16.mxu0 %v2972
    %3129 = vmatpush1.bf16.msra.mxu0 %v2971
    %3130 = vmatprep.subr.bf16.mxu0 %v2974
    %3131 = vmatpush1.bf16.msra.mxu0 %v2973
    %3132 = vmatprep.mubr.bf16.mxu0 %v3034
    %3133 = vmatmul.mubr.bf16.gmra.mrb[0].mxu0 %v3033
    %v3134 = vpop.f32.mrb[0].mxu0
    %v3135 = vadd.f32 %v3082, %v3134
    %v3136 = vpop.f32.mrb[0].mxu0
    %v3137 = vadd.f32 %v3084, %v3136
    %v3138 = vpop.f32.mrb[0].mxu0
    %v3139 = vadd.f32 %v3086, %v3138
    %v3140 = vpop.f32.mrb[0].mxu0
    %v3141 = vadd.f32 %v3088, %v3140
    %3142 = vmatprep.mubr.bf16.mxu0 %v3038
    %3143 = vmatmul.mubr.bf16.gmra.mrb[0].mxu0 %v3037
    %v3144 = vpop.f32.mrb[0].mxu0
    %v3145 = vadd.f32 %v3092, %v3144
    %v3146 = vpop.f32.mrb[0].mxu0
    %v3147 = vadd.f32 %v3094, %v3146
    %v3148 = vpop.f32.mrb[0].mxu0
    %v3149 = vadd.f32 %v3096, %v3148
    %v3150 = vpop.f32.mrb[0].mxu0
    %v3151 = vadd.f32 %v3098, %v3150
    %3152 = vdwg.mxu0
    %v3153 = vmul.f32 %v3135, 0.5
    %v3154 = vmul.f32 %v3137, 0.5
    %v3155 = vmul.f32 %v3139, 0.5
    %v3156 = vmul.f32 %v3141, 0.5
    %v3157 = vmul.f32 %v3145, 0.5
    %v3158 = vmul.f32 %v3147, 0.5
    %v3159 = vmul.f32 %v3149, 0.5
    %v3160 = vmul.f32 %v3151, 0.5
    %v3161 = vmul.f32 %v3135, 0.044715
    %v3162 = vmul.f32 %v3137, 0.044715
    %v3163 = vmul.f32 %v3139, 0.044715
    %v3164 = vmul.f32 %v3141, 0.044715
    %v3165 = vmul.f32 %v3145, 0.044715
    %v3166 = vmul.f32 %v3147, 0.044715
    %v3167 = vmul.f32 %v3149, 0.044715
    %v3168 = vmul.f32 %v3151, 0.044715
    %v3169 = vmul.f32 %v3161, %v3135
    %v3170 = vmul.f32 %v3162, %v3137
    %v3171 = vmul.f32 %v3163, %v3139
    %v3172 = vmul.f32 %v3164, %v3141
    %v3173 = vmul.f32 %v3165, %v3145
    %v3174 = vmul.f32 %v3166, %v3147
    %v3175 = vmul.f32 %v3167, %v3149
    %v3176 = vmul.f32 %v3168, %v3151
    %v3177 = vmul.f32 %v3169, %v3135
    %v3178 = vmul.f32 %v3170, %v3137
    %v3179 = vmul.f32 %v3171, %v3139
    %v3180 = vmul.f32 %v3172, %v3141
    %v3181 = vmul.f32 %v3173, %v3145
    %v3182 = vmul.f32 %v3174, %v3147
    %v3183 = vmul.f32 %v3175, %v3149
    %v3184 = vmul.f32 %v3176, %v3151
    %v3185 = vadd.f32 %v3135, %v3177
    %v3186 = vadd.f32 %v3137, %v3178
    %v3187 = vadd.f32 %v3139, %v3179
    %v3188 = vadd.f32 %v3141, %v3180
    %v3189 = vadd.f32 %v3145, %v3181
    %v3190 = vadd.f32 %v3147, %v3182
    %v3191 = vadd.f32 %v3149, %v3183
    %v3192 = vadd.f32 %v3151, %v3184
    %v3193 = vmul.f32 %v3185, 0.7978846
    %v3194 = vmul.f32 %v3186, 0.7978846
    %v3195 = vmul.f32 %v3187, 0.7978846
    %v3196 = vmul.f32 %v3188, 0.7978846
    %v3197 = vmul.f32 %v3189, 0.7978846
    %v3198 = vmul.f32 %v3190, 0.7978846
    %v3199 = vmul.f32 %v3191, 0.7978846
    %v3200 = vmul.f32 %v3192, 0.7978846
    %v3201 = vtanh.pop %v3193
    %v3202 = vtanh.pop %v3194
    %v3203 = vtanh.pop %v3195
    %v3204 = vtanh.pop %v3196
    %v3205 = vtanh.pop %v3197
    %v3206 = vtanh.pop %v3198
    %v3207 = vtanh.pop %v3199
    %v3208 = vtanh.pop %v3200
    %v3209 = vadd.f32 %v3201, 1.0
    %v3210 = vadd.f32 %v3202, 1.0
    %v3211 = vadd.f32 %v3203, 1.0
    %v3212 = vadd.f32 %v3204, 1.0
    %v3213 = vadd.f32 %v3205, 1.0
    %v3214 = vadd.f32 %v3206, 1.0
    %v3215 = vadd.f32 %v3207, 1.0
    %v3216 = vadd.f32 %v3208, 1.0
    %v3217 = vmul.f32 %v3153, %v3209
    %v3218 = vmul.f32 %v3154, %v3210
    %v3219 = vmul.f32 %v3155, %v3211
    %v3220 = vmul.f32 %v3156, %v3212
    %v3221 = vmul.f32 %v3157, %v3213
    %v3222 = vmul.f32 %v3158, %v3214
    %v3223 = vmul.f32 %v3159, %v3215
    %v3224 = vmul.f32 %v3160, %v3216
    %v3225 = vld [vmem:[%s1] sm:$0xff]
    %v3226 = vld [vmem:[%s1 + $0x8] sm:$0xff]
    %v3227 = vld [vmem:[%s1 + $0x10] sm:$0xff]
    %v3228 = vld [vmem:[%s1 + $0x18] sm:$0xff]
    %v3229 = vld [vmem:[%s1 + $0x20] sm:$0xff]
    %v3230 = vld [vmem:[%s1 + $0x28] sm:$0xff]
    %v3231 = vld [vmem:[%s1 + $0x30] sm:$0xff]
    %v3232 = vld [vmem:[%s1 + $0x38] sm:$0xff]
    %v3233 = vadd.f32 %v3225, %v3217
    %v3234 = vadd.f32 %v3226, %v3218
    %v3235 = vadd.f32 %v3227, %v3219
    %v3236 = vadd.f32 %v3228, %v3220
    %v3237 = vadd.f32 %v3229, %v3221
    %v3238 = vadd.f32 %v3230, %v3222
    %v3239 = vadd.f32 %v3231, %v3223
    %v3240 = vadd.f32 %v3232, %v3224
    %3241 = vst [vmem:[#allocation2] sm:$0xff] %v3233
    %3242 = vst [vmem:[#allocation2 + $0x8] sm:$0xff] %v3234
    %3243 = vst [vmem:[#allocation2 + $0x10] sm:$0xff] %v3235
    %3244 = vst [vmem:[#allocation2 + $0x18] sm:$0xff] %v3236
    %3245 = vst [vmem:[#allocation2 + $0x20] sm:$0xff] %v3237
    %3246 = vst [vmem:[#allocation2 + $0x28] sm:$0xff] %v3238
    %3247 = vst [vmem:[#allocation2 + $0x30] sm:$0xff] %v3239
    %3248 = vst [vmem:[#allocation2 + $0x38] sm:$0xff] %v3240
    // Predicated region
    $region34: #{tpu_custom_call.1} parent=1 // pred_check
      _
    $region35: #{tpu_custom_call.1} parent=1 // pred_check_branch
      %3250 = sbr.rel (0) target = $region37
    $region36: #{tpu_custom_call.1} parent=1 // pred_region
      %s3252 = ssub.s32 1024, 1024
      %3253 = vsyncadd [#allocation3], %s3252
      %s3254 = sshll.u32 [#allocation2], 4
      %s3255 = int_to_ptr.vmem [resolvable:$true] %s3254
      %3260 = dma.vmem_to_hbm [thread:$0]  %s3255, 1024, %s8, [#allocation3], 256, 256, 16
    $region37: #{tpu_custom_call.1} parent=1 // pred_fallthru
      _
    // Predicated region
    $region38: #{tpu_custom_call.1} parent=1 // pred_check
      _
    $region39: #{tpu_custom_call.1} parent=1 // pred_check_branch
      %3262 = sbr.rel (0) target = $region41
    $region40: #{tpu_custom_call.1} parent=1 // pred_region
      %3263 = dma.done [#allocation3], 1024
    $region41: #{tpu_custom_call.1} parent=1 // pred_fallthru
      _
    %3264 = vsyncpa [#allocation3], 1

</llo_original>
